<compile_context>
chip_gen: v6e
topology: v6e:2x2x1
jax: 0.10.0
libtpu: 0.0.40
codegen_flags: <defaults>
</compile_context>

<pallas_src>
import math

import jax
import jax.numpy as jnp
from jax.experimental import pallas as pl
from jax.experimental.pallas import tpu as pltpu

FEAT_IN = 6          # raw per-node features
FEAT_IN_PAD = 8      # padded to 8 for sublane alignment of the first matmul
HID = 128            # hidden width of every MLP layer
NOUT = 255           # last_linear logical output
NOUT_PAD = 256       # lane-dense padded output width
NPARENT = 4          # cur_node, parent_1, parent_2, parent_3


# --------------------------- fused forward kernel ---------------------------
def _octsqueeze_kernel(x_ref, fw0_ref, fwr_ref, aw0_ref, aw12_ref,
                       bw0_ref, bw12_ref, wl_ref, b_ref, blast_ref, o_ref):
    TM = x_ref.shape[1]                                   # rows (nodes) per tile

    # rows ordered [cur | p1 | p2 | p3]  (each block is TM rows)
    x = x_ref[...].reshape(NPARENT * TM, FEAT_IN_PAD)     # bf16
    b = b_ref[...]                                        # (11, 128) f32
    blast = blast_ref[...]                                # (1, 256)  f32

    def mm(a, w_bf16):                                    # bf16 MXU, f32 accumulate
        return jnp.dot(a.astype(jnp.bfloat16), w_bf16,
                       preferred_element_type=jnp.float32)

    # ---- shared feature MLP on all 4 node slices at once (M = 4*TM) ----
    h = jax.nn.relu(mm(x, fw0_ref[...]) + b[0:1])
    fwr = fwr_ref[...]                                    # (4, 128, 128) bf16
    for j in range(4):                                    # static unroll
        h = jax.nn.relu(mm(h, fwr[j]) + b[j + 1:j + 2])
    # h rows: [f_c | f_p1 | f_p2 | f_p3]

    # ---- aggregation_layers1, 3 pairings (c,p1),(p1,p2),(p2,p3)  (M = 3*TM) ----
    # left / right operands are contiguous row-slices; lane-concat builds the
    # (3TM, 256) LHS so the first layer is a single K=256 matmul.
    lhs1 = jnp.concatenate([h[0:3 * TM].astype(jnp.bfloat16),
                            h[TM:4 * TM].astype(jnp.bfloat16)], axis=-1)
    y = jax.nn.relu(jnp.dot(lhs1, aw0_ref[...],
                            preferred_element_type=jnp.float32) + b[5:6])
    aw12 = aw12_ref[...]                                  # (2, 128, 128) bf16
    y = jax.nn.relu(y + mm(y, aw12[0]) + b[6:7])          # residual blocks (as in torch)
    y = jax.nn.relu(y + mm(y, aw12[1]) + b[7:8])
    # y rows: [g_cp1 | g_p12 | g_p23]

    # ---- aggregation_layers2, 2 pairings (cp1,p12),(p12,p23)  (M = 2*TM) ----
    lhs2 = jnp.concatenate([y[0:2 * TM].astype(jnp.bfloat16),
                            y[TM:3 * TM].astype(jnp.bfloat16)], axis=-1)
    z = jax.nn.relu(jnp.dot(lhs2, bw0_ref[...],
                            preferred_element_type=jnp.float32) + b[8:9])
    bw12 = bw12_ref[...]                                  # (2, 128, 128) bf16
    z = jax.nn.relu(z + mm(z, bw12[0]) + b[9:10])
    z = jax.nn.relu(z + mm(z, bw12[1]) + b[10:11])
    # z rows: [z_c_p1_p2 | z_p1_p2_p3]

    # ---- last_linear (256 -> 255, padded to 256), single K=256 matmul ----
    lhs3 = jnp.concatenate([z[0:TM].astype(jnp.bfloat16),
                            z[TM:2 * TM].astype(jnp.bfloat16)], axis=-1)
    out = jnp.dot(lhs3, wl_ref[...], preferred_element_type=jnp.float32) + blast
    o_ref[...] = out.astype(o_ref.dtype)


# --------------------------------- wrapper ----------------------------------
def octsqueeze_forward(params, data, *, tm=512):
    """data: (B, N, 4, 6) float -> same output as OctSqueezeNet.forward."""
    data = data.astype(jnp.float32)
    B, N, P, Cin = data.shape
    assert P == NPARENT and Cin == FEAT_IN
    M = B * N

    # Tile selection: big tiles amortize per-step pipeline overhead; small
    # inputs fall back to 128 rows (keeps grid >= 2 whenever M >= 256 so both
    # TensorCores get work under dimension_semantics=("parallel",)).
    if M < 2 * tm:
        tm = 128
    Mp = ((M + tm - 1) // tm) * tm

    # (4, Mp, 8) bf16 with rows ordered [cur | p1 | p2 | p3]
    # (torch: cur = data[:,:,3], p1 = data[:,:,2], p2 = data[:,:,1], p3 = data[:,:,0])
    x = data.reshape(M, P, Cin)[:, ::-1, :].transpose(1, 0, 2)
    x = jnp.pad(x, ((0, 0), (0, Mp - M), (0, FEAT_IN_PAD - Cin)))
    x = x.astype(jnp.bfloat16)

    flops_per_row = (
        NPARENT * (2 * FEAT_IN_PAD * HID + 4 * 2 * HID * HID)      # feature MLP x4
        + 3 * (2 * (2 * HID) * HID + 2 * 2 * HID * HID)            # agg stack 1 x3
        + 2 * (2 * (2 * HID) * HID + 2 * 2 * HID * HID)            # agg stack 2 x2
        + 2 * (2 * HID) * NOUT_PAD)                                # last_linear
    weight_bytes = sum(int(v.size) * v.dtype.itemsize for v in params.values())
    cost = pl.CostEstimate(
        flops=int(flops_per_row) * int(Mp),
        transcendentals=0,
        bytes_accessed=int(Mp) * (NPARENT * FEAT_IN_PAD * 2 + NOUT_PAD * 4)
                       + weight_bytes)

    out = pl.pallas_call(
        _octsqueeze_kernel,
        out_shape=jax.ShapeDtypeStruct((Mp, NOUT_PAD), jnp.float32),
        grid=(Mp // tm,),
        in_specs=[
            pl.BlockSpec((P, tm, FEAT_IN_PAD), lambda i: (0, i, 0)),   # node slices
            pl.BlockSpec((FEAT_IN_PAD, HID), lambda i: (0, 0)),        # feature L0
            pl.BlockSpec((4, HID, HID), lambda i: (0, 0, 0)),          # feature L1..L4
            pl.BlockSpec((2 * HID, HID), lambda i: (0, 0)),            # agg1 L0 (K=256)
            pl.BlockSpec((2, HID, HID), lambda i: (0, 0, 0)),          # agg1 L1..L2
            pl.BlockSpec((2 * HID, HID), lambda i: (0, 0)),            # agg2 L0 (K=256)
            pl.BlockSpec((2, HID, HID), lambda i: (0, 0, 0)),          # agg2 L1..L2
            pl.BlockSpec((2 * HID, NOUT_PAD), lambda i: (0, 0)),       # last_linear
            pl.BlockSpec((11, HID), lambda i: (0, 0)),                 # packed biases
            pl.BlockSpec((1, NOUT_PAD), lambda i: (0, 0)),             # last bias
        ],
        out_specs=pl.BlockSpec((tm, NOUT_PAD), lambda i: (i, 0)),
        compiler_params=pltpu.CompilerParams(
            dimension_semantics=("parallel",),
            vmem_limit_bytes=32 * 1024 * 1024),
        cost_estimate=cost,
    )(x, params["fw0"], params["fwr"], params["aw0"], params["aw12"],
      params["bw0"], params["bw12"], params["wl"], params["b128"],
      params["blast"])

    out = out[:M, :NOUT].reshape(B, N, NOUT)
    return jnp.squeeze(out)


# ----------------------- parameters (packed at init) ------------------------
def init_params(key):
    ks = iter(jax.random.split(key, 24))

    def lin(fan_in, fan_out):
        bound = 1.0 / math.sqrt(fan_in)
        w = jax.random.uniform(next(ks), (fan_in, fan_out), jnp.float32, -bound, bound)
        b = jax.random.uniform(next(ks), (fan_out,), jnp.float32, -bound, bound)
        return w, b

    fw0, fb0 = lin(FEAT_IN, HID)
    fws, fbs = [], []
    for _ in range(4):
        w, b = lin(HID, HID)
        fws.append(w); fbs.append(b)
    a0w, a0b = lin(2 * HID, HID)
    a1w, a1b = lin(HID, HID)
    a2w, a2b = lin(HID, HID)
    c0w, c0b = lin(2 * HID, HID)
    c1w, c1b = lin(HID, HID)
    c2w, c2b = lin(HID, HID)
    lw, lb = lin(2 * HID, NOUT)

    bf16 = lambda a: a.astype(jnp.bfloat16)
    return {
        "fw0": bf16(jnp.pad(fw0, ((0, FEAT_IN_PAD - FEAT_IN), (0, 0)))),  # (8,128)
        "fwr": bf16(jnp.stack(fws)),                                      # (4,128,128)
        "aw0": bf16(a0w),                                                 # (256,128)
        "aw12": bf16(jnp.stack([a1w, a2w])),                              # (2,128,128)
        "bw0": bf16(c0w),                                                 # (256,128)
        "bw12": bf16(jnp.stack([c1w, c2w])),                              # (2,128,128)
        "wl": bf16(jnp.pad(lw, ((0, 0), (0, NOUT_PAD - NOUT)))),          # (256,256)
        "b128": jnp.stack([fb0] + fbs + [a0b, a1b, a2b, c0b, c1b, c2b]),  # (11,128) f32
        "blast": jnp.pad(lb, (0, NOUT_PAD - NOUT)).reshape(1, NOUT_PAD),  # (1,256) f32
    }


# --------------------------- pure-JAX reference ------------------------------
def octsqueeze_reference(params, data):
    f32 = lambda a: a.astype(jnp.float32)
    x = data.astype(jnp.float32)
    p3, p2, p1, c = x[:, :, 0], x[:, :, 1], x[:, :, 2], x[:, :, 3]
    b = params["b128"]

    def feat(v):
        h = jax.nn.relu(v @ f32(params["fw0"])[:FEAT_IN] + b[0])
        for j in range(4):
            h = jax.nn.relu(h @ f32(params["fwr"][j]) + b[j + 1])
        return h

    fc, fp1, fp2, fp3 = feat(c), feat(p1), feat(p2), feat(p3)

    def agg(w0, w12, boff, a, bb):
        y = jax.nn.relu(jnp.concatenate([a, bb], -1) @ f32(w0) + b[boff])
        y = jax.nn.relu(y + y @ f32(w12[0]) + b[boff + 1])
        y = jax.nn.relu(y + y @ f32(w12[1]) + b[boff + 2])
        return y

    g_cp1 = agg(params["aw0"], params["aw12"], 5, fc, fp1)
    g_p12 = agg(params["aw0"], params["aw12"], 5, fp1, fp2)
    g_p23 = agg(params["aw0"], params["aw12"], 5, fp2, fp3)
    z1 = agg(params["bw0"], params["bw12"], 8, g_cp1, g_p12)
    z2 = agg(params["bw0"], params["bw12"], 8, g_p12, g_p23)
    out = (jnp.concatenate([z1, z2], -1) @ f32(params["wl"])[:, :NOUT]
           + params["blast"][0, :NOUT])
    return jnp.squeeze(out)


if __name__ == "__main__":
    key = jax.random.PRNGKey(0)
    k_param, k_data = jax.random.split(key)
    params = init_params(k_param)

    fwd = jax.jit(octsqueeze_forward)

    # (2,128): exercises the small-input TM=128 / grid=2 path
    # (2,1024): exercises the main TM=512 / grid=4 path (K=256 merged layers)
    for (B, N) in [(2, 128), (2, 1024)]:
        data = jax.random.normal(jax.random.fold_in(k_data, N),
                                 (B, N, NPARENT, FEAT_IN), dtype=jnp.float32)
        out = jax.block_until_ready(fwd(params, data))
        ref = octsqueeze_reference(params, data)

        assert out.shape == (B, N, NOUT), out.shape
        assert bool(jnp.all(jnp.isfinite(out)))
        err = float(jnp.max(jnp.abs(out - ref)))      # bf16-matmul vs f32 reference
        assert err < 0.1, err

    print("KERNEL_OK")
</pallas_src>

<mosaic_0001>
module attributes {stable_mosaic.version = 11 : i64} {
  func.func @_octsqueeze_kernel(%arg0: i32, %arg1: memref<4x128x8xbf16, #tpu.memory_space<vmem>>, %arg2: memref<8x128xbf16, #tpu.memory_space<vmem>>, %arg3: memref<4x128x128xbf16, #tpu.memory_space<vmem>>, %arg4: memref<256x128xbf16, #tpu.memory_space<vmem>>, %arg5: memref<2x128x128xbf16, #tpu.memory_space<vmem>>, %arg6: memref<256x128xbf16, #tpu.memory_space<vmem>>, %arg7: memref<2x128x128xbf16, #tpu.memory_space<vmem>>, %arg8: memref<256x256xbf16, #tpu.memory_space<vmem>>, %arg9: memref<11x128xf32, #tpu.memory_space<vmem>>, %arg10: memref<1x256xf32, #tpu.memory_space<vmem>>, %arg11: memref<128x256xf32, #tpu.memory_space<vmem>>) attributes {dimension_semantics = [#tpu.dimension_semantics<parallel>], iteration_bounds = array<i64: 2>, scalar_prefetch = 0 : i64, scratch_operands = 0 : i64, tpu.core_type = #tpu.core_type<tc>, window_params = [{transform_indices = @transform_0, window_bounds = array<i64: 4, 128, 8>}, {pipeline_mode = #tpu.pipeline_mode<synchronous>, transform_indices = @transform_1, window_bounds = array<i64: 8, 128>}, {pipeline_mode = #tpu.pipeline_mode<synchronous>, transform_indices = @transform_2, window_bounds = array<i64: 4, 128, 128>}, {pipeline_mode = #tpu.pipeline_mode<synchronous>, transform_indices = @transform_3, window_bounds = array<i64: 256, 128>}, {pipeline_mode = #tpu.pipeline_mode<synchronous>, transform_indices = @transform_4, window_bounds = array<i64: 2, 128, 128>}, {pipeline_mode = #tpu.pipeline_mode<synchronous>, transform_indices = @transform_5, window_bounds = array<i64: 256, 128>}, {pipeline_mode = #tpu.pipeline_mode<synchronous>, transform_indices = @transform_6, window_bounds = array<i64: 2, 128, 128>}, {pipeline_mode = #tpu.pipeline_mode<synchronous>, transform_indices = @transform_7, window_bounds = array<i64: 256, 256>}, {pipeline_mode = #tpu.pipeline_mode<synchronous>, transform_indices = @transform_8, window_bounds = array<i64: 11, 128>}, {pipeline_mode = #tpu.pipeline_mode<synchronous>, transform_indices = @transform_9, window_bounds = array<i64: 1, 256>}, {transform_indices = @transform_10, window_bounds = array<i64: 128, 256>}]} {
    %c0 = arith.constant 0 : index
    %c0_0 = arith.constant 0 : index
    %c0_1 = arith.constant 0 : index
    %0 = vector.load %arg1[%c0, %c0_0, %c0_1] : memref<4x128x8xbf16, #tpu.memory_space<vmem>>, vector<4x128x8xbf16>
    %1 = vector.shape_cast %0 : vector<4x128x8xbf16> to vector<512x8xbf16>
    %c0_2 = arith.constant 0 : index
    %c0_3 = arith.constant 0 : index
    %2 = vector.load %arg9[%c0_2, %c0_3] : memref<11x128xf32, #tpu.memory_space<vmem>>, vector<11x128xf32>
    %c0_4 = arith.constant 0 : index
    %c0_5 = arith.constant 0 : index
    %3 = vector.load %arg10[%c0_4, %c0_5] : memref<1x256xf32, #tpu.memory_space<vmem>>, vector<1x256xf32>
    %c0_6 = arith.constant 0 : index
    %c0_7 = arith.constant 0 : index
    %4 = vector.load %arg2[%c0_6, %c0_7] : memref<8x128xbf16, #tpu.memory_space<vmem>>, vector<8x128xbf16>
    %cst = arith.constant dense<0.000000e+00> : vector<512x128xf32>
    %5 = tpu.matmul %1, %4, %cst {dimension_numbers = #tpu.dot_dimension_numbers<[1], [0], [0], [1], [0, 0, 1, 1], [], []>} : vector<512x8xbf16>, vector<8x128xbf16>, vector<512x128xf32> -> vector<512x128xf32>
    %6 = vector.extract_strided_slice %2 {offsets = [0, 0], sizes = [1, 128], strides = [1, 1]} : vector<11x128xf32> to vector<1x128xf32>
    %7 = vector.broadcast %6 : vector<1x128xf32> to vector<512x128xf32>
    %8 = arith.addf %5, %7 : vector<512x128xf32>
    %cst_8 = arith.constant 0.000000e+00 : f32
    %9 = vector.broadcast %cst_8 : f32 to vector<512x128xf32>
    %10 = arith.maximumf %8, %9 : vector<512x128xf32>
    %c0_9 = arith.constant 0 : index
    %c0_10 = arith.constant 0 : index
    %c0_11 = arith.constant 0 : index
    %11 = vector.load %arg3[%c0_9, %c0_10, %c0_11] : memref<4x128x128xbf16, #tpu.memory_space<vmem>>, vector<4x128x128xbf16>
    %12 = vector.extract_strided_slice %11 {offsets = [0, 0, 0], sizes = [1, 128, 128], strides = [1, 1, 1]} : vector<4x128x128xbf16> to vector<1x128x128xbf16>
    %13 = vector.shape_cast %12 : vector<1x128x128xbf16> to vector<128x128xbf16>
    %14 = arith.truncf %10 : vector<512x128xf32> to vector<512x128xbf16>
    %cst_12 = arith.constant dense<0.000000e+00> : vector<512x128xf32>
    %15 = tpu.matmul %14, %13, %cst_12 {dimension_numbers = #tpu.dot_dimension_numbers<[1], [0], [0], [1], [0, 0, 1, 1], [], []>} : vector<512x128xbf16>, vector<128x128xbf16>, vector<512x128xf32> -> vector<512x128xf32>
    %16 = vector.extract_strided_slice %2 {offsets = [1, 0], sizes = [1, 128], strides = [1, 1]} : vector<11x128xf32> to vector<1x128xf32>
    %17 = vector.broadcast %16 : vector<1x128xf32> to vector<512x128xf32>
    %18 = arith.addf %15, %17 : vector<512x128xf32>
    %cst_13 = arith.constant 0.000000e+00 : f32
    %19 = vector.broadcast %cst_13 : f32 to vector<512x128xf32>
    %20 = arith.maximumf %18, %19 : vector<512x128xf32>
    %21 = vector.extract_strided_slice %11 {offsets = [1, 0, 0], sizes = [1, 128, 128], strides = [1, 1, 1]} : vector<4x128x128xbf16> to vector<1x128x128xbf16>
    %22 = vector.shape_cast %21 : vector<1x128x128xbf16> to vector<128x128xbf16>
    %23 = arith.truncf %20 : vector<512x128xf32> to vector<512x128xbf16>
    %cst_14 = arith.constant dense<0.000000e+00> : vector<512x128xf32>
    %24 = tpu.matmul %23, %22, %cst_14 {dimension_numbers = #tpu.dot_dimension_numbers<[1], [0], [0], [1], [0, 0, 1, 1], [], []>} : vector<512x128xbf16>, vector<128x128xbf16>, vector<512x128xf32> -> vector<512x128xf32>
    %25 = vector.extract_strided_slice %2 {offsets = [2, 0], sizes = [1, 128], strides = [1, 1]} : vector<11x128xf32> to vector<1x128xf32>
    %26 = vector.broadcast %25 : vector<1x128xf32> to vector<512x128xf32>
    %27 = arith.addf %24, %26 : vector<512x128xf32>
    %cst_15 = arith.constant 0.000000e+00 : f32
    %28 = vector.broadcast %cst_15 : f32 to vector<512x128xf32>
    %29 = arith.maximumf %27, %28 : vector<512x128xf32>
    %30 = vector.extract_strided_slice %11 {offsets = [2, 0, 0], sizes = [1, 128, 128], strides = [1, 1, 1]} : vector<4x128x128xbf16> to vector<1x128x128xbf16>
    %31 = vector.shape_cast %30 : vector<1x128x128xbf16> to vector<128x128xbf16>
    %32 = arith.truncf %29 : vector<512x128xf32> to vector<512x128xbf16>
    %cst_16 = arith.constant dense<0.000000e+00> : vector<512x128xf32>
    %33 = tpu.matmul %32, %31, %cst_16 {dimension_numbers = #tpu.dot_dimension_numbers<[1], [0], [0], [1], [0, 0, 1, 1], [], []>} : vector<512x128xbf16>, vector<128x128xbf16>, vector<512x128xf32> -> vector<512x128xf32>
    %34 = vector.extract_strided_slice %2 {offsets = [3, 0], sizes = [1, 128], strides = [1, 1]} : vector<11x128xf32> to vector<1x128xf32>
    %35 = vector.broadcast %34 : vector<1x128xf32> to vector<512x128xf32>
    %36 = arith.addf %33, %35 : vector<512x128xf32>
    %cst_17 = arith.constant 0.000000e+00 : f32
    %37 = vector.broadcast %cst_17 : f32 to vector<512x128xf32>
    %38 = arith.maximumf %36, %37 : vector<512x128xf32>
    %39 = vector.extract_strided_slice %11 {offsets = [3, 0, 0], sizes = [1, 128, 128], strides = [1, 1, 1]} : vector<4x128x128xbf16> to vector<1x128x128xbf16>
    %40 = vector.shape_cast %39 : vector<1x128x128xbf16> to vector<128x128xbf16>
    %41 = arith.truncf %38 : vector<512x128xf32> to vector<512x128xbf16>
    %cst_18 = arith.constant dense<0.000000e+00> : vector<512x128xf32>
    %42 = tpu.matmul %41, %40, %cst_18 {dimension_numbers = #tpu.dot_dimension_numbers<[1], [0], [0], [1], [0, 0, 1, 1], [], []>} : vector<512x128xbf16>, vector<128x128xbf16>, vector<512x128xf32> -> vector<512x128xf32>
    %43 = vector.extract_strided_slice %2 {offsets = [4, 0], sizes = [1, 128], strides = [1, 1]} : vector<11x128xf32> to vector<1x128xf32>
    %44 = vector.broadcast %43 : vector<1x128xf32> to vector<512x128xf32>
    %45 = arith.addf %42, %44 : vector<512x128xf32>
    %cst_19 = arith.constant 0.000000e+00 : f32
    %46 = vector.broadcast %cst_19 : f32 to vector<512x128xf32>
    %47 = arith.maximumf %45, %46 : vector<512x128xf32>
    %48 = vector.extract_strided_slice %47 {offsets = [0, 0], sizes = [384, 128], strides = [1, 1]} : vector<512x128xf32> to vector<384x128xf32>
    %49 = arith.truncf %48 : vector<384x128xf32> to vector<384x128xbf16>
    %50 = vector.extract_strided_slice %47 {offsets = [128, 0], sizes = [384, 128], strides = [1, 1]} : vector<512x128xf32> to vector<384x128xf32>
    %51 = arith.truncf %50 : vector<384x128xf32> to vector<384x128xbf16>
    %52 = tpu.concatenate %49, %51 in 1 : vector<384x128xbf16>, vector<384x128xbf16> -> vector<384x256xbf16>
    %c0_20 = arith.constant 0 : index
    %c0_21 = arith.constant 0 : index
    %53 = vector.load %arg4[%c0_20, %c0_21] : memref<256x128xbf16, #tpu.memory_space<vmem>>, vector<256x128xbf16>
    %cst_22 = arith.constant dense<0.000000e+00> : vector<384x128xf32>
    %54 = tpu.matmul %52, %53, %cst_22 {dimension_numbers = #tpu.dot_dimension_numbers<[1], [0], [0], [1], [0, 0, 1, 1], [], []>} : vector<384x256xbf16>, vector<256x128xbf16>, vector<384x128xf32> -> vector<384x128xf32>
    %55 = vector.extract_strided_slice %2 {offsets = [5, 0], sizes = [1, 128], strides = [1, 1]} : vector<11x128xf32> to vector<1x128xf32>
    %56 = vector.broadcast %55 : vector<1x128xf32> to vector<384x128xf32>
    %57 = arith.addf %54, %56 : vector<384x128xf32>
    %cst_23 = arith.constant 0.000000e+00 : f32
    %58 = vector.broadcast %cst_23 : f32 to vector<384x128xf32>
    %59 = arith.maximumf %57, %58 : vector<384x128xf32>
    %c0_24 = arith.constant 0 : index
    %c0_25 = arith.constant 0 : index
    %c0_26 = arith.constant 0 : index
    %60 = vector.load %arg5[%c0_24, %c0_25, %c0_26] : memref<2x128x128xbf16, #tpu.memory_space<vmem>>, vector<2x128x128xbf16>
    %61 = vector.extract_strided_slice %60 {offsets = [0, 0, 0], sizes = [1, 128, 128], strides = [1, 1, 1]} : vector<2x128x128xbf16> to vector<1x128x128xbf16>
    %62 = vector.shape_cast %61 : vector<1x128x128xbf16> to vector<128x128xbf16>
    %63 = arith.truncf %59 : vector<384x128xf32> to vector<384x128xbf16>
    %cst_27 = arith.constant dense<0.000000e+00> : vector<384x128xf32>
    %64 = tpu.matmul %63, %62, %cst_27 {dimension_numbers = #tpu.dot_dimension_numbers<[1], [0], [0], [1], [0, 0, 1, 1], [], []>} : vector<384x128xbf16>, vector<128x128xbf16>, vector<384x128xf32> -> vector<384x128xf32>
    %65 = arith.addf %59, %64 : vector<384x128xf32>
    %66 = vector.extract_strided_slice %2 {offsets = [6, 0], sizes = [1, 128], strides = [1, 1]} : vector<11x128xf32> to vector<1x128xf32>
    %67 = vector.broadcast %66 : vector<1x128xf32> to vector<384x128xf32>
    %68 = arith.addf %65, %67 : vector<384x128xf32>
    %cst_28 = arith.constant 0.000000e+00 : f32
    %69 = vector.broadcast %cst_28 : f32 to vector<384x128xf32>
    %70 = arith.maximumf %68, %69 : vector<384x128xf32>
    %71 = vector.extract_strided_slice %60 {offsets = [1, 0, 0], sizes = [1, 128, 128], strides = [1, 1, 1]} : vector<2x128x128xbf16> to vector<1x128x128xbf16>
    %72 = vector.shape_cast %71 : vector<1x128x128xbf16> to vector<128x128xbf16>
    %73 = arith.truncf %70 : vector<384x128xf32> to vector<384x128xbf16>
    %cst_29 = arith.constant dense<0.000000e+00> : vector<384x128xf32>
    %74 = tpu.matmul %73, %72, %cst_29 {dimension_numbers = #tpu.dot_dimension_numbers<[1], [0], [0], [1], [0, 0, 1, 1], [], []>} : vector<384x128xbf16>, vector<128x128xbf16>, vector<384x128xf32> -> vector<384x128xf32>
    %75 = arith.addf %70, %74 : vector<384x128xf32>
    %76 = vector.extract_strided_slice %2 {offsets = [7, 0], sizes = [1, 128], strides = [1, 1]} : vector<11x128xf32> to vector<1x128xf32>
    %77 = vector.broadcast %76 : vector<1x128xf32> to vector<384x128xf32>
    %78 = arith.addf %75, %77 : vector<384x128xf32>
    %cst_30 = arith.constant 0.000000e+00 : f32
    %79 = vector.broadcast %cst_30 : f32 to vector<384x128xf32>
    %80 = arith.maximumf %78, %79 : vector<384x128xf32>
    %81 = vector.extract_strided_slice %80 {offsets = [0, 0], sizes = [256, 128], strides = [1, 1]} : vector<384x128xf32> to vector<256x128xf32>
    %82 = arith.truncf %81 : vector<256x128xf32> to vector<256x128xbf16>
    %83 = vector.extract_strided_slice %80 {offsets = [128, 0], sizes = [256, 128], strides = [1, 1]} : vector<384x128xf32> to vector<256x128xf32>
    %84 = arith.truncf %83 : vector<256x128xf32> to vector<256x128xbf16>
    %85 = tpu.concatenate %82, %84 in 1 : vector<256x128xbf16>, vector<256x128xbf16> -> vector<256x256xbf16>
    %c0_31 = arith.constant 0 : index
    %c0_32 = arith.constant 0 : index
    %86 = vector.load %arg6[%c0_31, %c0_32] : memref<256x128xbf16, #tpu.memory_space<vmem>>, vector<256x128xbf16>
    %cst_33 = arith.constant dense<0.000000e+00> : vector<256x128xf32>
    %87 = tpu.matmul %85, %86, %cst_33 {dimension_numbers = #tpu.dot_dimension_numbers<[1], [0], [0], [1], [0, 0, 1, 1], [], []>} : vector<256x256xbf16>, vector<256x128xbf16>, vector<256x128xf32> -> vector<256x128xf32>
    %88 = vector.extract_strided_slice %2 {offsets = [8, 0], sizes = [1, 128], strides = [1, 1]} : vector<11x128xf32> to vector<1x128xf32>
    %89 = vector.broadcast %88 : vector<1x128xf32> to vector<256x128xf32>
    %90 = arith.addf %87, %89 : vector<256x128xf32>
    %cst_34 = arith.constant 0.000000e+00 : f32
    %91 = vector.broadcast %cst_34 : f32 to vector<256x128xf32>
    %92 = arith.maximumf %90, %91 : vector<256x128xf32>
    %c0_35 = arith.constant 0 : index
    %c0_36 = arith.constant 0 : index
    %c0_37 = arith.constant 0 : index
    %93 = vector.load %arg7[%c0_35, %c0_36, %c0_37] : memref<2x128x128xbf16, #tpu.memory_space<vmem>>, vector<2x128x128xbf16>
    %94 = vector.extract_strided_slice %93 {offsets = [0, 0, 0], sizes = [1, 128, 128], strides = [1, 1, 1]} : vector<2x128x128xbf16> to vector<1x128x128xbf16>
    %95 = vector.shape_cast %94 : vector<1x128x128xbf16> to vector<128x128xbf16>
    %96 = arith.truncf %92 : vector<256x128xf32> to vector<256x128xbf16>
    %cst_38 = arith.constant dense<0.000000e+00> : vector<256x128xf32>
    %97 = tpu.matmul %96, %95, %cst_38 {dimension_numbers = #tpu.dot_dimension_numbers<[1], [0], [0], [1], [0, 0, 1, 1], [], []>} : vector<256x128xbf16>, vector<128x128xbf16>, vector<256x128xf32> -> vector<256x128xf32>
    %98 = arith.addf %92, %97 : vector<256x128xf32>
    %99 = vector.extract_strided_slice %2 {offsets = [9, 0], sizes = [1, 128], strides = [1, 1]} : vector<11x128xf32> to vector<1x128xf32>
    %100 = vector.broadcast %99 : vector<1x128xf32> to vector<256x128xf32>
    %101 = arith.addf %98, %100 : vector<256x128xf32>
    %cst_39 = arith.constant 0.000000e+00 : f32
    %102 = vector.broadcast %cst_39 : f32 to vector<256x128xf32>
    %103 = arith.maximumf %101, %102 : vector<256x128xf32>
    %104 = vector.extract_strided_slice %93 {offsets = [1, 0, 0], sizes = [1, 128, 128], strides = [1, 1, 1]} : vector<2x128x128xbf16> to vector<1x128x128xbf16>
    %105 = vector.shape_cast %104 : vector<1x128x128xbf16> to vector<128x128xbf16>
    %106 = arith.truncf %103 : vector<256x128xf32> to vector<256x128xbf16>
    %cst_40 = arith.constant dense<0.000000e+00> : vector<256x128xf32>
    %107 = tpu.matmul %106, %105, %cst_40 {dimension_numbers = #tpu.dot_dimension_numbers<[1], [0], [0], [1], [0, 0, 1, 1], [], []>} : vector<256x128xbf16>, vector<128x128xbf16>, vector<256x128xf32> -> vector<256x128xf32>
    %108 = arith.addf %103, %107 : vector<256x128xf32>
    %109 = vector.extract_strided_slice %2 {offsets = [10, 0], sizes = [1, 128], strides = [1, 1]} : vector<11x128xf32> to vector<1x128xf32>
    %110 = vector.broadcast %109 : vector<1x128xf32> to vector<256x128xf32>
    %111 = arith.addf %108, %110 : vector<256x128xf32>
    %cst_41 = arith.constant 0.000000e+00 : f32
    %112 = vector.broadcast %cst_41 : f32 to vector<256x128xf32>
    %113 = arith.maximumf %111, %112 : vector<256x128xf32>
    %114 = vector.extract_strided_slice %113 {offsets = [0, 0], sizes = [128, 128], strides = [1, 1]} : vector<256x128xf32> to vector<128x128xf32>
    %115 = arith.truncf %114 : vector<128x128xf32> to vector<128x128xbf16>
    %116 = vector.extract_strided_slice %113 {offsets = [128, 0], sizes = [128, 128], strides = [1, 1]} : vector<256x128xf32> to vector<128x128xf32>
    %117 = arith.truncf %116 : vector<128x128xf32> to vector<128x128xbf16>
    %118 = tpu.concatenate %115, %117 in 1 : vector<128x128xbf16>, vector<128x128xbf16> -> vector<128x256xbf16>
    %c0_42 = arith.constant 0 : index
    %c0_43 = arith.constant 0 : index
    %119 = vector.load %arg8[%c0_42, %c0_43] : memref<256x256xbf16, #tpu.memory_space<vmem>>, vector<256x256xbf16>
    %cst_44 = arith.constant dense<0.000000e+00> : vector<128x256xf32>
    %120 = tpu.matmul %118, %119, %cst_44 {dimension_numbers = #tpu.dot_dimension_numbers<[1], [0], [0], [1], [0, 0, 1, 1], [], []>} : vector<128x256xbf16>, vector<256x256xbf16>, vector<128x256xf32> -> vector<128x256xf32>
    %121 = vector.broadcast %3 : vector<1x256xf32> to vector<128x256xf32>
    %122 = arith.addf %120, %121 : vector<128x256xf32>
    %c0_45 = arith.constant 0 : index
    %c0_46 = arith.constant 0 : index
    %123 = vector.load %arg11[%c0_45, %c0_46] : memref<128x256xf32, #tpu.memory_space<vmem>>, vector<128x256xf32>
    tpu.vector_store %arg11[%c0_45, %c0_46], %122 {strides = array<i32>} : memref<128x256xf32, #tpu.memory_space<vmem>>, vector<128x256xf32>,
    return
  }
  func.func @transform_0(%arg0: i32) -> (i32, i32, i32) {
    %c0_i32 = arith.constant 0 : i32
    %c0_i32_0 = arith.constant 0 : i32
    %c0_i32_1 = arith.constant 0 : i32
    return %c0_i32, %arg0, %c0_i32_0 : i32, i32, i32
  }
  func.func @transform_1(%arg0: i32) -> (i32, i32) {
    %c0_i32 = arith.constant 0 : i32
    %c0_i32_0 = arith.constant 0 : i32
    %c0_i32_1 = arith.constant 0 : i32
    return %c0_i32, %c0_i32_0 : i32, i32
  }
  func.func @transform_2(%arg0: i32) -> (i32, i32, i32) {
    %c0_i32 = arith.constant 0 : i32
    %c0_i32_0 = arith.constant 0 : i32
    %c0_i32_1 = arith.constant 0 : i32
    %c0_i32_2 = arith.constant 0 : i32
    return %c0_i32, %c0_i32_0, %c0_i32_1 : i32, i32, i32
  }
  func.func @transform_3(%arg0: i32) -> (i32, i32) {
    %c0_i32 = arith.constant 0 : i32
    %c0_i32_0 = arith.constant 0 : i32
    %c0_i32_1 = arith.constant 0 : i32
    return %c0_i32, %c0_i32_0 : i32, i32
  }
  func.func @transform_4(%arg0: i32) -> (i32, i32, i32) {
    %c0_i32 = arith.constant 0 : i32
    %c0_i32_0 = arith.constant 0 : i32
    %c0_i32_1 = arith.constant 0 : i32
    %c0_i32_2 = arith.constant 0 : i32
    return %c0_i32, %c0_i32_0, %c0_i32_1 : i32, i32, i32
  }
  func.func @transform_5(%arg0: i32) -> (i32, i32) {
    %c0_i32 = arith.constant 0 : i32
    %c0_i32_0 = arith.constant 0 : i32
    %c0_i32_1 = arith.constant 0 : i32
    return %c0_i32, %c0_i32_0 : i32, i32
  }
  func.func @transform_6(%arg0: i32) -> (i32, i32, i32) {
    %c0_i32 = arith.constant 0 : i32
    %c0_i32_0 = arith.constant 0 : i32
    %c0_i32_1 = arith.constant 0 : i32
    %c0_i32_2 = arith.constant 0 : i32
    return %c0_i32, %c0_i32_0, %c0_i32_1 : i32, i32, i32
  }
  func.func @transform_7(%arg0: i32) -> (i32, i32) {
    %c0_i32 = arith.constant 0 : i32
    %c0_i32_0 = arith.constant 0 : i32
    %c0_i32_1 = arith.constant 0 : i32
    return %c0_i32, %c0_i32_0 : i32, i32
  }
  func.func @transform_8(%arg0: i32) -> (i32, i32) {
    %c0_i32 = arith.constant 0 : i32
    %c0_i32_0 = arith.constant 0 : i32
    %c0_i32_1 = arith.constant 0 : i32
    return %c0_i32, %c0_i32_0 : i32, i32
  }
  func.func @transform_9(%arg0: i32) -> (i32, i32) {
    %c0_i32 = arith.constant 0 : i32
    %c0_i32_0 = arith.constant 0 : i32
    %c0_i32_1 = arith.constant 0 : i32
    return %c0_i32, %c0_i32_0 : i32, i32
  }
  func.func @transform_10(%arg0: i32) -> (i32, i32) {
    %c0_i32 = arith.constant 0 : i32
    %c0_i32_0 = arith.constant 0 : i32
    return %arg0, %c0_i32 : i32, i32
  }
}

</mosaic_0001>

<llo_original>
// kernel: octsqueeze_forward.1
$region0: #{octsqueeze_forward.1}
  #allocation0 [shape = 'u32[]', space=smem, size = 0x4, offset = 0x4, fixed_abs, tag = 'smem constant byte address 0x4 - core index']
  #allocation1 [shape = 'u32[144,128]{1,0:T(1,128)}', space=vmem, size = 0x12000, scoped, tag = 'internal scratch']
  %s0 = inlined_call_operand.vmem [shape: bf16[4,256,8], index: 0, kind: input, shape index: {}]
  %s1 = inlined_call_operand.vmem [shape: bf16[8,128], index: 1, kind: input, shape index: {}]
  %s2 = inlined_call_operand.vmem [shape: bf16[4,128,128], index: 2, kind: input, shape index: {}]
  %s3 = inlined_call_operand.vmem [shape: bf16[256,128], index: 3, kind: input, shape index: {}]
  %s4 = inlined_call_operand.vmem [shape: bf16[2,128,128], index: 4, kind: input, shape index: {}]
  %s5 = inlined_call_operand.vmem [shape: bf16[256,128], index: 5, kind: input, shape index: {}]
  %s6 = inlined_call_operand.vmem [shape: bf16[2,128,128], index: 6, kind: input, shape index: {}]
  %s7 = inlined_call_operand.vmem [shape: bf16[256,256], index: 7, kind: input, shape index: {}]
  %s8 = inlined_call_operand.vmem [shape: f32[11,128], index: 8, kind: input, shape index: {}]
  %s9 = inlined_call_operand.vmem [shape: f32[1,256], index: 9, kind: input, shape index: {}]
  %s10 = inlined_call_operand.vmem [shape: f32[256,256], index: 10, kind: output, shape index: {}]
  %s11 = sld [smem:[#allocation0]]
  $region114: #{octsqueeze_forward.1} parent=0
    _
  %s13 = ssub.s32 1, %s11
  %s14 = scalar_select 0, %s13, %s11
  $region1: #{octsqueeze_forward.1} parent=0
    #allocation2 [shape = 'u8[262144]{0}', space=vmem, size = 0x40000, scoped, tag = 'input window, operand 0']
    loop: start=0, step=1, limit=4
    $region2: #{octsqueeze_forward.1} parent=1 // loop_pre_header
      _
    $region3: #{octsqueeze_forward.1} parent=1 // loop_header
      %s16 = sphi 0, %s20
      %p17 = scmp.ge.s32.totalorder %s16, 4
      %s26 = sphi 0, %s28
      %s29 = sphi 0, %s26
      %s30 = sphi 0, %s29
      %s46 = sphi 0, %s30
      %s50 = sphi 0, %s50
      %s52 = sphi 0, %s50
      %s53 = sphi 0, %s52
      %s67 = sphi 0, %s53
      %s71 = sphi 0, %s71
      %s73 = sphi 0, %s71
      %s74 = sphi 0, %s73
      %s88 = sphi 0, %s74
      %s92 = sphi 0, %s92
      %s94 = sphi 0, %s92
      %s95 = sphi 0, %s94
      %s109 = sphi 0, %s95
      %s113 = sphi 0, %s113
      %s115 = sphi 0, %s113
      %s116 = sphi 0, %s115
      %s130 = sphi 0, %s116
      %s134 = sphi 0, %s134
      %s136 = sphi 0, %s134
      %s137 = sphi 0, %s136
      %s151 = sphi 0, %s137
      %s155 = sphi 0, %s155
      %s157 = sphi 0, %s155
      %s158 = sphi 0, %s157
      %s172 = sphi 0, %s158
      %s176 = sphi 0, %s176
      %s178 = sphi 0, %s176
      %s179 = sphi 0, %s178
      %s193 = sphi 0, %s179
      %s197 = sphi 0, %s197
      %s199 = sphi 0, %s197
      %s200 = sphi 0, %s199
      %s214 = sphi 0, %s200
      %s218 = sphi 0, %s218
      %s220 = sphi 0, %s218
      %s221 = sphi 0, %s220
      %s235 = sphi 0, %s221
      %s241 = sphi 0, %s243
      %s244 = sphi 0, %s241
      %s245 = sphi 0, %s244
      %s261 = sphi 0, %s245
    $region4: #{octsqueeze_forward.1} parent=1 // loop_header_branch
      %19 = sbr.rel (%p17) target = $region8
    $region5: #{octsqueeze_forward.1} parent=1 // loop_body
      %s21 = ssub.s32 %s16, 1
      %s22 = ssub.s32 %s16, 2
      %s23 = sadd.s32 %s16, 1
      %s24 = ssub.s32 %s16, %s23
      %p25 = scmp.eq.s32.totalorder %s24, 0
      %s27 = sadd.s32 %s26, 1
      %s28 = scalar_select %p25, %s26, %s27
      %p31 = pneg %p25
      %p32 = scmp.eq.s32.totalorder %s16, 1
      %p33 = por %p31, %p32
      %p34 = scmp.ne.s32.totalorder %s26, %s29
      %p35 = scmp.eq.s32.totalorder %s16, 0
      %p36 = por %p34, %p35
      %p37 = scmp.ne.s32.totalorder %s26, %s29
      %p38 = scmp.eq.s32.totalorder %s21, 1
      %p39 = por %p37, %p38
      %p40 = scmp.ne.s32.totalorder %s29, %s30
      %p41 = scmp.eq.s32.totalorder %s21, 0
      %p42 = por %p40, %p41
      %p43 = scmp.ne.s32.totalorder %s29, %s30
      %p44 = scmp.eq.s32.totalorder %s22, 1
      %p45 = por %p43, %p44
      %p47 = scmp.ne.s32.totalorder %s30, %s46
      %p48 = scmp.eq.s32.totalorder %s22, 0
      %p49 = por %p47, %p48
      %s51 = sadd.s32 %s50, 1
      %p54 = scmp.eq.s32.totalorder %s16, 1
      %p55 = scmp.ne.s32.totalorder %s50, %s52
      %p56 = scmp.eq.s32.totalorder %s16, 0
      %p57 = por %p55, %p56
      %p58 = scmp.ne.s32.totalorder %s50, %s52
      %p59 = scmp.eq.s32.totalorder %s21, 1
      %p60 = por %p58, %p59
      %p61 = scmp.ne.s32.totalorder %s52, %s53
      %p62 = scmp.eq.s32.totalorder %s21, 0
      %p63 = por %p61, %p62
      %p64 = scmp.ne.s32.totalorder %s52, %s53
      %p65 = scmp.eq.s32.totalorder %s22, 1
      %p66 = por %p64, %p65
      %p68 = scmp.ne.s32.totalorder %s53, %s67
      %p69 = scmp.eq.s32.totalorder %s22, 0
      %p70 = por %p68, %p69
      %s72 = sadd.s32 %s71, 1
      %p75 = scmp.eq.s32.totalorder %s16, 1
      %p76 = scmp.ne.s32.totalorder %s71, %s73
      %p77 = scmp.eq.s32.totalorder %s16, 0
      %p78 = por %p76, %p77
      %p79 = scmp.ne.s32.totalorder %s71, %s73
      %p80 = scmp.eq.s32.totalorder %s21, 1
      %p81 = por %p79, %p80
      %p82 = scmp.ne.s32.totalorder %s73, %s74
      %p83 = scmp.eq.s32.totalorder %s21, 0
      %p84 = por %p82, %p83
      %p85 = scmp.ne.s32.totalorder %s73, %s74
      %p86 = scmp.eq.s32.totalorder %s22, 1
      %p87 = por %p85, %p86
      %p89 = scmp.ne.s32.totalorder %s74, %s88
      %p90 = scmp.eq.s32.totalorder %s22, 0
      %p91 = por %p89, %p90
      %s93 = sadd.s32 %s92, 1
      %p96 = scmp.eq.s32.totalorder %s16, 1
      %p97 = scmp.ne.s32.totalorder %s92, %s94
      %p98 = scmp.eq.s32.totalorder %s16, 0
      %p99 = por %p97, %p98
      %p100 = scmp.ne.s32.totalorder %s92, %s94
      %p101 = scmp.eq.s32.totalorder %s21, 1
      %p102 = por %p100, %p101
      %p103 = scmp.ne.s32.totalorder %s94, %s95
      %p104 = scmp.eq.s32.totalorder %s21, 0
      %p105 = por %p103, %p104
      %p106 = scmp.ne.s32.totalorder %s94, %s95
      %p107 = scmp.eq.s32.totalorder %s22, 1
      %p108 = por %p106, %p107
      %p110 = scmp.ne.s32.totalorder %s95, %s109
      %p111 = scmp.eq.s32.totalorder %s22, 0
      %p112 = por %p110, %p111
      %s114 = sadd.s32 %s113, 1
      %p117 = scmp.eq.s32.totalorder %s16, 1
      %p118 = scmp.ne.s32.totalorder %s113, %s115
      %p119 = scmp.eq.s32.totalorder %s16, 0
      %p120 = por %p118, %p119
      %p121 = scmp.ne.s32.totalorder %s113, %s115
      %p122 = scmp.eq.s32.totalorder %s21, 1
      %p123 = por %p121, %p122
      %p124 = scmp.ne.s32.totalorder %s115, %s116
      %p125 = scmp.eq.s32.totalorder %s21, 0
      %p126 = por %p124, %p125
      %p127 = scmp.ne.s32.totalorder %s115, %s116
      %p128 = scmp.eq.s32.totalorder %s22, 1
      %p129 = por %p127, %p128
      %p131 = scmp.ne.s32.totalorder %s116, %s130
      %p132 = scmp.eq.s32.totalorder %s22, 0
      %p133 = por %p131, %p132
      %s135 = sadd.s32 %s134, 1
      %p138 = scmp.eq.s32.totalorder %s16, 1
      %p139 = scmp.ne.s32.totalorder %s134, %s136
      %p140 = scmp.eq.s32.totalorder %s16, 0
      %p141 = por %p139, %p140
      %p142 = scmp.ne.s32.totalorder %s134, %s136
      %p143 = scmp.eq.s32.totalorder %s21, 1
      %p144 = por %p142, %p143
      %p145 = scmp.ne.s32.totalorder %s136, %s137
      %p146 = scmp.eq.s32.totalorder %s21, 0
      %p147 = por %p145, %p146
      %p148 = scmp.ne.s32.totalorder %s136, %s137
      %p149 = scmp.eq.s32.totalorder %s22, 1
      %p150 = por %p148, %p149
      %p152 = scmp.ne.s32.totalorder %s137, %s151
      %p153 = scmp.eq.s32.totalorder %s22, 0
      %p154 = por %p152, %p153
      %s156 = sadd.s32 %s155, 1
      %p159 = scmp.eq.s32.totalorder %s16, 1
      %p160 = scmp.ne.s32.totalorder %s155, %s157
      %p161 = scmp.eq.s32.totalorder %s16, 0
      %p162 = por %p160, %p161
      %p163 = scmp.ne.s32.totalorder %s155, %s157
      %p164 = scmp.eq.s32.totalorder %s21, 1
      %p165 = por %p163, %p164
      %p166 = scmp.ne.s32.totalorder %s157, %s158
      %p167 = scmp.eq.s32.totalorder %s21, 0
      %p168 = por %p166, %p167
      %p169 = scmp.ne.s32.totalorder %s157, %s158
      %p170 = scmp.eq.s32.totalorder %s22, 1
      %p171 = por %p169, %p170
      %p173 = scmp.ne.s32.totalorder %s158, %s172
      %p174 = scmp.eq.s32.totalorder %s22, 0
      %p175 = por %p173, %p174
      %s177 = sadd.s32 %s176, 1
      %p180 = scmp.eq.s32.totalorder %s16, 1
      %p181 = scmp.ne.s32.totalorder %s176, %s178
      %p182 = scmp.eq.s32.totalorder %s16, 0
      %p183 = por %p181, %p182
      %p184 = scmp.ne.s32.totalorder %s176, %s178
      %p185 = scmp.eq.s32.totalorder %s21, 1
      %p186 = por %p184, %p185
      %p187 = scmp.ne.s32.totalorder %s178, %s179
      %p188 = scmp.eq.s32.totalorder %s21, 0
      %p189 = por %p187, %p188
      %p190 = scmp.ne.s32.totalorder %s178, %s179
      %p191 = scmp.eq.s32.totalorder %s22, 1
      %p192 = por %p190, %p191
      %p194 = scmp.ne.s32.totalorder %s179, %s193
      %p195 = scmp.eq.s32.totalorder %s22, 0
      %p196 = por %p194, %p195
      %s198 = sadd.s32 %s197, 1
      %p201 = scmp.eq.s32.totalorder %s16, 1
      %p202 = scmp.ne.s32.totalorder %s197, %s199
      %p203 = scmp.eq.s32.totalorder %s16, 0
      %p204 = por %p202, %p203
      %p205 = scmp.ne.s32.totalorder %s197, %s199
      %p206 = scmp.eq.s32.totalorder %s21, 1
      %p207 = por %p205, %p206
      %p208 = scmp.ne.s32.totalorder %s199, %s200
      %p209 = scmp.eq.s32.totalorder %s21, 0
      %p210 = por %p208, %p209
      %p211 = scmp.ne.s32.totalorder %s199, %s200
      %p212 = scmp.eq.s32.totalorder %s22, 1
      %p213 = por %p211, %p212
      %p215 = scmp.ne.s32.totalorder %s200, %s214
      %p216 = scmp.eq.s32.totalorder %s22, 0
      %p217 = por %p215, %p216
      %s219 = sadd.s32 %s218, 1
      %p222 = scmp.eq.s32.totalorder %s16, 1
      %p223 = scmp.ne.s32.totalorder %s218, %s220
      %p224 = scmp.eq.s32.totalorder %s16, 0
      %p225 = por %p223, %p224
      %p226 = scmp.ne.s32.totalorder %s218, %s220
      %p227 = scmp.eq.s32.totalorder %s21, 1
      %p228 = por %p226, %p227
      %p229 = scmp.ne.s32.totalorder %s220, %s221
      %p230 = scmp.eq.s32.totalorder %s21, 0
      %p231 = por %p229, %p230
      %p232 = scmp.ne.s32.totalorder %s220, %s221
      %p233 = scmp.eq.s32.totalorder %s22, 1
      %p234 = por %p232, %p233
      %p236 = scmp.ne.s32.totalorder %s221, %s235
      %p237 = scmp.eq.s32.totalorder %s22, 0
      %p238 = por %p236, %p237
      %s239 = ssub.s32 %s16, %s23
      %p240 = scmp.eq.s32.totalorder %s239, 0
      %s242 = sadd.s32 %s241, 1
      %s243 = scalar_select %p240, %s241, %s242
      %p246 = pneg %p240
      %p247 = scmp.eq.s32.totalorder %s16, 1
      %p248 = por %p246, %p247
      %p249 = scmp.ne.s32.totalorder %s241, %s244
      %p250 = scmp.eq.s32.totalorder %s16, 0
      %p251 = por %p249, %p250
      %p252 = scmp.ne.s32.totalorder %s241, %s244
      %p253 = scmp.eq.s32.totalorder %s21, 1
      %p254 = por %p252, %p253
      %p255 = scmp.ne.s32.totalorder %s244, %s245
      %p256 = scmp.eq.s32.totalorder %s21, 0
      %p257 = por %p255, %p256
      %p258 = scmp.ne.s32.totalorder %s244, %s245
      %p259 = scmp.eq.s32.totalorder %s22, 1
      %p260 = por %p258, %p259
      %p262 = scmp.ne.s32.totalorder %s245, %s261
      %p263 = scmp.eq.s32.totalorder %s22, 0
      %p264 = por %p262, %p263
      %p265 = scmp.le.s32.totalorder 1, %s16
      %p266 = scmp.lt.s32.totalorder %s16, 3
      %p267 = pnand %p265, %p266
      %p268 = pneg %p267
      // Predicated region
      $region9: #{octsqueeze_forward.1} parent=5 // pred_check
        _
      $region10: #{octsqueeze_forward.1} parent=5 // pred_check_branch
        %270 = sbr.rel (%p267) target = $region12
      $region11: #{octsqueeze_forward.1} parent=5 // pred_region
        %s271 = ssub.s32 %s16, 1
        // Predicated region
        $region13: #{octsqueeze_forward.1} parent=11 // pred_check
          %p272 = pneg %p63
        $region14: #{octsqueeze_forward.1} parent=11 // pred_check_branch
          %274 = sbr.rel (%p272) target = $region16
        $region15: #{octsqueeze_forward.1} parent=11 // pred_region
          _
        $region16: #{octsqueeze_forward.1} parent=11 // pred_fallthru
          _
        // Predicated region
        $region17: #{octsqueeze_forward.1} parent=11 // pred_check
          %p275 = pneg %p84
        $region18: #{octsqueeze_forward.1} parent=11 // pred_check_branch
          %277 = sbr.rel (%p275) target = $region20
        $region19: #{octsqueeze_forward.1} parent=11 // pred_region
          _
        $region20: #{octsqueeze_forward.1} parent=11 // pred_fallthru
          _
        // Predicated region
        $region21: #{octsqueeze_forward.1} parent=11 // pred_check
          %p278 = pneg %p105
        $region22: #{octsqueeze_forward.1} parent=11 // pred_check_branch
          %280 = sbr.rel (%p278) target = $region24
        $region23: #{octsqueeze_forward.1} parent=11 // pred_region
          _
        $region24: #{octsqueeze_forward.1} parent=11 // pred_fallthru
          _
        // Predicated region
        $region25: #{octsqueeze_forward.1} parent=11 // pred_check
          %p281 = pneg %p126
        $region26: #{octsqueeze_forward.1} parent=11 // pred_check_branch
          %283 = sbr.rel (%p281) target = $region28
        $region27: #{octsqueeze_forward.1} parent=11 // pred_region
          _
        $region28: #{octsqueeze_forward.1} parent=11 // pred_fallthru
          _
        // Predicated region
        $region29: #{octsqueeze_forward.1} parent=11 // pred_check
          %p284 = pneg %p147
        $region30: #{octsqueeze_forward.1} parent=11 // pred_check_branch
          %286 = sbr.rel (%p284) target = $region32
        $region31: #{octsqueeze_forward.1} parent=11 // pred_region
          _
        $region32: #{octsqueeze_forward.1} parent=11 // pred_fallthru
          _
        // Predicated region
        $region33: #{octsqueeze_forward.1} parent=11 // pred_check
          %p287 = pneg %p168
        $region34: #{octsqueeze_forward.1} parent=11 // pred_check_branch
          %289 = sbr.rel (%p287) target = $region36
        $region35: #{octsqueeze_forward.1} parent=11 // pred_region
          _
        $region36: #{octsqueeze_forward.1} parent=11 // pred_fallthru
          _
        // Predicated region
        $region37: #{octsqueeze_forward.1} parent=11 // pred_check
          %p290 = pneg %p189
        $region38: #{octsqueeze_forward.1} parent=11 // pred_check_branch
          %292 = sbr.rel (%p290) target = $region40
        $region39: #{octsqueeze_forward.1} parent=11 // pred_region
          _
        $region40: #{octsqueeze_forward.1} parent=11 // pred_fallthru
          _
        // Predicated region
        $region41: #{octsqueeze_forward.1} parent=11 // pred_check
          %p293 = pneg %p210
        $region42: #{octsqueeze_forward.1} parent=11 // pred_check_branch
          %295 = sbr.rel (%p293) target = $region44
        $region43: #{octsqueeze_forward.1} parent=11 // pred_region
          _
        $region44: #{octsqueeze_forward.1} parent=11 // pred_fallthru
          _
        // Predicated region
        $region45: #{octsqueeze_forward.1} parent=11 // pred_check
          %p296 = pneg %p231
        $region46: #{octsqueeze_forward.1} parent=11 // pred_check_branch
          %298 = sbr.rel (%p296) target = $region48
        $region47: #{octsqueeze_forward.1} parent=11 // pred_region
          _
        $region48: #{octsqueeze_forward.1} parent=11 // pred_fallthru
          _
      $region12: #{octsqueeze_forward.1} parent=5 // pred_fallthru
        _
      %p299 = scmp.lt.s32.totalorder %s16, 2
      // Predicated region
      $region49: #{octsqueeze_forward.1} parent=5 // pred_check
        %p300 = pneg %p299
      $region50: #{octsqueeze_forward.1} parent=5 // pred_check_branch
        %302 = sbr.rel (%p300) target = $region52
      $region51: #{octsqueeze_forward.1} parent=5 // pred_region
        // Predicated region
        $region53: #{octsqueeze_forward.1} parent=51 // pred_check
          %p303 = pneg %p36
        $region54: #{octsqueeze_forward.1} parent=51 // pred_check_branch
          %305 = sbr.rel (%p303) target = $region56
        $region55: #{octsqueeze_forward.1} parent=51 // pred_region
          %s306 = sand.u32 %s26, 1
          %s307 = sand.u32 %s26, 1
          %s308 = smul.addr %s307, 256
          %s309 = scalar_lea.vmem [#allocation2], %s308
          %s310 = smul.u32 16, %s16
          %s311 = smul.addr %s310, 4
          %s312 = scalar_lea.vmem %s0, %s311
          // Predicated region
          $region57: #{octsqueeze_forward.1} parent=55 // pred_check
            _
          $region58: #{octsqueeze_forward.1} parent=55 // pred_check_branch
            %314 = sbr.rel (0) target = $region60
          $region59: #{octsqueeze_forward.1} parent=55 // pred_region
            // Predicated region
            $region61: #{octsqueeze_forward.1} parent=59 // pred_check
              _
            $region62: #{octsqueeze_forward.1} parent=59 // pred_check_branch
              %316 = sbr.rel target = $region64
            $region63: #{octsqueeze_forward.1} parent=59 // pred_region
              // Predicated region
              $region76: #{octsqueeze_forward.1} parent=63 // pred_check
                _
              $region77: #{octsqueeze_forward.1} parent=63 // pred_check_branch
                %458 = sbr.rel (0) target = $region79
              $region78: #{octsqueeze_forward.1} parent=63 // pred_region
                loop: start=0, step=1, limit=1
                $region80: #{octsqueeze_forward.1} parent=78 // loop_pre_header
                  _
                $region81: #{octsqueeze_forward.1} parent=78 // loop_header
                  %s460 = sphi 0, %s464
                  %p461 = scmp.ge.s32.totalorder %s460, 1
                  %s465 = sphi %s312, %s312
                  %s466 = sphi %s309, %s309
                $region82: #{octsqueeze_forward.1} parent=78 // loop_header_branch
                  %463 = sbr.rel (%p461) target = $region86
                $region83: #{octsqueeze_forward.1} parent=78 // loop_body
                  _
                $region84: #{octsqueeze_forward.1} parent=78 // loop_footer
                  %s464 = sadd.s32 1, %s460
                $region85: #{octsqueeze_forward.1} parent=78 // loop_footer_branch
                  %459 = sbr.rel target = $region81
                $region86: #{octsqueeze_forward.1} parent=78 // loop_exit
                  _
                %s468 = ssub.s32 16, 1
                loop: start=0, step=1, limit=1
                $region87: #{octsqueeze_forward.1} parent=78 // loop_pre_header
                  _
                $region88: #{octsqueeze_forward.1} parent=78 // loop_header
                  %s470 = sphi 0, %s474
                  %p471 = scmp.ge.s32.totalorder %s470, 1
                  %s475 = sphi %s312, %s312
                  %s476 = sphi %s309, %s309
                $region89: #{octsqueeze_forward.1} parent=78 // loop_header_branch
                  %473 = sbr.rel (%p471) target = $region93
                $region90: #{octsqueeze_forward.1} parent=78 // loop_body
                  %v477 = vld [vmem:[%s475] sm:%s468]
                  %478 = vst [vmem:[%s476] sm:%s468] %v477
                  %v479 = vld [vmem:[%s475 + $0x4] sm:%s468]
                  %480 = vst [vmem:[%s476 + $0x4] sm:%s468] %v479
                  %v481 = vld [vmem:[%s475 + $0x8] sm:%s468]
                  %482 = vst [vmem:[%s476 + $0x8] sm:%s468] %v481
                  %v483 = vld [vmem:[%s475 + $0xc] sm:%s468]
                  %484 = vst [vmem:[%s476 + $0xc] sm:%s468] %v483
                  %v485 = vld [vmem:[%s475 + $0x10] sm:%s468]
                  %486 = vst [vmem:[%s476 + $0x10] sm:%s468] %v485
                  %v487 = vld [vmem:[%s475 + $0x14] sm:%s468]
                  %488 = vst [vmem:[%s476 + $0x14] sm:%s468] %v487
                  %v489 = vld [vmem:[%s475 + $0x18] sm:%s468]
                  %490 = vst [vmem:[%s476 + $0x18] sm:%s468] %v489
                  %v491 = vld [vmem:[%s475 + $0x1c] sm:%s468]
                  %492 = vst [vmem:[%s476 + $0x1c] sm:%s468] %v491
                  %v493 = vld [vmem:[%s475 + $0x20] sm:%s468]
                  %494 = vst [vmem:[%s476 + $0x20] sm:%s468] %v493
                  %v495 = vld [vmem:[%s475 + $0x24] sm:%s468]
                  %496 = vst [vmem:[%s476 + $0x24] sm:%s468] %v495
                  %v497 = vld [vmem:[%s475 + $0x28] sm:%s468]
                  %498 = vst [vmem:[%s476 + $0x28] sm:%s468] %v497
                  %v499 = vld [vmem:[%s475 + $0x2c] sm:%s468]
                  %500 = vst [vmem:[%s476 + $0x2c] sm:%s468] %v499
                  %v501 = vld [vmem:[%s475 + $0x30] sm:%s468]
                  %502 = vst [vmem:[%s476 + $0x30] sm:%s468] %v501
                  %v503 = vld [vmem:[%s475 + $0x34] sm:%s468]
                  %504 = vst [vmem:[%s476 + $0x34] sm:%s468] %v503
                  %v505 = vld [vmem:[%s475 + $0x38] sm:%s468]
                  %506 = vst [vmem:[%s476 + $0x38] sm:%s468] %v505
                  %v507 = vld [vmem:[%s475 + $0x3c] sm:%s468]
                  %508 = vst [vmem:[%s476 + $0x3c] sm:%s468] %v507
                  %v509 = vld [vmem:[%s475 + $0x80] sm:%s468]
                  %510 = vst [vmem:[%s476 + $0x40] sm:%s468] %v509
                  %v511 = vld [vmem:[%s475 + $0x84] sm:%s468]
                  %512 = vst [vmem:[%s476 + $0x44] sm:%s468] %v511
                  %v513 = vld [vmem:[%s475 + $0x88] sm:%s468]
                  %514 = vst [vmem:[%s476 + $0x48] sm:%s468] %v513
                  %v515 = vld [vmem:[%s475 + $0x8c] sm:%s468]
                  %516 = vst [vmem:[%s476 + $0x4c] sm:%s468] %v515
                  %v517 = vld [vmem:[%s475 + $0x90] sm:%s468]
                  %518 = vst [vmem:[%s476 + $0x50] sm:%s468] %v517
                  %v519 = vld [vmem:[%s475 + $0x94] sm:%s468]
                  %520 = vst [vmem:[%s476 + $0x54] sm:%s468] %v519
                  %v521 = vld [vmem:[%s475 + $0x98] sm:%s468]
                  %522 = vst [vmem:[%s476 + $0x58] sm:%s468] %v521
                  %v523 = vld [vmem:[%s475 + $0x9c] sm:%s468]
                  %524 = vst [vmem:[%s476 + $0x5c] sm:%s468] %v523
                  %v525 = vld [vmem:[%s475 + $0xa0] sm:%s468]
                  %526 = vst [vmem:[%s476 + $0x60] sm:%s468] %v525
                  %v527 = vld [vmem:[%s475 + $0xa4] sm:%s468]
                  %528 = vst [vmem:[%s476 + $0x64] sm:%s468] %v527
                  %v529 = vld [vmem:[%s475 + $0xa8] sm:%s468]
                  %530 = vst [vmem:[%s476 + $0x68] sm:%s468] %v529
                  %v531 = vld [vmem:[%s475 + $0xac] sm:%s468]
                  %532 = vst [vmem:[%s476 + $0x6c] sm:%s468] %v531
                  %v533 = vld [vmem:[%s475 + $0xb0] sm:%s468]
                  %534 = vst [vmem:[%s476 + $0x70] sm:%s468] %v533
                  %v535 = vld [vmem:[%s475 + $0xb4] sm:%s468]
                  %536 = vst [vmem:[%s476 + $0x74] sm:%s468] %v535
                  %v537 = vld [vmem:[%s475 + $0xb8] sm:%s468]
                  %538 = vst [vmem:[%s476 + $0x78] sm:%s468] %v537
                  %v539 = vld [vmem:[%s475 + $0xbc] sm:%s468]
                  %540 = vst [vmem:[%s476 + $0x7c] sm:%s468] %v539
                  %v541 = vld [vmem:[%s475 + $0x100] sm:%s468]
                  %542 = vst [vmem:[%s476 + $0x80] sm:%s468] %v541
                  %v543 = vld [vmem:[%s475 + $0x104] sm:%s468]
                  %544 = vst [vmem:[%s476 + $0x84] sm:%s468] %v543
                  %v545 = vld [vmem:[%s475 + $0x108] sm:%s468]
                  %546 = vst [vmem:[%s476 + $0x88] sm:%s468] %v545
                  %v547 = vld [vmem:[%s475 + $0x10c] sm:%s468]
                  %548 = vst [vmem:[%s476 + $0x8c] sm:%s468] %v547
                  %v549 = vld [vmem:[%s475 + $0x110] sm:%s468]
                  %550 = vst [vmem:[%s476 + $0x90] sm:%s468] %v549
                  %v551 = vld [vmem:[%s475 + $0x114] sm:%s468]
                  %552 = vst [vmem:[%s476 + $0x94] sm:%s468] %v551
                  %v553 = vld [vmem:[%s475 + $0x118] sm:%s468]
                  %554 = vst [vmem:[%s476 + $0x98] sm:%s468] %v553
                  %v555 = vld [vmem:[%s475 + $0x11c] sm:%s468]
                  %556 = vst [vmem:[%s476 + $0x9c] sm:%s468] %v555
                  %v557 = vld [vmem:[%s475 + $0x120] sm:%s468]
                  %558 = vst [vmem:[%s476 + $0xa0] sm:%s468] %v557
                  %v559 = vld [vmem:[%s475 + $0x124] sm:%s468]
                  %560 = vst [vmem:[%s476 + $0xa4] sm:%s468] %v559
                  %v561 = vld [vmem:[%s475 + $0x128] sm:%s468]
                  %562 = vst [vmem:[%s476 + $0xa8] sm:%s468] %v561
                  %v563 = vld [vmem:[%s475 + $0x12c] sm:%s468]
                  %564 = vst [vmem:[%s476 + $0xac] sm:%s468] %v563
                  %v565 = vld [vmem:[%s475 + $0x130] sm:%s468]
                  %566 = vst [vmem:[%s476 + $0xb0] sm:%s468] %v565
                  %v567 = vld [vmem:[%s475 + $0x134] sm:%s468]
                  %568 = vst [vmem:[%s476 + $0xb4] sm:%s468] %v567
                  %v569 = vld [vmem:[%s475 + $0x138] sm:%s468]
                  %570 = vst [vmem:[%s476 + $0xb8] sm:%s468] %v569
                  %v571 = vld [vmem:[%s475 + $0x13c] sm:%s468]
                  %572 = vst [vmem:[%s476 + $0xbc] sm:%s468] %v571
                  %v573 = vld [vmem:[%s475 + $0x180] sm:%s468]
                  %574 = vst [vmem:[%s476 + $0xc0] sm:%s468] %v573
                  %v575 = vld [vmem:[%s475 + $0x184] sm:%s468]
                  %576 = vst [vmem:[%s476 + $0xc4] sm:%s468] %v575
                  %v577 = vld [vmem:[%s475 + $0x188] sm:%s468]
                  %578 = vst [vmem:[%s476 + $0xc8] sm:%s468] %v577
                  %v579 = vld [vmem:[%s475 + $0x18c] sm:%s468]
                  %580 = vst [vmem:[%s476 + $0xcc] sm:%s468] %v579
                  %v581 = vld [vmem:[%s475 + $0x190] sm:%s468]
                  %582 = vst [vmem:[%s476 + $0xd0] sm:%s468] %v581
                  %v583 = vld [vmem:[%s475 + $0x194] sm:%s468]
                  %584 = vst [vmem:[%s476 + $0xd4] sm:%s468] %v583
                  %v585 = vld [vmem:[%s475 + $0x198] sm:%s468]
                  %586 = vst [vmem:[%s476 + $0xd8] sm:%s468] %v585
                  %v587 = vld [vmem:[%s475 + $0x19c] sm:%s468]
                  %588 = vst [vmem:[%s476 + $0xdc] sm:%s468] %v587
                  %v589 = vld [vmem:[%s475 + $0x1a0] sm:%s468]
                  %590 = vst [vmem:[%s476 + $0xe0] sm:%s468] %v589
                  %v591 = vld [vmem:[%s475 + $0x1a4] sm:%s468]
                  %592 = vst [vmem:[%s476 + $0xe4] sm:%s468] %v591
                  %v593 = vld [vmem:[%s475 + $0x1a8] sm:%s468]
                  %594 = vst [vmem:[%s476 + $0xe8] sm:%s468] %v593
                  %v595 = vld [vmem:[%s475 + $0x1ac] sm:%s468]
                  %596 = vst [vmem:[%s476 + $0xec] sm:%s468] %v595
                  %v597 = vld [vmem:[%s475 + $0x1b0] sm:%s468]
                  %598 = vst [vmem:[%s476 + $0xf0] sm:%s468] %v597
                  %v599 = vld [vmem:[%s475 + $0x1b4] sm:%s468]
                  %600 = vst [vmem:[%s476 + $0xf4] sm:%s468] %v599
                  %v601 = vld [vmem:[%s475 + $0x1b8] sm:%s468]
                  %602 = vst [vmem:[%s476 + $0xf8] sm:%s468] %v601
                  %v603 = vld [vmem:[%s475 + $0x1bc] sm:%s468]
                  %604 = vst [vmem:[%s476 + $0xfc] sm:%s468] %v603
                $region91: #{octsqueeze_forward.1} parent=78 // loop_footer
                  %s474 = sadd.s32 1, %s470
                $region92: #{octsqueeze_forward.1} parent=78 // loop_footer_branch
                  %469 = sbr.rel target = $region88
                $region93: #{octsqueeze_forward.1} parent=78 // loop_exit
                  _
              $region79: #{octsqueeze_forward.1} parent=63 // pred_fallthru
                _
            $region64: #{octsqueeze_forward.1} parent=59 // pred_fallthru
              _
            // Predicated region
            $region65: #{octsqueeze_forward.1} parent=59 // pred_check
              _
            $region66: #{octsqueeze_forward.1} parent=59 // pred_check_branch
              %318 = sbr.rel (0) target = $region68
            $region67: #{octsqueeze_forward.1} parent=59 // pred_region
              %s320 = ssub.s32 16, 1
              loop: start=0, step=1, limit=1
              $region69: #{octsqueeze_forward.1} parent=67 // loop_pre_header
                _
              $region70: #{octsqueeze_forward.1} parent=67 // loop_header
                %s322 = sphi 0, %s326
                %p323 = scmp.ge.s32.totalorder %s322, 1
                %s327 = sphi %s312, %s312
                %s328 = sphi %s309, %s309
              $region71: #{octsqueeze_forward.1} parent=67 // loop_header_branch
                %325 = sbr.rel (%p323) target = $region75
              $region72: #{octsqueeze_forward.1} parent=67 // loop_body
                %v329 = vld [vmem:[%s327] sm:%s320]
                %330 = vst [vmem:[%s328] sm:%s320] %v329
                %v331 = vld [vmem:[%s327 + $0x4] sm:%s320]
                %332 = vst [vmem:[%s328 + $0x4] sm:%s320] %v331
                %v333 = vld [vmem:[%s327 + $0x8] sm:%s320]
                %334 = vst [vmem:[%s328 + $0x8] sm:%s320] %v333
                %v335 = vld [vmem:[%s327 + $0xc] sm:%s320]
                %336 = vst [vmem:[%s328 + $0xc] sm:%s320] %v335
                %v337 = vld [vmem:[%s327 + $0x10] sm:%s320]
                %338 = vst [vmem:[%s328 + $0x10] sm:%s320] %v337
                %v339 = vld [vmem:[%s327 + $0x14] sm:%s320]
                %340 = vst [vmem:[%s328 + $0x14] sm:%s320] %v339
                %v341 = vld [vmem:[%s327 + $0x18] sm:%s320]
                %342 = vst [vmem:[%s328 + $0x18] sm:%s320] %v341
                %v343 = vld [vmem:[%s327 + $0x1c] sm:%s320]
                %344 = vst [vmem:[%s328 + $0x1c] sm:%s320] %v343
                %v345 = vld [vmem:[%s327 + $0x20] sm:%s320]
                %346 = vst [vmem:[%s328 + $0x20] sm:%s320] %v345
                %v347 = vld [vmem:[%s327 + $0x24] sm:%s320]
                %348 = vst [vmem:[%s328 + $0x24] sm:%s320] %v347
                %v349 = vld [vmem:[%s327 + $0x28] sm:%s320]
                %350 = vst [vmem:[%s328 + $0x28] sm:%s320] %v349
                %v351 = vld [vmem:[%s327 + $0x2c] sm:%s320]
                %352 = vst [vmem:[%s328 + $0x2c] sm:%s320] %v351
                %v353 = vld [vmem:[%s327 + $0x30] sm:%s320]
                %354 = vst [vmem:[%s328 + $0x30] sm:%s320] %v353
                %v355 = vld [vmem:[%s327 + $0x34] sm:%s320]
                %356 = vst [vmem:[%s328 + $0x34] sm:%s320] %v355
                %v357 = vld [vmem:[%s327 + $0x38] sm:%s320]
                %358 = vst [vmem:[%s328 + $0x38] sm:%s320] %v357
                %v359 = vld [vmem:[%s327 + $0x3c] sm:%s320]
                %360 = vst [vmem:[%s328 + $0x3c] sm:%s320] %v359
                %v361 = vld [vmem:[%s327 + $0x80] sm:%s320]
                %362 = vst [vmem:[%s328 + $0x40] sm:%s320] %v361
                %v363 = vld [vmem:[%s327 + $0x84] sm:%s320]
                %364 = vst [vmem:[%s328 + $0x44] sm:%s320] %v363
                %v365 = vld [vmem:[%s327 + $0x88] sm:%s320]
                %366 = vst [vmem:[%s328 + $0x48] sm:%s320] %v365
                %v367 = vld [vmem:[%s327 + $0x8c] sm:%s320]
                %368 = vst [vmem:[%s328 + $0x4c] sm:%s320] %v367
                %v369 = vld [vmem:[%s327 + $0x90] sm:%s320]
                %370 = vst [vmem:[%s328 + $0x50] sm:%s320] %v369
                %v371 = vld [vmem:[%s327 + $0x94] sm:%s320]
                %372 = vst [vmem:[%s328 + $0x54] sm:%s320] %v371
                %v373 = vld [vmem:[%s327 + $0x98] sm:%s320]
                %374 = vst [vmem:[%s328 + $0x58] sm:%s320] %v373
                %v375 = vld [vmem:[%s327 + $0x9c] sm:%s320]
                %376 = vst [vmem:[%s328 + $0x5c] sm:%s320] %v375
                %v377 = vld [vmem:[%s327 + $0xa0] sm:%s320]
                %378 = vst [vmem:[%s328 + $0x60] sm:%s320] %v377
                %v379 = vld [vmem:[%s327 + $0xa4] sm:%s320]
                %380 = vst [vmem:[%s328 + $0x64] sm:%s320] %v379
                %v381 = vld [vmem:[%s327 + $0xa8] sm:%s320]
                %382 = vst [vmem:[%s328 + $0x68] sm:%s320] %v381
                %v383 = vld [vmem:[%s327 + $0xac] sm:%s320]
                %384 = vst [vmem:[%s328 + $0x6c] sm:%s320] %v383
                %v385 = vld [vmem:[%s327 + $0xb0] sm:%s320]
                %386 = vst [vmem:[%s328 + $0x70] sm:%s320] %v385
                %v387 = vld [vmem:[%s327 + $0xb4] sm:%s320]
                %388 = vst [vmem:[%s328 + $0x74] sm:%s320] %v387
                %v389 = vld [vmem:[%s327 + $0xb8] sm:%s320]
                %390 = vst [vmem:[%s328 + $0x78] sm:%s320] %v389
                %v391 = vld [vmem:[%s327 + $0xbc] sm:%s320]
                %392 = vst [vmem:[%s328 + $0x7c] sm:%s320] %v391
                %v393 = vld [vmem:[%s327 + $0x100] sm:%s320]
                %394 = vst [vmem:[%s328 + $0x80] sm:%s320] %v393
                %v395 = vld [vmem:[%s327 + $0x104] sm:%s320]
                %396 = vst [vmem:[%s328 + $0x84] sm:%s320] %v395
                %v397 = vld [vmem:[%s327 + $0x108] sm:%s320]
                %398 = vst [vmem:[%s328 + $0x88] sm:%s320] %v397
                %v399 = vld [vmem:[%s327 + $0x10c] sm:%s320]
                %400 = vst [vmem:[%s328 + $0x8c] sm:%s320] %v399
                %v401 = vld [vmem:[%s327 + $0x110] sm:%s320]
                %402 = vst [vmem:[%s328 + $0x90] sm:%s320] %v401
                %v403 = vld [vmem:[%s327 + $0x114] sm:%s320]
                %404 = vst [vmem:[%s328 + $0x94] sm:%s320] %v403
                %v405 = vld [vmem:[%s327 + $0x118] sm:%s320]
                %406 = vst [vmem:[%s328 + $0x98] sm:%s320] %v405
                %v407 = vld [vmem:[%s327 + $0x11c] sm:%s320]
                %408 = vst [vmem:[%s328 + $0x9c] sm:%s320] %v407
                %v409 = vld [vmem:[%s327 + $0x120] sm:%s320]
                %410 = vst [vmem:[%s328 + $0xa0] sm:%s320] %v409
                %v411 = vld [vmem:[%s327 + $0x124] sm:%s320]
                %412 = vst [vmem:[%s328 + $0xa4] sm:%s320] %v411
                %v413 = vld [vmem:[%s327 + $0x128] sm:%s320]
                %414 = vst [vmem:[%s328 + $0xa8] sm:%s320] %v413
                %v415 = vld [vmem:[%s327 + $0x12c] sm:%s320]
                %416 = vst [vmem:[%s328 + $0xac] sm:%s320] %v415
                %v417 = vld [vmem:[%s327 + $0x130] sm:%s320]
                %418 = vst [vmem:[%s328 + $0xb0] sm:%s320] %v417
                %v419 = vld [vmem:[%s327 + $0x134] sm:%s320]
                %420 = vst [vmem:[%s328 + $0xb4] sm:%s320] %v419
                %v421 = vld [vmem:[%s327 + $0x138] sm:%s320]
                %422 = vst [vmem:[%s328 + $0xb8] sm:%s320] %v421
                %v423 = vld [vmem:[%s327 + $0x13c] sm:%s320]
                %424 = vst [vmem:[%s328 + $0xbc] sm:%s320] %v423
                %v425 = vld [vmem:[%s327 + $0x180] sm:%s320]
                %426 = vst [vmem:[%s328 + $0xc0] sm:%s320] %v425
                %v427 = vld [vmem:[%s327 + $0x184] sm:%s320]
                %428 = vst [vmem:[%s328 + $0xc4] sm:%s320] %v427
                %v429 = vld [vmem:[%s327 + $0x188] sm:%s320]
                %430 = vst [vmem:[%s328 + $0xc8] sm:%s320] %v429
                %v431 = vld [vmem:[%s327 + $0x18c] sm:%s320]
                %432 = vst [vmem:[%s328 + $0xcc] sm:%s320] %v431
                %v433 = vld [vmem:[%s327 + $0x190] sm:%s320]
                %434 = vst [vmem:[%s328 + $0xd0] sm:%s320] %v433
                %v435 = vld [vmem:[%s327 + $0x194] sm:%s320]
                %436 = vst [vmem:[%s328 + $0xd4] sm:%s320] %v435
                %v437 = vld [vmem:[%s327 + $0x198] sm:%s320]
                %438 = vst [vmem:[%s328 + $0xd8] sm:%s320] %v437
                %v439 = vld [vmem:[%s327 + $0x19c] sm:%s320]
                %440 = vst [vmem:[%s328 + $0xdc] sm:%s320] %v439
                %v441 = vld [vmem:[%s327 + $0x1a0] sm:%s320]
                %442 = vst [vmem:[%s328 + $0xe0] sm:%s320] %v441
                %v443 = vld [vmem:[%s327 + $0x1a4] sm:%s320]
                %444 = vst [vmem:[%s328 + $0xe4] sm:%s320] %v443
                %v445 = vld [vmem:[%s327 + $0x1a8] sm:%s320]
                %446 = vst [vmem:[%s328 + $0xe8] sm:%s320] %v445
                %v447 = vld [vmem:[%s327 + $0x1ac] sm:%s320]
                %448 = vst [vmem:[%s328 + $0xec] sm:%s320] %v447
                %v449 = vld [vmem:[%s327 + $0x1b0] sm:%s320]
                %450 = vst [vmem:[%s328 + $0xf0] sm:%s320] %v449
                %v451 = vld [vmem:[%s327 + $0x1b4] sm:%s320]
                %452 = vst [vmem:[%s328 + $0xf4] sm:%s320] %v451
                %v453 = vld [vmem:[%s327 + $0x1b8] sm:%s320]
                %454 = vst [vmem:[%s328 + $0xf8] sm:%s320] %v453
                %v455 = vld [vmem:[%s327 + $0x1bc] sm:%s320]
                %456 = vst [vmem:[%s328 + $0xfc] sm:%s320] %v455
              $region73: #{octsqueeze_forward.1} parent=67 // loop_footer
                %s326 = sadd.s32 1, %s322
              $region74: #{octsqueeze_forward.1} parent=67 // loop_footer_branch
                %321 = sbr.rel target = $region70
              $region75: #{octsqueeze_forward.1} parent=67 // loop_exit
                _
            $region68: #{octsqueeze_forward.1} parent=59 // pred_fallthru
              _
          $region60: #{octsqueeze_forward.1} parent=55 // pred_fallthru
            _
          %605 = vnop
        $region56: #{octsqueeze_forward.1} parent=51 // pred_fallthru
          _
      $region52: #{octsqueeze_forward.1} parent=5 // pred_fallthru
        _
      %p606 = scmp.le.s32.totalorder 1, %s16
      %p607 = scmp.lt.s32.totalorder %s16, 3
      %p608 = pnand %p606, %p607
      %p609 = pneg %p608
      // Predicated region
      $region94: #{octsqueeze_forward.1} parent=5 // pred_check
        _
      $region95: #{octsqueeze_forward.1} parent=5 // pred_check_branch
        %611 = sbr.rel (%p608) target = $region97
      $region96: #{octsqueeze_forward.1} parent=5 // pred_region
        %s612 = ssub.s32 %s16, 1
        %s613 = sand.u32 %s29, 1
        %s614 = sand.u32 %s29, 1
        %s615 = smul.addr %s614, 256
        %s616 = scalar_lea.vmem [#allocation2], %s615
        // Predicated region
        $region98: #{octsqueeze_forward.1} parent=96 // pred_check
          %p617 = pneg %p42
        $region99: #{octsqueeze_forward.1} parent=96 // pred_check_branch
          %619 = sbr.rel (%p617) target = $region101
        $region100: #{octsqueeze_forward.1} parent=96 // pred_region
          _
        $region101: #{octsqueeze_forward.1} parent=96 // pred_fallthru
          _
        %s620 = sand.u32 %s29, 1
        %s621 = sand.u32 %s29, 1
        %s622 = smul.addr %s621, 256
        %s623 = scalar_lea.vmem [#allocation2], %s622
        %p624 = pneg %p42
        %p625 = pneg %p39
        %p626 = pneg %p63
        %p627 = pneg %p60
        %p628 = pneg %p84
        %p629 = pneg %p81
        %p630 = pneg %p105
        %p631 = pneg %p102
        %p632 = pneg %p126
        %p633 = pneg %p123
        %p634 = pneg %p147
        %p635 = pneg %p144
        %p636 = pneg %p168
        %p637 = pneg %p165
        %p638 = pneg %p189
        %p639 = pneg %p186
        %p640 = pneg %p210
        %p641 = pneg %p207
        %p642 = pneg %p231
        %p643 = pneg %p228
        %p644 = pneg %p257
        %p645 = pneg %p254
        %s646 = smul.u32 16, %s21
        %p647 = scmp.lt.s32.totalorder %s646, 31
        %s648 = scalar_select %p647, %s646, 31
        %s649 = smul.addr %s648, 2
        %s650 = smul.addr %s649, 8
        %s651 = scalar_lea.vmem %s10, %s650
        %s652 = smul.u32 16, %s21
        %s653 = smul.u32 16, %s21
        %p654 = scmp.lt.s32.totalorder %s653, 31
        %s655 = scalar_select %p654, %s653, 31
        %s656 = smul.addr %s655, 2
        %s657 = smul.addr %s656, 8
        %s658 = scalar_lea.vmem %s10, %s657
        %s659 = smul.u32 16, %s21
        %v661 = vld [vmem:[%s616] sm:$0xf]
        %v662 = vld [vmem:[%s616 + $0x4] sm:$0xf]
        %v663 = vld [vmem:[%s616 + $0x8] sm:$0xf]
        %v664 = vld [vmem:[%s616 + $0xc] sm:$0xf]
        %v665 = vld [vmem:[%s616 + $0x10] sm:$0xf]
        %v666 = vld [vmem:[%s616 + $0x14] sm:$0xf]
        %v667 = vld [vmem:[%s616 + $0x18] sm:$0xf]
        %v668 = vld [vmem:[%s616 + $0x1c] sm:$0xf]
        %v669 = vld [vmem:[%s616 + $0x20] sm:$0xf]
        %v670 = vld [vmem:[%s616 + $0x24] sm:$0xf]
        %v671 = vld [vmem:[%s616 + $0x28] sm:$0xf]
        %v672 = vld [vmem:[%s616 + $0x2c] sm:$0xf]
        %v673 = vld [vmem:[%s616 + $0x30] sm:$0xf]
        %v674 = vld [vmem:[%s616 + $0x34] sm:$0xf]
        %v675 = vld [vmem:[%s616 + $0x38] sm:$0xf]
        %v676 = vld [vmem:[%s616 + $0x3c] sm:$0xf]
        %v677 = vld [vmem:[%s616 + $0x40] sm:$0xf]
        %v678 = vld [vmem:[%s616 + $0x44] sm:$0xf]
        %v679 = vld [vmem:[%s616 + $0x48] sm:$0xf]
        %v680 = vld [vmem:[%s616 + $0x4c] sm:$0xf]
        %v681 = vld [vmem:[%s616 + $0x50] sm:$0xf]
        %v682 = vld [vmem:[%s616 + $0x54] sm:$0xf]
        %v683 = vld [vmem:[%s616 + $0x58] sm:$0xf]
        %v684 = vld [vmem:[%s616 + $0x5c] sm:$0xf]
        %v685 = vld [vmem:[%s616 + $0x60] sm:$0xf]
        %v686 = vld [vmem:[%s616 + $0x64] sm:$0xf]
        %v687 = vld [vmem:[%s616 + $0x68] sm:$0xf]
        %v688 = vld [vmem:[%s616 + $0x6c] sm:$0xf]
        %v689 = vld [vmem:[%s616 + $0x70] sm:$0xf]
        %v690 = vld [vmem:[%s616 + $0x74] sm:$0xf]
        %v691 = vld [vmem:[%s616 + $0x78] sm:$0xf]
        %v692 = vld [vmem:[%s616 + $0x7c] sm:$0xf]
        %v693 = vld [vmem:[%s616 + $0x80] sm:$0xf]
        %v694 = vld [vmem:[%s616 + $0x84] sm:$0xf]
        %v695 = vld [vmem:[%s616 + $0x88] sm:$0xf]
        %v696 = vld [vmem:[%s616 + $0x8c] sm:$0xf]
        %v697 = vld [vmem:[%s616 + $0x90] sm:$0xf]
        %v698 = vld [vmem:[%s616 + $0x94] sm:$0xf]
        %v699 = vld [vmem:[%s616 + $0x98] sm:$0xf]
        %v700 = vld [vmem:[%s616 + $0x9c] sm:$0xf]
        %v701 = vld [vmem:[%s616 + $0xa0] sm:$0xf]
        %v702 = vld [vmem:[%s616 + $0xa4] sm:$0xf]
        %v703 = vld [vmem:[%s616 + $0xa8] sm:$0xf]
        %v704 = vld [vmem:[%s616 + $0xac] sm:$0xf]
        %v705 = vld [vmem:[%s616 + $0xb0] sm:$0xf]
        %v706 = vld [vmem:[%s616 + $0xb4] sm:$0xf]
        %v707 = vld [vmem:[%s616 + $0xb8] sm:$0xf]
        %v708 = vld [vmem:[%s616 + $0xbc] sm:$0xf]
        %v709 = vld [vmem:[%s616 + $0xc0] sm:$0xf]
        %v710 = vld [vmem:[%s616 + $0xc4] sm:$0xf]
        %v711 = vld [vmem:[%s616 + $0xc8] sm:$0xf]
        %v712 = vld [vmem:[%s616 + $0xcc] sm:$0xf]
        %v713 = vld [vmem:[%s616 + $0xd0] sm:$0xf]
        %v714 = vld [vmem:[%s616 + $0xd4] sm:$0xf]
        %v715 = vld [vmem:[%s616 + $0xd8] sm:$0xf]
        %v716 = vld [vmem:[%s616 + $0xdc] sm:$0xf]
        %v717 = vld [vmem:[%s616 + $0xe0] sm:$0xf]
        %v718 = vld [vmem:[%s616 + $0xe4] sm:$0xf]
        %v719 = vld [vmem:[%s616 + $0xe8] sm:$0xf]
        %v720 = vld [vmem:[%s616 + $0xec] sm:$0xf]
        %v721 = vld [vmem:[%s616 + $0xf0] sm:$0xf]
        %v722 = vld [vmem:[%s616 + $0xf4] sm:$0xf]
        %v723 = vld [vmem:[%s616 + $0xf8] sm:$0xf]
        %v724 = vld [vmem:[%s616 + $0xfc] sm:$0xf]
        %v725 = vld [vmem:[%s8] sm:$0xff]
        %v726 = vld [vmem:[%s8 + $0x8] sm:$0x7]
        %v727 = vld [vmem:[%s9] sm:$0x3]
        %v728 = vld [vmem:[%s1] sm:$0xf]
        %v729 = vlaneseq
        %v730 = vshrl.u32 %v729, 7
        %v731 = vsub.s32 0, %v730
        %v732 = vrot.slane %v725, %v731
        %v797 = vunpack.c.l.b16 %v661
        %v798 = vunpack.c.l.b16 %v662
        %v799 = vunpack.c.l.b16 %v663
        %v800 = vunpack.c.l.b16 %v664
        %v801 = vunpack.c.l.b16 %v665
        %v802 = vunpack.c.l.b16 %v666
        %v803 = vunpack.c.l.b16 %v667
        %v804 = vunpack.c.l.b16 %v668
        %v805 = vunpack.c.l.b16 %v669
        %v806 = vunpack.c.l.b16 %v670
        %v807 = vunpack.c.l.b16 %v671
        %v808 = vunpack.c.l.b16 %v672
        %v809 = vunpack.c.l.b16 %v673
        %v810 = vunpack.c.l.b16 %v674
        %v811 = vunpack.c.l.b16 %v675
        %v812 = vunpack.c.l.b16 %v676
        %v813 = vunpack.c.l.b16 %v677
        %v814 = vunpack.c.l.b16 %v678
        %v815 = vunpack.c.l.b16 %v679
        %v816 = vunpack.c.l.b16 %v680
        %v817 = vunpack.c.l.b16 %v681
        %v818 = vunpack.c.l.b16 %v682
        %v819 = vunpack.c.l.b16 %v683
        %v820 = vunpack.c.l.b16 %v684
        %v821 = vunpack.c.l.b16 %v685
        %v822 = vunpack.c.l.b16 %v686
        %v823 = vunpack.c.l.b16 %v687
        %v824 = vunpack.c.l.b16 %v688
        %v825 = vunpack.c.l.b16 %v689
        %v826 = vunpack.c.l.b16 %v690
        %v827 = vunpack.c.l.b16 %v691
        %v828 = vunpack.c.l.b16 %v692
        %v829 = vunpack.c.l.b16 %v693
        %v830 = vunpack.c.l.b16 %v694
        %v831 = vunpack.c.l.b16 %v695
        %v832 = vunpack.c.l.b16 %v696
        %v833 = vunpack.c.l.b16 %v697
        %v834 = vunpack.c.l.b16 %v698
        %v835 = vunpack.c.l.b16 %v699
        %v836 = vunpack.c.l.b16 %v700
        %v837 = vunpack.c.l.b16 %v701
        %v838 = vunpack.c.l.b16 %v702
        %v839 = vunpack.c.l.b16 %v703
        %v840 = vunpack.c.l.b16 %v704
        %v841 = vunpack.c.l.b16 %v705
        %v842 = vunpack.c.l.b16 %v706
        %v843 = vunpack.c.l.b16 %v707
        %v844 = vunpack.c.l.b16 %v708
        %v845 = vunpack.c.l.b16 %v709
        %v846 = vunpack.c.l.b16 %v710
        %v847 = vunpack.c.l.b16 %v711
        %v848 = vunpack.c.l.b16 %v712
        %v849 = vunpack.c.l.b16 %v713
        %v850 = vunpack.c.l.b16 %v714
        %v851 = vunpack.c.l.b16 %v715
        %v852 = vunpack.c.l.b16 %v716
        %v853 = vunpack.c.l.b16 %v717
        %v854 = vunpack.c.l.b16 %v718
        %v855 = vunpack.c.l.b16 %v719
        %v856 = vunpack.c.l.b16 %v720
        %v857 = vunpack.c.l.b16 %v721
        %v858 = vunpack.c.l.b16 %v722
        %v859 = vunpack.c.l.b16 %v723
        %v860 = vunpack.c.l.b16 %v724
        %v861 = vpack.c.b16 %v798, %v797
        %v862 = vpack.c.b16 %v800, %v799
        %v863 = vpack.c.b16 %v802, %v801
        %v864 = vpack.c.b16 %v804, %v803
        %v865 = vpack.c.b16 %v806, %v805
        %v866 = vpack.c.b16 %v808, %v807
        %v867 = vpack.c.b16 %v810, %v809
        %v868 = vpack.c.b16 %v812, %v811
        %v869 = vpack.c.b16 %v814, %v813
        %v870 = vpack.c.b16 %v816, %v815
        %v871 = vpack.c.b16 %v818, %v817
        %v872 = vpack.c.b16 %v820, %v819
        %v873 = vpack.c.b16 %v822, %v821
        %v874 = vpack.c.b16 %v824, %v823
        %v875 = vpack.c.b16 %v826, %v825
        %v876 = vpack.c.b16 %v828, %v827
        %v877 = vpack.c.b16 %v830, %v829
        %v878 = vpack.c.b16 %v832, %v831
        %v879 = vpack.c.b16 %v834, %v833
        %v880 = vpack.c.b16 %v836, %v835
        %v881 = vpack.c.b16 %v838, %v837
        %v882 = vpack.c.b16 %v840, %v839
        %v883 = vpack.c.b16 %v842, %v841
        %v884 = vpack.c.b16 %v844, %v843
        %v885 = vpack.c.b16 %v846, %v845
        %v886 = vpack.c.b16 %v848, %v847
        %v887 = vpack.c.b16 %v850, %v849
        %v888 = vpack.c.b16 %v852, %v851
        %v889 = vpack.c.b16 %v854, %v853
        %v890 = vpack.c.b16 %v856, %v855
        %v891 = vpack.c.b16 %v858, %v857
        %v892 = vpack.c.b16 %v860, %v859
        %vm893 = vcmask 64512
        %v895 = vsel %vm893, %v861, 0
        %v898 = vsel %vm893, %v862, 0
        %v901 = vsel %vm893, %v863, 0
        %v904 = vsel %vm893, %v864, 0
        %v907 = vsel %vm893, %v865, 0
        %v910 = vsel %vm893, %v866, 0
        %v913 = vsel %vm893, %v867, 0
        %v916 = vsel %vm893, %v868, 0
        %v919 = vsel %vm893, %v869, 0
        %v922 = vsel %vm893, %v870, 0
        %v925 = vsel %vm893, %v871, 0
        %v928 = vsel %vm893, %v872, 0
        %v931 = vsel %vm893, %v873, 0
        %v934 = vsel %vm893, %v874, 0
        %v937 = vsel %vm893, %v875, 0
        %v940 = vsel %vm893, %v876, 0
        %v943 = vsel %vm893, %v877, 0
        %v946 = vsel %vm893, %v878, 0
        %v949 = vsel %vm893, %v879, 0
        %v952 = vsel %vm893, %v880, 0
        %v955 = vsel %vm893, %v881, 0
        %v958 = vsel %vm893, %v882, 0
        %v961 = vsel %vm893, %v883, 0
        %v964 = vsel %vm893, %v884, 0
        %v967 = vsel %vm893, %v885, 0
        %v970 = vsel %vm893, %v886, 0
        %v973 = vsel %vm893, %v887, 0
        %v976 = vsel %vm893, %v888, 0
        %v979 = vsel %vm893, %v889, 0
        %v982 = vsel %vm893, %v890, 0
        %v985 = vsel %vm893, %v891, 0
        %v988 = vsel %vm893, %v892, 0
        %vm990 = vcmask 1043456
        %v992 = vsel %vm990, %v728, 0
        %994 = vmatprep.subr.bf16.mxu0 0
        %995 = vmatpush1.bf16.msra.mxu0 0
        %996 = vmatprep.subr.bf16.mxu0 0
        %997 = vmatpush1.bf16.msra.mxu0 0
        %998 = vmatprep.subr.bf16.mxu0 0
        %999 = vmatpush1.bf16.msra.mxu0 0
        %1000 = vmatprep.subr.bf16.mxu0 0
        %1001 = vmatpush1.bf16.msra.mxu0 0
        %1002 = vmatprep.subr.bf16.mxu0 0
        %1003 = vmatpush1.bf16.msra.mxu0 0
        %1004 = vmatprep.subr.bf16.mxu0 0
        %1005 = vmatpush1.bf16.msra.mxu0 0
        %1006 = vmatprep.subr.bf16.mxu0 0
        %1007 = vmatpush1.bf16.msra.mxu0 0
        %1008 = vmatprep.subr.bf16.mxu0 0
        %1009 = vmatpush1.bf16.msra.mxu0 %v992
        %1010 = vmatprep.subr.bf16.mxu0 0
        %1011 = vmatpush2.bf16.msra.mxu0 0
        %1012 = vmatprep.subr.bf16.mxu0 0
        %1013 = vmatpush2.bf16.msra.mxu0 0
        %1014 = vmatprep.subr.bf16.mxu0 0
        %1015 = vmatpush2.bf16.msra.mxu0 0
        %1016 = vmatprep.subr.bf16.mxu0 0
        %1017 = vmatpush2.bf16.msra.mxu0 0
        %1018 = vmatprep.subr.bf16.mxu0 0
        %1019 = vmatpush2.bf16.msra.mxu0 0
        %1020 = vmatprep.subr.bf16.mxu0 0
        %1021 = vmatpush2.bf16.msra.mxu0 0
        %1022 = vmatprep.subr.bf16.mxu0 0
        %1023 = vmatpush2.bf16.msra.mxu0 0
        %1024 = vmatprep.subr.bf16.mxu0 0
        %1025 = vmatpush2.bf16.msra.mxu0 0
        %1026 = vmatprep.mubr.bf16.mxu0 0
        %1027 = vmatmul.mubr.bf16.gmra.mxu0 %v895
        %v1028 = vpop.f32.mrf.mxu0
        %v1029 = vadd.f32 %v732, %v1028
        %v1030 = vpop.f32.mrf.mxu0
        %v1031 = vpop.f32.mrf.mxu0
        %v1032 = vadd.f32 %v732, %v1031
        %v1033 = vpop.f32.mrf.mxu0
        %1034 = vmatprep.mubr.bf16.mxu0 0
        %1035 = vmatmul.mubr.bf16.gmra.mxu0 %v898
        %v1036 = vpop.f32.mrf.mxu0
        %v1037 = vadd.f32 %v732, %v1036
        %v1038 = vpop.f32.mrf.mxu0
        %v1039 = vpop.f32.mrf.mxu0
        %v1040 = vadd.f32 %v732, %v1039
        %v1041 = vpop.f32.mrf.mxu0
        %1042 = vmatprep.mubr.bf16.mxu0 0
        %1043 = vmatmul.mubr.bf16.gmra.mxu0 %v901
        %v1044 = vpop.f32.mrf.mxu0
        %v1045 = vadd.f32 %v732, %v1044
        %v1046 = vpop.f32.mrf.mxu0
        %v1047 = vpop.f32.mrf.mxu0
        %v1048 = vadd.f32 %v732, %v1047
        %v1049 = vpop.f32.mrf.mxu0
        %1050 = vmatprep.mubr.bf16.mxu0 0
        %1051 = vmatmul.mubr.bf16.gmra.mxu0 %v904
        %v1052 = vpop.f32.mrf.mxu0
        %v1053 = vadd.f32 %v732, %v1052
        %v1054 = vpop.f32.mrf.mxu0
        %v1055 = vpop.f32.mrf.mxu0
        %v1056 = vadd.f32 %v732, %v1055
        %v1057 = vpop.f32.mrf.mxu0
        %1058 = vmatprep.mubr.bf16.mxu0 0
        %1059 = vmatmul.mubr.bf16.gmra.mxu0 %v907
        %v1060 = vpop.f32.mrf.mxu0
        %v1061 = vadd.f32 %v732, %v1060
        %v1062 = vpop.f32.mrf.mxu0
        %v1063 = vpop.f32.mrf.mxu0
        %v1064 = vadd.f32 %v732, %v1063
        %v1065 = vpop.f32.mrf.mxu0
        %1066 = vmatprep.mubr.bf16.mxu0 0
        %1067 = vmatmul.mubr.bf16.gmra.mxu0 %v910
        %v1068 = vpop.f32.mrf.mxu0
        %v1069 = vadd.f32 %v732, %v1068
        %v1070 = vpop.f32.mrf.mxu0
        %v1071 = vpop.f32.mrf.mxu0
        %v1072 = vadd.f32 %v732, %v1071
        %v1073 = vpop.f32.mrf.mxu0
        %1074 = vmatprep.mubr.bf16.mxu0 0
        %1075 = vmatmul.mubr.bf16.gmra.mxu0 %v913
        %v1076 = vpop.f32.mrf.mxu0
        %v1077 = vadd.f32 %v732, %v1076
        %v1078 = vpop.f32.mrf.mxu0
        %v1079 = vpop.f32.mrf.mxu0
        %v1080 = vadd.f32 %v732, %v1079
        %v1081 = vpop.f32.mrf.mxu0
        %1082 = vmatprep.mubr.bf16.mxu0 0
        %1083 = vmatmul.mubr.bf16.gmra.mxu0 %v916
        %v1084 = vpop.f32.mrf.mxu0
        %v1085 = vadd.f32 %v732, %v1084
        %v1086 = vpop.f32.mrf.mxu0
        %v1087 = vpop.f32.mrf.mxu0
        %v1088 = vadd.f32 %v732, %v1087
        %v1089 = vpop.f32.mrf.mxu0
        %1090 = vmatprep.mubr.bf16.mxu0 0
        %1091 = vmatmul.mubr.bf16.gmra.mxu0 %v919
        %v1092 = vpop.f32.mrf.mxu0
        %v1093 = vadd.f32 %v732, %v1092
        %v1094 = vpop.f32.mrf.mxu0
        %v1095 = vpop.f32.mrf.mxu0
        %v1096 = vadd.f32 %v732, %v1095
        %v1097 = vpop.f32.mrf.mxu0
        %1098 = vmatprep.mubr.bf16.mxu0 0
        %1099 = vmatmul.mubr.bf16.gmra.mxu0 %v922
        %v1100 = vpop.f32.mrf.mxu0
        %v1101 = vadd.f32 %v732, %v1100
        %v1102 = vpop.f32.mrf.mxu0
        %v1103 = vpop.f32.mrf.mxu0
        %v1104 = vadd.f32 %v732, %v1103
        %v1105 = vpop.f32.mrf.mxu0
        %1106 = vmatprep.mubr.bf16.mxu0 0
        %1107 = vmatmul.mubr.bf16.gmra.mxu0 %v925
        %v1108 = vpop.f32.mrf.mxu0
        %v1109 = vadd.f32 %v732, %v1108
        %v1110 = vpop.f32.mrf.mxu0
        %v1111 = vpop.f32.mrf.mxu0
        %v1112 = vadd.f32 %v732, %v1111
        %v1113 = vpop.f32.mrf.mxu0
        %1114 = vmatprep.mubr.bf16.mxu0 0
        %1115 = vmatmul.mubr.bf16.gmra.mxu0 %v928
        %v1116 = vpop.f32.mrf.mxu0
        %v1117 = vadd.f32 %v732, %v1116
        %v1118 = vpop.f32.mrf.mxu0
        %v1119 = vpop.f32.mrf.mxu0
        %v1120 = vadd.f32 %v732, %v1119
        %v1121 = vpop.f32.mrf.mxu0
        %1122 = vmatprep.mubr.bf16.mxu0 0
        %1123 = vmatmul.mubr.bf16.gmra.mxu0 %v931
        %v1124 = vpop.f32.mrf.mxu0
        %v1125 = vadd.f32 %v732, %v1124
        %v1126 = vpop.f32.mrf.mxu0
        %v1127 = vpop.f32.mrf.mxu0
        %v1128 = vadd.f32 %v732, %v1127
        %v1129 = vpop.f32.mrf.mxu0
        %1130 = vmatprep.mubr.bf16.mxu0 0
        %1131 = vmatmul.mubr.bf16.gmra.mxu0 %v934
        %v1132 = vpop.f32.mrf.mxu0
        %v1133 = vadd.f32 %v732, %v1132
        %v1134 = vpop.f32.mrf.mxu0
        %v1135 = vpop.f32.mrf.mxu0
        %v1136 = vadd.f32 %v732, %v1135
        %v1137 = vpop.f32.mrf.mxu0
        %1138 = vmatprep.mubr.bf16.mxu0 0
        %1139 = vmatmul.mubr.bf16.gmra.mxu0 %v937
        %v1140 = vpop.f32.mrf.mxu0
        %v1141 = vadd.f32 %v732, %v1140
        %v1142 = vpop.f32.mrf.mxu0
        %v1143 = vpop.f32.mrf.mxu0
        %v1144 = vadd.f32 %v732, %v1143
        %v1145 = vpop.f32.mrf.mxu0
        %1146 = vmatprep.mubr.bf16.mxu0 0
        %1147 = vmatmul.mubr.bf16.gmra.mxu0 %v940
        %v1148 = vpop.f32.mrf.mxu0
        %v1149 = vadd.f32 %v732, %v1148
        %v1150 = vpop.f32.mrf.mxu0
        %v1151 = vpop.f32.mrf.mxu0
        %v1152 = vadd.f32 %v732, %v1151
        %v1153 = vpop.f32.mrf.mxu0
        %1154 = vmatprep.mubr.bf16.mxu0 0
        %1155 = vmatmul.mubr.bf16.gmra.mxu0 %v943
        %v1156 = vpop.f32.mrf.mxu0
        %v1157 = vadd.f32 %v732, %v1156
        %v1158 = vpop.f32.mrf.mxu0
        %v1159 = vpop.f32.mrf.mxu0
        %v1160 = vadd.f32 %v732, %v1159
        %v1161 = vpop.f32.mrf.mxu0
        %1162 = vmatprep.mubr.bf16.mxu0 0
        %1163 = vmatmul.mubr.bf16.gmra.mxu0 %v946
        %v1164 = vpop.f32.mrf.mxu0
        %v1165 = vadd.f32 %v732, %v1164
        %v1166 = vpop.f32.mrf.mxu0
        %v1167 = vpop.f32.mrf.mxu0
        %v1168 = vadd.f32 %v732, %v1167
        %v1169 = vpop.f32.mrf.mxu0
        %1170 = vmatprep.mubr.bf16.mxu0 0
        %1171 = vmatmul.mubr.bf16.gmra.mxu0 %v949
        %v1172 = vpop.f32.mrf.mxu0
        %v1173 = vadd.f32 %v732, %v1172
        %v1174 = vpop.f32.mrf.mxu0
        %v1175 = vpop.f32.mrf.mxu0
        %v1176 = vadd.f32 %v732, %v1175
        %v1177 = vpop.f32.mrf.mxu0
        %1178 = vmatprep.mubr.bf16.mxu0 0
        %1179 = vmatmul.mubr.bf16.gmra.mxu0 %v952
        %v1180 = vpop.f32.mrf.mxu0
        %v1181 = vadd.f32 %v732, %v1180
        %v1182 = vpop.f32.mrf.mxu0
        %v1183 = vpop.f32.mrf.mxu0
        %v1184 = vadd.f32 %v732, %v1183
        %v1185 = vpop.f32.mrf.mxu0
        %1186 = vmatprep.mubr.bf16.mxu0 0
        %1187 = vmatmul.mubr.bf16.gmra.mxu0 %v955
        %v1188 = vpop.f32.mrf.mxu0
        %v1189 = vadd.f32 %v732, %v1188
        %v1190 = vpop.f32.mrf.mxu0
        %v1191 = vpop.f32.mrf.mxu0
        %v1192 = vadd.f32 %v732, %v1191
        %v1193 = vpop.f32.mrf.mxu0
        %1194 = vmatprep.mubr.bf16.mxu0 0
        %1195 = vmatmul.mubr.bf16.gmra.mxu0 %v958
        %v1196 = vpop.f32.mrf.mxu0
        %v1197 = vadd.f32 %v732, %v1196
        %v1198 = vpop.f32.mrf.mxu0
        %v1199 = vpop.f32.mrf.mxu0
        %v1200 = vadd.f32 %v732, %v1199
        %v1201 = vpop.f32.mrf.mxu0
        %1202 = vmatprep.mubr.bf16.mxu0 0
        %1203 = vmatmul.mubr.bf16.gmra.mxu0 %v961
        %v1204 = vpop.f32.mrf.mxu0
        %v1205 = vadd.f32 %v732, %v1204
        %v1206 = vpop.f32.mrf.mxu0
        %v1207 = vpop.f32.mrf.mxu0
        %v1208 = vadd.f32 %v732, %v1207
        %v1209 = vpop.f32.mrf.mxu0
        %1210 = vmatprep.mubr.bf16.mxu0 0
        %1211 = vmatmul.mubr.bf16.gmra.mxu0 %v964
        %v1212 = vpop.f32.mrf.mxu0
        %v1213 = vadd.f32 %v732, %v1212
        %v1214 = vpop.f32.mrf.mxu0
        %v1215 = vpop.f32.mrf.mxu0
        %v1216 = vadd.f32 %v732, %v1215
        %v1217 = vpop.f32.mrf.mxu0
        %1218 = vmatprep.mubr.bf16.mxu0 0
        %1219 = vmatmul.mubr.bf16.gmra.mxu0 %v967
        %v1220 = vpop.f32.mrf.mxu0
        %v1221 = vadd.f32 %v732, %v1220
        %v1222 = vpop.f32.mrf.mxu0
        %v1223 = vpop.f32.mrf.mxu0
        %v1224 = vadd.f32 %v732, %v1223
        %v1225 = vpop.f32.mrf.mxu0
        %1226 = vmatprep.mubr.bf16.mxu0 0
        %1227 = vmatmul.mubr.bf16.gmra.mxu0 %v970
        %v1228 = vpop.f32.mrf.mxu0
        %v1229 = vadd.f32 %v732, %v1228
        %v1230 = vpop.f32.mrf.mxu0
        %v1231 = vpop.f32.mrf.mxu0
        %v1232 = vadd.f32 %v732, %v1231
        %v1233 = vpop.f32.mrf.mxu0
        %1234 = vmatprep.mubr.bf16.mxu0 0
        %1235 = vmatmul.mubr.bf16.gmra.mxu0 %v973
        %v1236 = vpop.f32.mrf.mxu0
        %v1237 = vadd.f32 %v732, %v1236
        %v1238 = vpop.f32.mrf.mxu0
        %v1239 = vpop.f32.mrf.mxu0
        %v1240 = vadd.f32 %v732, %v1239
        %v1241 = vpop.f32.mrf.mxu0
        %1242 = vmatprep.mubr.bf16.mxu0 0
        %1243 = vmatmul.mubr.bf16.gmra.mxu0 %v976
        %v1244 = vpop.f32.mrf.mxu0
        %v1245 = vadd.f32 %v732, %v1244
        %v1246 = vpop.f32.mrf.mxu0
        %v1247 = vpop.f32.mrf.mxu0
        %v1248 = vadd.f32 %v732, %v1247
        %v1249 = vpop.f32.mrf.mxu0
        %1250 = vmatprep.mubr.bf16.mxu0 0
        %1251 = vmatmul.mubr.bf16.gmra.mxu0 %v979
        %v1252 = vpop.f32.mrf.mxu0
        %v1253 = vadd.f32 %v732, %v1252
        %v1254 = vpop.f32.mrf.mxu0
        %v1255 = vpop.f32.mrf.mxu0
        %v1256 = vadd.f32 %v732, %v1255
        %v1257 = vpop.f32.mrf.mxu0
        %1258 = vmatprep.mubr.bf16.mxu0 0
        %1259 = vmatmul.mubr.bf16.gmra.mxu0 %v982
        %v1260 = vpop.f32.mrf.mxu0
        %v1261 = vadd.f32 %v732, %v1260
        %v1262 = vpop.f32.mrf.mxu0
        %v1263 = vpop.f32.mrf.mxu0
        %v1264 = vadd.f32 %v732, %v1263
        %v1265 = vpop.f32.mrf.mxu0
        %1266 = vmatprep.mubr.bf16.mxu0 0
        %1267 = vmatmul.mubr.bf16.gmra.mxu0 %v985
        %v1268 = vpop.f32.mrf.mxu0
        %v1269 = vadd.f32 %v732, %v1268
        %v1270 = vpop.f32.mrf.mxu0
        %v1271 = vpop.f32.mrf.mxu0
        %v1272 = vadd.f32 %v732, %v1271
        %v1273 = vpop.f32.mrf.mxu0
        %1274 = vmatprep.mubr.bf16.mxu0 0
        %1275 = vmatmul.mubr.bf16.gmra.mxu0 %v988
        %v1276 = vpop.f32.mrf.mxu0
        %v1277 = vadd.f32 %v732, %v1276
        %v1278 = vpop.f32.mrf.mxu0
        %v1279 = vpop.f32.mrf.mxu0
        %v1280 = vadd.f32 %v732, %v1279
        %v1281 = vpop.f32.mrf.mxu0
        %1282 = vdwg.mxu0
        %v1283 = vmax.f32 %v1029, 0.0
        %v1284 = vmax.f32 %v1032, 0.0
        %v1285 = vmax.f32 %v1037, 0.0
        %v1286 = vmax.f32 %v1040, 0.0
        %v1287 = vmax.f32 %v1045, 0.0
        %v1288 = vmax.f32 %v1048, 0.0
        %v1289 = vmax.f32 %v1053, 0.0
        %v1290 = vmax.f32 %v1056, 0.0
        %v1291 = vmax.f32 %v1061, 0.0
        %v1292 = vmax.f32 %v1064, 0.0
        %v1293 = vmax.f32 %v1069, 0.0
        %v1294 = vmax.f32 %v1072, 0.0
        %v1295 = vmax.f32 %v1077, 0.0
        %v1296 = vmax.f32 %v1080, 0.0
        %v1297 = vmax.f32 %v1085, 0.0
        %v1298 = vmax.f32 %v1088, 0.0
        %v1299 = vmax.f32 %v1093, 0.0
        %v1300 = vmax.f32 %v1096, 0.0
        %v1301 = vmax.f32 %v1101, 0.0
        %v1302 = vmax.f32 %v1104, 0.0
        %v1303 = vmax.f32 %v1109, 0.0
        %v1304 = vmax.f32 %v1112, 0.0
        %v1305 = vmax.f32 %v1117, 0.0
        %v1306 = vmax.f32 %v1120, 0.0
        %v1307 = vmax.f32 %v1125, 0.0
        %v1308 = vmax.f32 %v1128, 0.0
        %v1309 = vmax.f32 %v1133, 0.0
        %v1310 = vmax.f32 %v1136, 0.0
        %v1311 = vmax.f32 %v1141, 0.0
        %v1312 = vmax.f32 %v1144, 0.0
        %v1313 = vmax.f32 %v1149, 0.0
        %v1314 = vmax.f32 %v1152, 0.0
        %v1315 = vmax.f32 %v1157, 0.0
        %v1316 = vmax.f32 %v1160, 0.0
        %v1317 = vmax.f32 %v1165, 0.0
        %v1318 = vmax.f32 %v1168, 0.0
        %v1319 = vmax.f32 %v1173, 0.0
        %v1320 = vmax.f32 %v1176, 0.0
        %v1321 = vmax.f32 %v1181, 0.0
        %v1322 = vmax.f32 %v1184, 0.0
        %v1323 = vmax.f32 %v1189, 0.0
        %v1324 = vmax.f32 %v1192, 0.0
        %v1325 = vmax.f32 %v1197, 0.0
        %v1326 = vmax.f32 %v1200, 0.0
        %v1327 = vmax.f32 %v1205, 0.0
        %v1328 = vmax.f32 %v1208, 0.0
        %v1329 = vmax.f32 %v1213, 0.0
        %v1330 = vmax.f32 %v1216, 0.0
        %v1331 = vmax.f32 %v1221, 0.0
        %v1332 = vmax.f32 %v1224, 0.0
        %v1333 = vmax.f32 %v1229, 0.0
        %v1334 = vmax.f32 %v1232, 0.0
        %v1335 = vmax.f32 %v1237, 0.0
        %v1336 = vmax.f32 %v1240, 0.0
        %v1337 = vmax.f32 %v1245, 0.0
        %v1338 = vmax.f32 %v1248, 0.0
        %v1339 = vmax.f32 %v1253, 0.0
        %v1340 = vmax.f32 %v1256, 0.0
        %v1341 = vmax.f32 %v1261, 0.0
        %v1342 = vmax.f32 %v1264, 0.0
        %v1343 = vmax.f32 %v1269, 0.0
        %v1344 = vmax.f32 %v1272, 0.0
        %v1345 = vmax.f32 %v1277, 0.0
        %v1346 = vmax.f32 %v1280, 0.0
        %v1347 = vld [vmem:[%s2] sm:$0xf]
        %v1348 = vld [vmem:[%s2 + $0x4] sm:$0xf]
        %v1349 = vld [vmem:[%s2 + $0x8] sm:$0xf]
        %v1350 = vld [vmem:[%s2 + $0xc] sm:$0xf]
        %v1351 = vld [vmem:[%s2 + $0x10] sm:$0xf]
        %v1352 = vld [vmem:[%s2 + $0x14] sm:$0xf]
        %v1353 = vld [vmem:[%s2 + $0x18] sm:$0xf]
        %v1354 = vld [vmem:[%s2 + $0x1c] sm:$0xf]
        %v1355 = vld [vmem:[%s2 + $0x20] sm:$0xf]
        %v1356 = vld [vmem:[%s2 + $0x24] sm:$0xf]
        %v1357 = vld [vmem:[%s2 + $0x28] sm:$0xf]
        %v1358 = vld [vmem:[%s2 + $0x2c] sm:$0xf]
        %v1359 = vld [vmem:[%s2 + $0x30] sm:$0xf]
        %v1360 = vld [vmem:[%s2 + $0x34] sm:$0xf]
        %v1361 = vld [vmem:[%s2 + $0x38] sm:$0xf]
        %v1362 = vld [vmem:[%s2 + $0x3c] sm:$0xf]
        %v1363 = vld [vmem:[%s2 + $0x40] sm:$0xf]
        %v1364 = vld [vmem:[%s2 + $0x44] sm:$0xf]
        %v1365 = vld [vmem:[%s2 + $0x48] sm:$0xf]
        %v1366 = vld [vmem:[%s2 + $0x4c] sm:$0xf]
        %v1367 = vld [vmem:[%s2 + $0x50] sm:$0xf]
        %v1368 = vld [vmem:[%s2 + $0x54] sm:$0xf]
        %v1369 = vld [vmem:[%s2 + $0x58] sm:$0xf]
        %v1370 = vld [vmem:[%s2 + $0x5c] sm:$0xf]
        %v1371 = vld [vmem:[%s2 + $0x60] sm:$0xf]
        %v1372 = vld [vmem:[%s2 + $0x64] sm:$0xf]
        %v1373 = vld [vmem:[%s2 + $0x68] sm:$0xf]
        %v1374 = vld [vmem:[%s2 + $0x6c] sm:$0xf]
        %v1375 = vld [vmem:[%s2 + $0x70] sm:$0xf]
        %v1376 = vld [vmem:[%s2 + $0x74] sm:$0xf]
        %v1377 = vld [vmem:[%s2 + $0x78] sm:$0xf]
        %v1378 = vld [vmem:[%s2 + $0x7c] sm:$0xf]
        %v1379 = vld [vmem:[%s2 + $0x80] sm:$0xf]
        %v1380 = vld [vmem:[%s2 + $0x84] sm:$0xf]
        %v1381 = vld [vmem:[%s2 + $0x88] sm:$0xf]
        %v1382 = vld [vmem:[%s2 + $0x8c] sm:$0xf]
        %v1383 = vld [vmem:[%s2 + $0x90] sm:$0xf]
        %v1384 = vld [vmem:[%s2 + $0x94] sm:$0xf]
        %v1385 = vld [vmem:[%s2 + $0x98] sm:$0xf]
        %v1386 = vld [vmem:[%s2 + $0x9c] sm:$0xf]
        %v1387 = vld [vmem:[%s2 + $0xa0] sm:$0xf]
        %v1388 = vld [vmem:[%s2 + $0xa4] sm:$0xf]
        %v1389 = vld [vmem:[%s2 + $0xa8] sm:$0xf]
        %v1390 = vld [vmem:[%s2 + $0xac] sm:$0xf]
        %v1391 = vld [vmem:[%s2 + $0xb0] sm:$0xf]
        %v1392 = vld [vmem:[%s2 + $0xb4] sm:$0xf]
        %v1393 = vld [vmem:[%s2 + $0xb8] sm:$0xf]
        %v1394 = vld [vmem:[%s2 + $0xbc] sm:$0xf]
        %v1395 = vld [vmem:[%s2 + $0xc0] sm:$0xf]
        %v1396 = vld [vmem:[%s2 + $0xc4] sm:$0xf]
        %v1397 = vld [vmem:[%s2 + $0xc8] sm:$0xf]
        %v1398 = vld [vmem:[%s2 + $0xcc] sm:$0xf]
        %v1399 = vld [vmem:[%s2 + $0xd0] sm:$0xf]
        %v1400 = vld [vmem:[%s2 + $0xd4] sm:$0xf]
        %v1401 = vld [vmem:[%s2 + $0xd8] sm:$0xf]
        %v1402 = vld [vmem:[%s2 + $0xdc] sm:$0xf]
        %v1403 = vld [vmem:[%s2 + $0xe0] sm:$0xf]
        %v1404 = vld [vmem:[%s2 + $0xe4] sm:$0xf]
        %v1405 = vld [vmem:[%s2 + $0xe8] sm:$0xf]
        %v1406 = vld [vmem:[%s2 + $0xec] sm:$0xf]
        %v1407 = vld [vmem:[%s2 + $0xf0] sm:$0xf]
        %v1408 = vld [vmem:[%s2 + $0xf4] sm:$0xf]
        %v1409 = vld [vmem:[%s2 + $0xf8] sm:$0xf]
        %v1410 = vld [vmem:[%s2 + $0xfc] sm:$0xf]
        %v1411 = vpack.c.bf16 %v1284, %v1283
        %v1412 = vpack.c.bf16 %v1286, %v1285
        %v1413 = vpack.c.bf16 %v1288, %v1287
        %v1414 = vpack.c.bf16 %v1290, %v1289
        %v1415 = vpack.c.bf16 %v1292, %v1291
        %v1416 = vpack.c.bf16 %v1294, %v1293
        %v1417 = vpack.c.bf16 %v1296, %v1295
        %v1418 = vpack.c.bf16 %v1298, %v1297
        %v1419 = vpack.c.bf16 %v1300, %v1299
        %v1420 = vpack.c.bf16 %v1302, %v1301
        %v1421 = vpack.c.bf16 %v1304, %v1303
        %v1422 = vpack.c.bf16 %v1306, %v1305
        %v1423 = vpack.c.bf16 %v1308, %v1307
        %v1424 = vpack.c.bf16 %v1310, %v1309
        %v1425 = vpack.c.bf16 %v1312, %v1311
        %v1426 = vpack.c.bf16 %v1314, %v1313
        %v1427 = vpack.c.bf16 %v1316, %v1315
        %v1428 = vpack.c.bf16 %v1318, %v1317
        %v1429 = vpack.c.bf16 %v1320, %v1319
        %v1430 = vpack.c.bf16 %v1322, %v1321
        %v1431 = vpack.c.bf16 %v1324, %v1323
        %v1432 = vpack.c.bf16 %v1326, %v1325
        %v1433 = vpack.c.bf16 %v1328, %v1327
        %v1434 = vpack.c.bf16 %v1330, %v1329
        %v1435 = vpack.c.bf16 %v1332, %v1331
        %v1436 = vpack.c.bf16 %v1334, %v1333
        %v1437 = vpack.c.bf16 %v1336, %v1335
        %v1438 = vpack.c.bf16 %v1338, %v1337
        %v1439 = vpack.c.bf16 %v1340, %v1339
        %v1440 = vpack.c.bf16 %v1342, %v1341
        %v1441 = vpack.c.bf16 %v1344, %v1343
        %v1442 = vpack.c.bf16 %v1346, %v1345
        %v1443 = vlaneseq
        %v1444 = vshrl.u32 %v1443, 7
        %v1445 = vsub.s32 1, %v1444
        %v1446 = vrot.slane %v725, %v1445
        %v1463 = vunpack.c.l.b16 %v1347
        %v1464 = vunpack.c.l.b16 %v1348
        %v1465 = vunpack.c.l.b16 %v1349
        %v1466 = vunpack.c.l.b16 %v1350
        %v1467 = vunpack.c.l.b16 %v1351
        %v1468 = vunpack.c.l.b16 %v1352
        %v1469 = vunpack.c.l.b16 %v1353
        %v1470 = vunpack.c.l.b16 %v1354
        %v1471 = vunpack.c.l.b16 %v1355
        %v1472 = vunpack.c.l.b16 %v1356
        %v1473 = vunpack.c.l.b16 %v1357
        %v1474 = vunpack.c.l.b16 %v1358
        %v1475 = vunpack.c.l.b16 %v1359
        %v1476 = vunpack.c.l.b16 %v1360
        %v1477 = vunpack.c.l.b16 %v1361
        %v1478 = vunpack.c.l.b16 %v1362
        %v1479 = vpack.c.b16 %v1464, %v1463
        %v1480 = vpack.c.b16 %v1466, %v1465
        %v1481 = vpack.c.b16 %v1468, %v1467
        %v1482 = vpack.c.b16 %v1470, %v1469
        %v1483 = vpack.c.b16 %v1472, %v1471
        %v1484 = vpack.c.b16 %v1474, %v1473
        %v1485 = vpack.c.b16 %v1476, %v1475
        %v1486 = vpack.c.b16 %v1478, %v1477
        %1495 = vmatprep.subr.bf16.mxu0 0
        %1496 = vmatpush1.bf16.msra.mxu0 %v1486
        %1497 = vmatprep.subr.bf16.mxu0 0
        %1498 = vmatpush1.bf16.msra.mxu0 %v1485
        %1499 = vmatprep.subr.bf16.mxu0 0
        %1500 = vmatpush1.bf16.msra.mxu0 %v1484
        %1501 = vmatprep.subr.bf16.mxu0 0
        %1502 = vmatpush1.bf16.msra.mxu0 %v1483
        %1503 = vmatprep.subr.bf16.mxu0 0
        %1504 = vmatpush1.bf16.msra.mxu0 %v1482
        %1505 = vmatprep.subr.bf16.mxu0 0
        %1506 = vmatpush1.bf16.msra.mxu0 %v1481
        %1507 = vmatprep.subr.bf16.mxu0 0
        %1508 = vmatpush1.bf16.msra.mxu0 %v1480
        %1509 = vmatprep.subr.bf16.mxu0 0
        %1510 = vmatpush1.bf16.msra.mxu0 %v1479
        %1511 = vmatprep.subr.bf16.mxu0 0
        %1512 = vmatpush2.bf16.msra.mxu0 0
        %1513 = vmatprep.subr.bf16.mxu0 0
        %1514 = vmatpush2.bf16.msra.mxu0 0
        %1515 = vmatprep.subr.bf16.mxu0 0
        %1516 = vmatpush2.bf16.msra.mxu0 0
        %1517 = vmatprep.subr.bf16.mxu0 0
        %1518 = vmatpush2.bf16.msra.mxu0 0
        %1519 = vmatprep.subr.bf16.mxu0 0
        %1520 = vmatpush2.bf16.msra.mxu0 0
        %1521 = vmatprep.subr.bf16.mxu0 0
        %1522 = vmatpush2.bf16.msra.mxu0 0
        %1523 = vmatprep.subr.bf16.mxu0 0
        %1524 = vmatpush2.bf16.msra.mxu0 0
        %1525 = vmatprep.subr.bf16.mxu0 0
        %1526 = vmatpush2.bf16.msra.mxu0 0
        %1527 = vmatprep.mubr.bf16.mxu0 0
        %1528 = vmatmul.mubr.bf16.gmra.mxu0 %v1411
        %v1529 = vpop.f32.mrf.mxu0
        %v1530 = vadd.f32 %v1446, %v1529
        %v1531 = vpop.f32.mrf.mxu0
        %v1532 = vpop.f32.mrf.mxu0
        %v1533 = vadd.f32 %v1446, %v1532
        %v1534 = vpop.f32.mrf.mxu0
        %1535 = vmatprep.mubr.bf16.mxu0 0
        %1536 = vmatmul.mubr.bf16.gmra.mxu0 %v1412
        %v1537 = vpop.f32.mrf.mxu0
        %v1538 = vadd.f32 %v1446, %v1537
        %v1539 = vpop.f32.mrf.mxu0
        %v1540 = vpop.f32.mrf.mxu0
        %v1541 = vadd.f32 %v1446, %v1540
        %v1542 = vpop.f32.mrf.mxu0
        %1543 = vmatprep.mubr.bf16.mxu0 0
        %1544 = vmatmul.mubr.bf16.gmra.mxu0 %v1413
        %v1545 = vpop.f32.mrf.mxu0
        %v1546 = vadd.f32 %v1446, %v1545
        %v1547 = vpop.f32.mrf.mxu0
        %v1548 = vpop.f32.mrf.mxu0
        %v1549 = vadd.f32 %v1446, %v1548
        %v1550 = vpop.f32.mrf.mxu0
        %1551 = vmatprep.mubr.bf16.mxu0 0
        %1552 = vmatmul.mubr.bf16.gmra.mxu0 %v1414
        %v1553 = vpop.f32.mrf.mxu0
        %v1554 = vadd.f32 %v1446, %v1553
        %v1555 = vpop.f32.mrf.mxu0
        %v1556 = vpop.f32.mrf.mxu0
        %v1557 = vadd.f32 %v1446, %v1556
        %v1558 = vpop.f32.mrf.mxu0
        %1559 = vmatprep.mubr.bf16.mxu0 0
        %1560 = vmatmul.mubr.bf16.gmra.mxu0 %v1415
        %v1561 = vpop.f32.mrf.mxu0
        %v1562 = vadd.f32 %v1446, %v1561
        %v1563 = vpop.f32.mrf.mxu0
        %v1564 = vpop.f32.mrf.mxu0
        %v1565 = vadd.f32 %v1446, %v1564
        %v1566 = vpop.f32.mrf.mxu0
        %1567 = vmatprep.mubr.bf16.mxu0 0
        %1568 = vmatmul.mubr.bf16.gmra.mxu0 %v1416
        %v1569 = vpop.f32.mrf.mxu0
        %v1570 = vadd.f32 %v1446, %v1569
        %v1571 = vpop.f32.mrf.mxu0
        %v1572 = vpop.f32.mrf.mxu0
        %v1573 = vadd.f32 %v1446, %v1572
        %v1574 = vpop.f32.mrf.mxu0
        %1575 = vmatprep.mubr.bf16.mxu0 0
        %1576 = vmatmul.mubr.bf16.gmra.mxu0 %v1417
        %v1577 = vpop.f32.mrf.mxu0
        %v1578 = vadd.f32 %v1446, %v1577
        %v1579 = vpop.f32.mrf.mxu0
        %v1580 = vpop.f32.mrf.mxu0
        %v1581 = vadd.f32 %v1446, %v1580
        %v1582 = vpop.f32.mrf.mxu0
        %1583 = vmatprep.mubr.bf16.mxu0 0
        %1584 = vmatmul.mubr.bf16.gmra.mxu0 %v1418
        %v1585 = vpop.f32.mrf.mxu0
        %v1586 = vadd.f32 %v1446, %v1585
        %v1587 = vpop.f32.mrf.mxu0
        %v1588 = vpop.f32.mrf.mxu0
        %v1589 = vadd.f32 %v1446, %v1588
        %v1590 = vpop.f32.mrf.mxu0
        %1591 = vmatprep.mubr.bf16.mxu0 0
        %1592 = vmatmul.mubr.bf16.gmra.mxu0 %v1419
        %v1593 = vpop.f32.mrf.mxu0
        %v1594 = vadd.f32 %v1446, %v1593
        %v1595 = vpop.f32.mrf.mxu0
        %v1596 = vpop.f32.mrf.mxu0
        %v1597 = vadd.f32 %v1446, %v1596
        %v1598 = vpop.f32.mrf.mxu0
        %1599 = vmatprep.mubr.bf16.mxu0 0
        %1600 = vmatmul.mubr.bf16.gmra.mxu0 %v1420
        %v1601 = vpop.f32.mrf.mxu0
        %v1602 = vadd.f32 %v1446, %v1601
        %v1603 = vpop.f32.mrf.mxu0
        %v1604 = vpop.f32.mrf.mxu0
        %v1605 = vadd.f32 %v1446, %v1604
        %v1606 = vpop.f32.mrf.mxu0
        %1607 = vmatprep.mubr.bf16.mxu0 0
        %1608 = vmatmul.mubr.bf16.gmra.mxu0 %v1421
        %v1609 = vpop.f32.mrf.mxu0
        %v1610 = vadd.f32 %v1446, %v1609
        %v1611 = vpop.f32.mrf.mxu0
        %v1612 = vpop.f32.mrf.mxu0
        %v1613 = vadd.f32 %v1446, %v1612
        %v1614 = vpop.f32.mrf.mxu0
        %1615 = vmatprep.mubr.bf16.mxu0 0
        %1616 = vmatmul.mubr.bf16.gmra.mxu0 %v1422
        %v1617 = vpop.f32.mrf.mxu0
        %v1618 = vadd.f32 %v1446, %v1617
        %v1619 = vpop.f32.mrf.mxu0
        %v1620 = vpop.f32.mrf.mxu0
        %v1621 = vadd.f32 %v1446, %v1620
        %v1622 = vpop.f32.mrf.mxu0
        %1623 = vmatprep.mubr.bf16.mxu0 0
        %1624 = vmatmul.mubr.bf16.gmra.mxu0 %v1423
        %v1625 = vpop.f32.mrf.mxu0
        %v1626 = vadd.f32 %v1446, %v1625
        %v1627 = vpop.f32.mrf.mxu0
        %v1628 = vpop.f32.mrf.mxu0
        %v1629 = vadd.f32 %v1446, %v1628
        %v1630 = vpop.f32.mrf.mxu0
        %1631 = vmatprep.mubr.bf16.mxu0 0
        %1632 = vmatmul.mubr.bf16.gmra.mxu0 %v1424
        %v1633 = vpop.f32.mrf.mxu0
        %v1634 = vadd.f32 %v1446, %v1633
        %v1635 = vpop.f32.mrf.mxu0
        %v1636 = vpop.f32.mrf.mxu0
        %v1637 = vadd.f32 %v1446, %v1636
        %v1638 = vpop.f32.mrf.mxu0
        %1639 = vmatprep.mubr.bf16.mxu0 0
        %1640 = vmatmul.mubr.bf16.gmra.mxu0 %v1425
        %v1641 = vpop.f32.mrf.mxu0
        %v1642 = vadd.f32 %v1446, %v1641
        %v1643 = vpop.f32.mrf.mxu0
        %v1644 = vpop.f32.mrf.mxu0
        %v1645 = vadd.f32 %v1446, %v1644
        %v1646 = vpop.f32.mrf.mxu0
        %1647 = vmatprep.mubr.bf16.mxu0 0
        %1648 = vmatmul.mubr.bf16.gmra.mxu0 %v1426
        %v1649 = vpop.f32.mrf.mxu0
        %v1650 = vadd.f32 %v1446, %v1649
        %v1651 = vpop.f32.mrf.mxu0
        %v1652 = vpop.f32.mrf.mxu0
        %v1653 = vadd.f32 %v1446, %v1652
        %v1654 = vpop.f32.mrf.mxu0
        %1655 = vmatprep.mubr.bf16.mxu0 0
        %1656 = vmatmul.mubr.bf16.gmra.mxu0 %v1427
        %v1657 = vpop.f32.mrf.mxu0
        %v1658 = vadd.f32 %v1446, %v1657
        %v1659 = vpop.f32.mrf.mxu0
        %v1660 = vpop.f32.mrf.mxu0
        %v1661 = vadd.f32 %v1446, %v1660
        %v1662 = vpop.f32.mrf.mxu0
        %1663 = vmatprep.mubr.bf16.mxu0 0
        %1664 = vmatmul.mubr.bf16.gmra.mxu0 %v1428
        %v1665 = vpop.f32.mrf.mxu0
        %v1666 = vadd.f32 %v1446, %v1665
        %v1667 = vpop.f32.mrf.mxu0
        %v1668 = vpop.f32.mrf.mxu0
        %v1669 = vadd.f32 %v1446, %v1668
        %v1670 = vpop.f32.mrf.mxu0
        %1671 = vmatprep.mubr.bf16.mxu0 0
        %1672 = vmatmul.mubr.bf16.gmra.mxu0 %v1429
        %v1673 = vpop.f32.mrf.mxu0
        %v1674 = vadd.f32 %v1446, %v1673
        %v1675 = vpop.f32.mrf.mxu0
        %v1676 = vpop.f32.mrf.mxu0
        %v1677 = vadd.f32 %v1446, %v1676
        %v1678 = vpop.f32.mrf.mxu0
        %1679 = vmatprep.mubr.bf16.mxu0 0
        %1680 = vmatmul.mubr.bf16.gmra.mxu0 %v1430
        %v1681 = vpop.f32.mrf.mxu0
        %v1682 = vadd.f32 %v1446, %v1681
        %v1683 = vpop.f32.mrf.mxu0
        %v1684 = vpop.f32.mrf.mxu0
        %v1685 = vadd.f32 %v1446, %v1684
        %v1686 = vpop.f32.mrf.mxu0
        %1687 = vmatprep.mubr.bf16.mxu0 0
        %1688 = vmatmul.mubr.bf16.gmra.mxu0 %v1431
        %v1689 = vpop.f32.mrf.mxu0
        %v1690 = vadd.f32 %v1446, %v1689
        %v1691 = vpop.f32.mrf.mxu0
        %v1692 = vpop.f32.mrf.mxu0
        %v1693 = vadd.f32 %v1446, %v1692
        %v1694 = vpop.f32.mrf.mxu0
        %1695 = vmatprep.mubr.bf16.mxu0 0
        %1696 = vmatmul.mubr.bf16.gmra.mxu0 %v1432
        %v1697 = vpop.f32.mrf.mxu0
        %v1698 = vadd.f32 %v1446, %v1697
        %v1699 = vpop.f32.mrf.mxu0
        %v1700 = vpop.f32.mrf.mxu0
        %v1701 = vadd.f32 %v1446, %v1700
        %v1702 = vpop.f32.mrf.mxu0
        %1703 = vmatprep.mubr.bf16.mxu0 0
        %1704 = vmatmul.mubr.bf16.gmra.mxu0 %v1433
        %v1705 = vpop.f32.mrf.mxu0
        %v1706 = vadd.f32 %v1446, %v1705
        %v1707 = vpop.f32.mrf.mxu0
        %v1708 = vpop.f32.mrf.mxu0
        %v1709 = vadd.f32 %v1446, %v1708
        %v1710 = vpop.f32.mrf.mxu0
        %1711 = vmatprep.mubr.bf16.mxu0 0
        %1712 = vmatmul.mubr.bf16.gmra.mxu0 %v1434
        %v1713 = vpop.f32.mrf.mxu0
        %v1714 = vadd.f32 %v1446, %v1713
        %v1715 = vpop.f32.mrf.mxu0
        %v1716 = vpop.f32.mrf.mxu0
        %v1717 = vadd.f32 %v1446, %v1716
        %v1718 = vpop.f32.mrf.mxu0
        %1719 = vmatprep.mubr.bf16.mxu0 0
        %1720 = vmatmul.mubr.bf16.gmra.mxu0 %v1435
        %v1721 = vpop.f32.mrf.mxu0
        %v1722 = vadd.f32 %v1446, %v1721
        %v1723 = vpop.f32.mrf.mxu0
        %v1724 = vpop.f32.mrf.mxu0
        %v1725 = vadd.f32 %v1446, %v1724
        %v1726 = vpop.f32.mrf.mxu0
        %1727 = vmatprep.mubr.bf16.mxu0 0
        %1728 = vmatmul.mubr.bf16.gmra.mxu0 %v1436
        %v1729 = vpop.f32.mrf.mxu0
        %v1730 = vadd.f32 %v1446, %v1729
        %v1731 = vpop.f32.mrf.mxu0
        %v1732 = vpop.f32.mrf.mxu0
        %v1733 = vadd.f32 %v1446, %v1732
        %v1734 = vpop.f32.mrf.mxu0
        %1735 = vmatprep.mubr.bf16.mxu0 0
        %1736 = vmatmul.mubr.bf16.gmra.mxu0 %v1437
        %v1737 = vpop.f32.mrf.mxu0
        %v1738 = vadd.f32 %v1446, %v1737
        %v1739 = vpop.f32.mrf.mxu0
        %v1740 = vpop.f32.mrf.mxu0
        %v1741 = vadd.f32 %v1446, %v1740
        %v1742 = vpop.f32.mrf.mxu0
        %1743 = vmatprep.mubr.bf16.mxu0 0
        %1744 = vmatmul.mubr.bf16.gmra.mxu0 %v1438
        %v1745 = vpop.f32.mrf.mxu0
        %v1746 = vadd.f32 %v1446, %v1745
        %v1747 = vpop.f32.mrf.mxu0
        %v1748 = vpop.f32.mrf.mxu0
        %v1749 = vadd.f32 %v1446, %v1748
        %v1750 = vpop.f32.mrf.mxu0
        %1751 = vmatprep.mubr.bf16.mxu0 0
        %1752 = vmatmul.mubr.bf16.gmra.mxu0 %v1439
        %v1753 = vpop.f32.mrf.mxu0
        %v1754 = vadd.f32 %v1446, %v1753
        %v1755 = vpop.f32.mrf.mxu0
        %v1756 = vpop.f32.mrf.mxu0
        %v1757 = vadd.f32 %v1446, %v1756
        %v1758 = vpop.f32.mrf.mxu0
        %1759 = vmatprep.mubr.bf16.mxu0 0
        %1760 = vmatmul.mubr.bf16.gmra.mxu0 %v1440
        %v1761 = vpop.f32.mrf.mxu0
        %v1762 = vadd.f32 %v1446, %v1761
        %v1763 = vpop.f32.mrf.mxu0
        %v1764 = vpop.f32.mrf.mxu0
        %v1765 = vadd.f32 %v1446, %v1764
        %v1766 = vpop.f32.mrf.mxu0
        %1767 = vmatprep.mubr.bf16.mxu0 0
        %1768 = vmatmul.mubr.bf16.gmra.mxu0 %v1441
        %v1769 = vpop.f32.mrf.mxu0
        %v1770 = vadd.f32 %v1446, %v1769
        %v1771 = vpop.f32.mrf.mxu0
        %v1772 = vpop.f32.mrf.mxu0
        %v1773 = vadd.f32 %v1446, %v1772
        %v1774 = vpop.f32.mrf.mxu0
        %1775 = vmatprep.mubr.bf16.mxu0 0
        %1776 = vmatmul.mubr.bf16.gmra.mxu0 %v1442
        %v1777 = vpop.f32.mrf.mxu0
        %v1778 = vadd.f32 %v1446, %v1777
        %v1779 = vpop.f32.mrf.mxu0
        %v1780 = vpop.f32.mrf.mxu0
        %v1781 = vadd.f32 %v1446, %v1780
        %v1782 = vpop.f32.mrf.mxu0
        %1783 = vdwg.mxu0
        %v1784 = vmax.f32 %v1530, 0.0
        %v1785 = vmax.f32 %v1533, 0.0
        %v1786 = vmax.f32 %v1538, 0.0
        %v1787 = vmax.f32 %v1541, 0.0
        %v1788 = vmax.f32 %v1546, 0.0
        %v1789 = vmax.f32 %v1549, 0.0
        %v1790 = vmax.f32 %v1554, 0.0
        %v1791 = vmax.f32 %v1557, 0.0
        %v1792 = vmax.f32 %v1562, 0.0
        %v1793 = vmax.f32 %v1565, 0.0
        %v1794 = vmax.f32 %v1570, 0.0
        %v1795 = vmax.f32 %v1573, 0.0
        %v1796 = vmax.f32 %v1578, 0.0
        %v1797 = vmax.f32 %v1581, 0.0
        %v1798 = vmax.f32 %v1586, 0.0
        %v1799 = vmax.f32 %v1589, 0.0
        %v1800 = vmax.f32 %v1594, 0.0
        %v1801 = vmax.f32 %v1597, 0.0
        %v1802 = vmax.f32 %v1602, 0.0
        %v1803 = vmax.f32 %v1605, 0.0
        %v1804 = vmax.f32 %v1610, 0.0
        %v1805 = vmax.f32 %v1613, 0.0
        %v1806 = vmax.f32 %v1618, 0.0
        %v1807 = vmax.f32 %v1621, 0.0
        %v1808 = vmax.f32 %v1626, 0.0
        %v1809 = vmax.f32 %v1629, 0.0
        %v1810 = vmax.f32 %v1634, 0.0
        %v1811 = vmax.f32 %v1637, 0.0
        %v1812 = vmax.f32 %v1642, 0.0
        %v1813 = vmax.f32 %v1645, 0.0
        %v1814 = vmax.f32 %v1650, 0.0
        %v1815 = vmax.f32 %v1653, 0.0
        %v1816 = vmax.f32 %v1658, 0.0
        %v1817 = vmax.f32 %v1661, 0.0
        %v1818 = vmax.f32 %v1666, 0.0
        %v1819 = vmax.f32 %v1669, 0.0
        %v1820 = vmax.f32 %v1674, 0.0
        %v1821 = vmax.f32 %v1677, 0.0
        %v1822 = vmax.f32 %v1682, 0.0
        %v1823 = vmax.f32 %v1685, 0.0
        %v1824 = vmax.f32 %v1690, 0.0
        %v1825 = vmax.f32 %v1693, 0.0
        %v1826 = vmax.f32 %v1698, 0.0
        %v1827 = vmax.f32 %v1701, 0.0
        %v1828 = vmax.f32 %v1706, 0.0
        %v1829 = vmax.f32 %v1709, 0.0
        %v1830 = vmax.f32 %v1714, 0.0
        %v1831 = vmax.f32 %v1717, 0.0
        %v1832 = vmax.f32 %v1722, 0.0
        %v1833 = vmax.f32 %v1725, 0.0
        %v1834 = vmax.f32 %v1730, 0.0
        %v1835 = vmax.f32 %v1733, 0.0
        %v1836 = vmax.f32 %v1738, 0.0
        %v1837 = vmax.f32 %v1741, 0.0
        %v1838 = vmax.f32 %v1746, 0.0
        %v1839 = vmax.f32 %v1749, 0.0
        %v1840 = vmax.f32 %v1754, 0.0
        %v1841 = vmax.f32 %v1757, 0.0
        %v1842 = vmax.f32 %v1762, 0.0
        %v1843 = vmax.f32 %v1765, 0.0
        %v1844 = vmax.f32 %v1770, 0.0
        %v1845 = vmax.f32 %v1773, 0.0
        %v1846 = vmax.f32 %v1778, 0.0
        %v1847 = vmax.f32 %v1781, 0.0
        %v1848 = vpack.c.bf16 %v1785, %v1784
        %v1849 = vpack.c.bf16 %v1787, %v1786
        %v1850 = vpack.c.bf16 %v1789, %v1788
        %v1851 = vpack.c.bf16 %v1791, %v1790
        %v1852 = vpack.c.bf16 %v1793, %v1792
        %v1853 = vpack.c.bf16 %v1795, %v1794
        %v1854 = vpack.c.bf16 %v1797, %v1796
        %v1855 = vpack.c.bf16 %v1799, %v1798
        %v1856 = vpack.c.bf16 %v1801, %v1800
        %v1857 = vpack.c.bf16 %v1803, %v1802
        %v1858 = vpack.c.bf16 %v1805, %v1804
        %v1859 = vpack.c.bf16 %v1807, %v1806
        %v1860 = vpack.c.bf16 %v1809, %v1808
        %v1861 = vpack.c.bf16 %v1811, %v1810
        %v1862 = vpack.c.bf16 %v1813, %v1812
        %v1863 = vpack.c.bf16 %v1815, %v1814
        %v1864 = vpack.c.bf16 %v1817, %v1816
        %v1865 = vpack.c.bf16 %v1819, %v1818
        %v1866 = vpack.c.bf16 %v1821, %v1820
        %v1867 = vpack.c.bf16 %v1823, %v1822
        %v1868 = vpack.c.bf16 %v1825, %v1824
        %v1869 = vpack.c.bf16 %v1827, %v1826
        %v1870 = vpack.c.bf16 %v1829, %v1828
        %v1871 = vpack.c.bf16 %v1831, %v1830
        %v1872 = vpack.c.bf16 %v1833, %v1832
        %v1873 = vpack.c.bf16 %v1835, %v1834
        %v1874 = vpack.c.bf16 %v1837, %v1836
        %v1875 = vpack.c.bf16 %v1839, %v1838
        %v1876 = vpack.c.bf16 %v1841, %v1840
        %v1877 = vpack.c.bf16 %v1843, %v1842
        %v1878 = vpack.c.bf16 %v1845, %v1844
        %v1879 = vpack.c.bf16 %v1847, %v1846
        %v1880 = vlaneseq
        %v1881 = vshrl.u32 %v1880, 7
        %v1882 = vsub.s32 2, %v1881
        %v1883 = vrot.slane %v725, %v1882
        %v1900 = vunpack.c.l.b16 %v1363
        %v1901 = vunpack.c.l.b16 %v1364
        %v1902 = vunpack.c.l.b16 %v1365
        %v1903 = vunpack.c.l.b16 %v1366
        %v1904 = vunpack.c.l.b16 %v1367
        %v1905 = vunpack.c.l.b16 %v1368
        %v1906 = vunpack.c.l.b16 %v1369
        %v1907 = vunpack.c.l.b16 %v1370
        %v1908 = vunpack.c.l.b16 %v1371
        %v1909 = vunpack.c.l.b16 %v1372
        %v1910 = vunpack.c.l.b16 %v1373
        %v1911 = vunpack.c.l.b16 %v1374
        %v1912 = vunpack.c.l.b16 %v1375
        %v1913 = vunpack.c.l.b16 %v1376
        %v1914 = vunpack.c.l.b16 %v1377
        %v1915 = vunpack.c.l.b16 %v1378
        %v1916 = vpack.c.b16 %v1901, %v1900
        %v1917 = vpack.c.b16 %v1903, %v1902
        %v1918 = vpack.c.b16 %v1905, %v1904
        %v1919 = vpack.c.b16 %v1907, %v1906
        %v1920 = vpack.c.b16 %v1909, %v1908
        %v1921 = vpack.c.b16 %v1911, %v1910
        %v1922 = vpack.c.b16 %v1913, %v1912
        %v1923 = vpack.c.b16 %v1915, %v1914
        %1932 = vmatprep.subr.bf16.mxu0 0
        %1933 = vmatpush1.bf16.msra.mxu0 %v1923
        %1934 = vmatprep.subr.bf16.mxu0 0
        %1935 = vmatpush1.bf16.msra.mxu0 %v1922
        %1936 = vmatprep.subr.bf16.mxu0 0
        %1937 = vmatpush1.bf16.msra.mxu0 %v1921
        %1938 = vmatprep.subr.bf16.mxu0 0
        %1939 = vmatpush1.bf16.msra.mxu0 %v1920
        %1940 = vmatprep.subr.bf16.mxu0 0
        %1941 = vmatpush1.bf16.msra.mxu0 %v1919
        %1942 = vmatprep.subr.bf16.mxu0 0
        %1943 = vmatpush1.bf16.msra.mxu0 %v1918
        %1944 = vmatprep.subr.bf16.mxu0 0
        %1945 = vmatpush1.bf16.msra.mxu0 %v1917
        %1946 = vmatprep.subr.bf16.mxu0 0
        %1947 = vmatpush1.bf16.msra.mxu0 %v1916
        %1948 = vmatprep.subr.bf16.mxu0 0
        %1949 = vmatpush2.bf16.msra.mxu0 0
        %1950 = vmatprep.subr.bf16.mxu0 0
        %1951 = vmatpush2.bf16.msra.mxu0 0
        %1952 = vmatprep.subr.bf16.mxu0 0
        %1953 = vmatpush2.bf16.msra.mxu0 0
        %1954 = vmatprep.subr.bf16.mxu0 0
        %1955 = vmatpush2.bf16.msra.mxu0 0
        %1956 = vmatprep.subr.bf16.mxu0 0
        %1957 = vmatpush2.bf16.msra.mxu0 0
        %1958 = vmatprep.subr.bf16.mxu0 0
        %1959 = vmatpush2.bf16.msra.mxu0 0
        %1960 = vmatprep.subr.bf16.mxu0 0
        %1961 = vmatpush2.bf16.msra.mxu0 0
        %1962 = vmatprep.subr.bf16.mxu0 0
        %1963 = vmatpush2.bf16.msra.mxu0 0
        %1964 = vmatprep.mubr.bf16.mxu0 0
        %1965 = vmatmul.mubr.bf16.gmra.mxu0 %v1848
        %v1966 = vpop.f32.mrf.mxu0
        %v1967 = vadd.f32 %v1883, %v1966
        %v1968 = vpop.f32.mrf.mxu0
        %v1969 = vpop.f32.mrf.mxu0
        %v1970 = vadd.f32 %v1883, %v1969
        %v1971 = vpop.f32.mrf.mxu0
        %1972 = vmatprep.mubr.bf16.mxu0 0
        %1973 = vmatmul.mubr.bf16.gmra.mxu0 %v1849
        %v1974 = vpop.f32.mrf.mxu0
        %v1975 = vadd.f32 %v1883, %v1974
        %v1976 = vpop.f32.mrf.mxu0
        %v1977 = vpop.f32.mrf.mxu0
        %v1978 = vadd.f32 %v1883, %v1977
        %v1979 = vpop.f32.mrf.mxu0
        %1980 = vmatprep.mubr.bf16.mxu0 0
        %1981 = vmatmul.mubr.bf16.gmra.mxu0 %v1850
        %v1982 = vpop.f32.mrf.mxu0
        %v1983 = vadd.f32 %v1883, %v1982
        %v1984 = vpop.f32.mrf.mxu0
        %v1985 = vpop.f32.mrf.mxu0
        %v1986 = vadd.f32 %v1883, %v1985
        %v1987 = vpop.f32.mrf.mxu0
        %1988 = vmatprep.mubr.bf16.mxu0 0
        %1989 = vmatmul.mubr.bf16.gmra.mxu0 %v1851
        %v1990 = vpop.f32.mrf.mxu0
        %v1991 = vadd.f32 %v1883, %v1990
        %v1992 = vpop.f32.mrf.mxu0
        %v1993 = vpop.f32.mrf.mxu0
        %v1994 = vadd.f32 %v1883, %v1993
        %v1995 = vpop.f32.mrf.mxu0
        %1996 = vmatprep.mubr.bf16.mxu0 0
        %1997 = vmatmul.mubr.bf16.gmra.mxu0 %v1852
        %v1998 = vpop.f32.mrf.mxu0
        %v1999 = vadd.f32 %v1883, %v1998
        %v2000 = vpop.f32.mrf.mxu0
        %v2001 = vpop.f32.mrf.mxu0
        %v2002 = vadd.f32 %v1883, %v2001
        %v2003 = vpop.f32.mrf.mxu0
        %2004 = vmatprep.mubr.bf16.mxu0 0
        %2005 = vmatmul.mubr.bf16.gmra.mxu0 %v1853
        %v2006 = vpop.f32.mrf.mxu0
        %v2007 = vadd.f32 %v1883, %v2006
        %v2008 = vpop.f32.mrf.mxu0
        %v2009 = vpop.f32.mrf.mxu0
        %v2010 = vadd.f32 %v1883, %v2009
        %v2011 = vpop.f32.mrf.mxu0
        %2012 = vmatprep.mubr.bf16.mxu0 0
        %2013 = vmatmul.mubr.bf16.gmra.mxu0 %v1854
        %v2014 = vpop.f32.mrf.mxu0
        %v2015 = vadd.f32 %v1883, %v2014
        %v2016 = vpop.f32.mrf.mxu0
        %v2017 = vpop.f32.mrf.mxu0
        %v2018 = vadd.f32 %v1883, %v2017
        %v2019 = vpop.f32.mrf.mxu0
        %2020 = vmatprep.mubr.bf16.mxu0 0
        %2021 = vmatmul.mubr.bf16.gmra.mxu0 %v1855
        %v2022 = vpop.f32.mrf.mxu0
        %v2023 = vadd.f32 %v1883, %v2022
        %v2024 = vpop.f32.mrf.mxu0
        %v2025 = vpop.f32.mrf.mxu0
        %v2026 = vadd.f32 %v1883, %v2025
        %v2027 = vpop.f32.mrf.mxu0
        %2028 = vmatprep.mubr.bf16.mxu0 0
        %2029 = vmatmul.mubr.bf16.gmra.mxu0 %v1856
        %v2030 = vpop.f32.mrf.mxu0
        %v2031 = vadd.f32 %v1883, %v2030
        %v2032 = vpop.f32.mrf.mxu0
        %v2033 = vpop.f32.mrf.mxu0
        %v2034 = vadd.f32 %v1883, %v2033
        %v2035 = vpop.f32.mrf.mxu0
        %2036 = vmatprep.mubr.bf16.mxu0 0
        %2037 = vmatmul.mubr.bf16.gmra.mxu0 %v1857
        %v2038 = vpop.f32.mrf.mxu0
        %v2039 = vadd.f32 %v1883, %v2038
        %v2040 = vpop.f32.mrf.mxu0
        %v2041 = vpop.f32.mrf.mxu0
        %v2042 = vadd.f32 %v1883, %v2041
        %v2043 = vpop.f32.mrf.mxu0
        %2044 = vmatprep.mubr.bf16.mxu0 0
        %2045 = vmatmul.mubr.bf16.gmra.mxu0 %v1858
        %v2046 = vpop.f32.mrf.mxu0
        %v2047 = vadd.f32 %v1883, %v2046
        %v2048 = vpop.f32.mrf.mxu0
        %v2049 = vpop.f32.mrf.mxu0
        %v2050 = vadd.f32 %v1883, %v2049
        %v2051 = vpop.f32.mrf.mxu0
        %2052 = vmatprep.mubr.bf16.mxu0 0
        %2053 = vmatmul.mubr.bf16.gmra.mxu0 %v1859
        %v2054 = vpop.f32.mrf.mxu0
        %v2055 = vadd.f32 %v1883, %v2054
        %v2056 = vpop.f32.mrf.mxu0
        %v2057 = vpop.f32.mrf.mxu0
        %v2058 = vadd.f32 %v1883, %v2057
        %v2059 = vpop.f32.mrf.mxu0
        %2060 = vmatprep.mubr.bf16.mxu0 0
        %2061 = vmatmul.mubr.bf16.gmra.mxu0 %v1860
        %v2062 = vpop.f32.mrf.mxu0
        %v2063 = vadd.f32 %v1883, %v2062
        %v2064 = vpop.f32.mrf.mxu0
        %v2065 = vpop.f32.mrf.mxu0
        %v2066 = vadd.f32 %v1883, %v2065
        %v2067 = vpop.f32.mrf.mxu0
        %2068 = vmatprep.mubr.bf16.mxu0 0
        %2069 = vmatmul.mubr.bf16.gmra.mxu0 %v1861
        %v2070 = vpop.f32.mrf.mxu0
        %v2071 = vadd.f32 %v1883, %v2070
        %v2072 = vpop.f32.mrf.mxu0
        %v2073 = vpop.f32.mrf.mxu0
        %v2074 = vadd.f32 %v1883, %v2073
        %v2075 = vpop.f32.mrf.mxu0
        %2076 = vmatprep.mubr.bf16.mxu0 0
        %2077 = vmatmul.mubr.bf16.gmra.mxu0 %v1862
        %v2078 = vpop.f32.mrf.mxu0
        %v2079 = vadd.f32 %v1883, %v2078
        %v2080 = vpop.f32.mrf.mxu0
        %v2081 = vpop.f32.mrf.mxu0
        %v2082 = vadd.f32 %v1883, %v2081
        %v2083 = vpop.f32.mrf.mxu0
        %2084 = vmatprep.mubr.bf16.mxu0 0
        %2085 = vmatmul.mubr.bf16.gmra.mxu0 %v1863
        %v2086 = vpop.f32.mrf.mxu0
        %v2087 = vadd.f32 %v1883, %v2086
        %v2088 = vpop.f32.mrf.mxu0
        %v2089 = vpop.f32.mrf.mxu0
        %v2090 = vadd.f32 %v1883, %v2089
        %v2091 = vpop.f32.mrf.mxu0
        %2092 = vmatprep.mubr.bf16.mxu0 0
        %2093 = vmatmul.mubr.bf16.gmra.mxu0 %v1864
        %v2094 = vpop.f32.mrf.mxu0
        %v2095 = vadd.f32 %v1883, %v2094
        %v2096 = vpop.f32.mrf.mxu0
        %v2097 = vpop.f32.mrf.mxu0
        %v2098 = vadd.f32 %v1883, %v2097
        %v2099 = vpop.f32.mrf.mxu0
        %2100 = vmatprep.mubr.bf16.mxu0 0
        %2101 = vmatmul.mubr.bf16.gmra.mxu0 %v1865
        %v2102 = vpop.f32.mrf.mxu0
        %v2103 = vadd.f32 %v1883, %v2102
        %v2104 = vpop.f32.mrf.mxu0
        %v2105 = vpop.f32.mrf.mxu0
        %v2106 = vadd.f32 %v1883, %v2105
        %v2107 = vpop.f32.mrf.mxu0
        %2108 = vmatprep.mubr.bf16.mxu0 0
        %2109 = vmatmul.mubr.bf16.gmra.mxu0 %v1866
        %v2110 = vpop.f32.mrf.mxu0
        %v2111 = vadd.f32 %v1883, %v2110
        %v2112 = vpop.f32.mrf.mxu0
        %v2113 = vpop.f32.mrf.mxu0
        %v2114 = vadd.f32 %v1883, %v2113
        %v2115 = vpop.f32.mrf.mxu0
        %2116 = vmatprep.mubr.bf16.mxu0 0
        %2117 = vmatmul.mubr.bf16.gmra.mxu0 %v1867
        %v2118 = vpop.f32.mrf.mxu0
        %v2119 = vadd.f32 %v1883, %v2118
        %v2120 = vpop.f32.mrf.mxu0
        %v2121 = vpop.f32.mrf.mxu0
        %v2122 = vadd.f32 %v1883, %v2121
        %v2123 = vpop.f32.mrf.mxu0
        %2124 = vmatprep.mubr.bf16.mxu0 0
        %2125 = vmatmul.mubr.bf16.gmra.mxu0 %v1868
        %v2126 = vpop.f32.mrf.mxu0
        %v2127 = vadd.f32 %v1883, %v2126
        %v2128 = vpop.f32.mrf.mxu0
        %v2129 = vpop.f32.mrf.mxu0
        %v2130 = vadd.f32 %v1883, %v2129
        %v2131 = vpop.f32.mrf.mxu0
        %2132 = vmatprep.mubr.bf16.mxu0 0
        %2133 = vmatmul.mubr.bf16.gmra.mxu0 %v1869
        %v2134 = vpop.f32.mrf.mxu0
        %v2135 = vadd.f32 %v1883, %v2134
        %v2136 = vpop.f32.mrf.mxu0
        %v2137 = vpop.f32.mrf.mxu0
        %v2138 = vadd.f32 %v1883, %v2137
        %v2139 = vpop.f32.mrf.mxu0
        %2140 = vmatprep.mubr.bf16.mxu0 0
        %2141 = vmatmul.mubr.bf16.gmra.mxu0 %v1870
        %v2142 = vpop.f32.mrf.mxu0
        %v2143 = vadd.f32 %v1883, %v2142
        %v2144 = vpop.f32.mrf.mxu0
        %v2145 = vpop.f32.mrf.mxu0
        %v2146 = vadd.f32 %v1883, %v2145
        %v2147 = vpop.f32.mrf.mxu0
        %2148 = vmatprep.mubr.bf16.mxu0 0
        %2149 = vmatmul.mubr.bf16.gmra.mxu0 %v1871
        %v2150 = vpop.f32.mrf.mxu0
        %v2151 = vadd.f32 %v1883, %v2150
        %v2152 = vpop.f32.mrf.mxu0
        %v2153 = vpop.f32.mrf.mxu0
        %v2154 = vadd.f32 %v1883, %v2153
        %v2155 = vpop.f32.mrf.mxu0
        %2156 = vmatprep.mubr.bf16.mxu0 0
        %2157 = vmatmul.mubr.bf16.gmra.mxu0 %v1872
        %v2158 = vpop.f32.mrf.mxu0
        %v2159 = vadd.f32 %v1883, %v2158
        %v2160 = vpop.f32.mrf.mxu0
        %v2161 = vpop.f32.mrf.mxu0
        %v2162 = vadd.f32 %v1883, %v2161
        %v2163 = vpop.f32.mrf.mxu0
        %2164 = vmatprep.mubr.bf16.mxu0 0
        %2165 = vmatmul.mubr.bf16.gmra.mxu0 %v1873
        %v2166 = vpop.f32.mrf.mxu0
        %v2167 = vadd.f32 %v1883, %v2166
        %v2168 = vpop.f32.mrf.mxu0
        %v2169 = vpop.f32.mrf.mxu0
        %v2170 = vadd.f32 %v1883, %v2169
        %v2171 = vpop.f32.mrf.mxu0
        %2172 = vmatprep.mubr.bf16.mxu0 0
        %2173 = vmatmul.mubr.bf16.gmra.mxu0 %v1874
        %v2174 = vpop.f32.mrf.mxu0
        %v2175 = vadd.f32 %v1883, %v2174
        %v2176 = vpop.f32.mrf.mxu0
        %v2177 = vpop.f32.mrf.mxu0
        %v2178 = vadd.f32 %v1883, %v2177
        %v2179 = vpop.f32.mrf.mxu0
        %2180 = vmatprep.mubr.bf16.mxu0 0
        %2181 = vmatmul.mubr.bf16.gmra.mxu0 %v1875
        %v2182 = vpop.f32.mrf.mxu0
        %v2183 = vadd.f32 %v1883, %v2182
        %v2184 = vpop.f32.mrf.mxu0
        %v2185 = vpop.f32.mrf.mxu0
        %v2186 = vadd.f32 %v1883, %v2185
        %v2187 = vpop.f32.mrf.mxu0
        %2188 = vmatprep.mubr.bf16.mxu0 0
        %2189 = vmatmul.mubr.bf16.gmra.mxu0 %v1876
        %v2190 = vpop.f32.mrf.mxu0
        %v2191 = vadd.f32 %v1883, %v2190
        %v2192 = vpop.f32.mrf.mxu0
        %v2193 = vpop.f32.mrf.mxu0
        %v2194 = vadd.f32 %v1883, %v2193
        %v2195 = vpop.f32.mrf.mxu0
        %2196 = vmatprep.mubr.bf16.mxu0 0
        %2197 = vmatmul.mubr.bf16.gmra.mxu0 %v1877
        %v2198 = vpop.f32.mrf.mxu0
        %v2199 = vadd.f32 %v1883, %v2198
        %v2200 = vpop.f32.mrf.mxu0
        %v2201 = vpop.f32.mrf.mxu0
        %v2202 = vadd.f32 %v1883, %v2201
        %v2203 = vpop.f32.mrf.mxu0
        %2204 = vmatprep.mubr.bf16.mxu0 0
        %2205 = vmatmul.mubr.bf16.gmra.mxu0 %v1878
        %v2206 = vpop.f32.mrf.mxu0
        %v2207 = vadd.f32 %v1883, %v2206
        %v2208 = vpop.f32.mrf.mxu0
        %v2209 = vpop.f32.mrf.mxu0
        %v2210 = vadd.f32 %v1883, %v2209
        %v2211 = vpop.f32.mrf.mxu0
        %2212 = vmatprep.mubr.bf16.mxu0 0
        %2213 = vmatmul.mubr.bf16.gmra.mxu0 %v1879
        %v2214 = vpop.f32.mrf.mxu0
        %v2215 = vadd.f32 %v1883, %v2214
        %v2216 = vpop.f32.mrf.mxu0
        %v2217 = vpop.f32.mrf.mxu0
        %v2218 = vadd.f32 %v1883, %v2217
        %v2219 = vpop.f32.mrf.mxu0
        %2220 = vdwg.mxu0
        %v2221 = vmax.f32 %v1967, 0.0
        %v2222 = vmax.f32 %v1970, 0.0
        %v2223 = vmax.f32 %v1975, 0.0
        %v2224 = vmax.f32 %v1978, 0.0
        %v2225 = vmax.f32 %v1983, 0.0
        %v2226 = vmax.f32 %v1986, 0.0
        %v2227 = vmax.f32 %v1991, 0.0
        %v2228 = vmax.f32 %v1994, 0.0
        %v2229 = vmax.f32 %v1999, 0.0
        %v2230 = vmax.f32 %v2002, 0.0
        %v2231 = vmax.f32 %v2007, 0.0
        %v2232 = vmax.f32 %v2010, 0.0
        %v2233 = vmax.f32 %v2015, 0.0
        %v2234 = vmax.f32 %v2018, 0.0
        %v2235 = vmax.f32 %v2023, 0.0
        %v2236 = vmax.f32 %v2026, 0.0
        %v2237 = vmax.f32 %v2031, 0.0
        %v2238 = vmax.f32 %v2034, 0.0
        %v2239 = vmax.f32 %v2039, 0.0
        %v2240 = vmax.f32 %v2042, 0.0
        %v2241 = vmax.f32 %v2047, 0.0
        %v2242 = vmax.f32 %v2050, 0.0
        %v2243 = vmax.f32 %v2055, 0.0
        %v2244 = vmax.f32 %v2058, 0.0
        %v2245 = vmax.f32 %v2063, 0.0
        %v2246 = vmax.f32 %v2066, 0.0
        %v2247 = vmax.f32 %v2071, 0.0
        %v2248 = vmax.f32 %v2074, 0.0
        %v2249 = vmax.f32 %v2079, 0.0
        %v2250 = vmax.f32 %v2082, 0.0
        %v2251 = vmax.f32 %v2087, 0.0
        %v2252 = vmax.f32 %v2090, 0.0
        %v2253 = vmax.f32 %v2095, 0.0
        %v2254 = vmax.f32 %v2098, 0.0
        %v2255 = vmax.f32 %v2103, 0.0
        %v2256 = vmax.f32 %v2106, 0.0
        %v2257 = vmax.f32 %v2111, 0.0
        %v2258 = vmax.f32 %v2114, 0.0
        %v2259 = vmax.f32 %v2119, 0.0
        %v2260 = vmax.f32 %v2122, 0.0
        %v2261 = vmax.f32 %v2127, 0.0
        %v2262 = vmax.f32 %v2130, 0.0
        %v2263 = vmax.f32 %v2135, 0.0
        %v2264 = vmax.f32 %v2138, 0.0
        %v2265 = vmax.f32 %v2143, 0.0
        %v2266 = vmax.f32 %v2146, 0.0
        %v2267 = vmax.f32 %v2151, 0.0
        %v2268 = vmax.f32 %v2154, 0.0
        %v2269 = vmax.f32 %v2159, 0.0
        %v2270 = vmax.f32 %v2162, 0.0
        %v2271 = vmax.f32 %v2167, 0.0
        %v2272 = vmax.f32 %v2170, 0.0
        %v2273 = vmax.f32 %v2175, 0.0
        %v2274 = vmax.f32 %v2178, 0.0
        %v2275 = vmax.f32 %v2183, 0.0
        %v2276 = vmax.f32 %v2186, 0.0
        %v2277 = vmax.f32 %v2191, 0.0
        %v2278 = vmax.f32 %v2194, 0.0
        %v2279 = vmax.f32 %v2199, 0.0
        %v2280 = vmax.f32 %v2202, 0.0
        %v2281 = vmax.f32 %v2207, 0.0
        %v2282 = vmax.f32 %v2210, 0.0
        %v2283 = vmax.f32 %v2215, 0.0
        %v2284 = vmax.f32 %v2218, 0.0
        %v2285 = vpack.c.bf16 %v2222, %v2221
        %v2286 = vpack.c.bf16 %v2224, %v2223
        %v2287 = vpack.c.bf16 %v2226, %v2225
        %v2288 = vpack.c.bf16 %v2228, %v2227
        %v2289 = vpack.c.bf16 %v2230, %v2229
        %v2290 = vpack.c.bf16 %v2232, %v2231
        %v2291 = vpack.c.bf16 %v2234, %v2233
        %v2292 = vpack.c.bf16 %v2236, %v2235
        %v2293 = vpack.c.bf16 %v2238, %v2237
        %v2294 = vpack.c.bf16 %v2240, %v2239
        %v2295 = vpack.c.bf16 %v2242, %v2241
        %v2296 = vpack.c.bf16 %v2244, %v2243
        %v2297 = vpack.c.bf16 %v2246, %v2245
        %v2298 = vpack.c.bf16 %v2248, %v2247
        %v2299 = vpack.c.bf16 %v2250, %v2249
        %v2300 = vpack.c.bf16 %v2252, %v2251
        %v2301 = vpack.c.bf16 %v2254, %v2253
        %v2302 = vpack.c.bf16 %v2256, %v2255
        %v2303 = vpack.c.bf16 %v2258, %v2257
        %v2304 = vpack.c.bf16 %v2260, %v2259
        %v2305 = vpack.c.bf16 %v2262, %v2261
        %v2306 = vpack.c.bf16 %v2264, %v2263
        %v2307 = vpack.c.bf16 %v2266, %v2265
        %v2308 = vpack.c.bf16 %v2268, %v2267
        %v2309 = vpack.c.bf16 %v2270, %v2269
        %v2310 = vpack.c.bf16 %v2272, %v2271
        %v2311 = vpack.c.bf16 %v2274, %v2273
        %v2312 = vpack.c.bf16 %v2276, %v2275
        %v2313 = vpack.c.bf16 %v2278, %v2277
        %v2314 = vpack.c.bf16 %v2280, %v2279
        %v2315 = vpack.c.bf16 %v2282, %v2281
        %v2316 = vpack.c.bf16 %v2284, %v2283
        %v2317 = vlaneseq
        %v2318 = vshrl.u32 %v2317, 7
        %v2319 = vsub.s32 3, %v2318
        %v2320 = vrot.slane %v725, %v2319
        %v2337 = vunpack.c.l.b16 %v1379
        %v2338 = vunpack.c.l.b16 %v1380
        %v2339 = vunpack.c.l.b16 %v1381
        %v2340 = vunpack.c.l.b16 %v1382
        %v2341 = vunpack.c.l.b16 %v1383
        %v2342 = vunpack.c.l.b16 %v1384
        %v2343 = vunpack.c.l.b16 %v1385
        %v2344 = vunpack.c.l.b16 %v1386
        %v2345 = vunpack.c.l.b16 %v1387
        %v2346 = vunpack.c.l.b16 %v1388
        %v2347 = vunpack.c.l.b16 %v1389
        %v2348 = vunpack.c.l.b16 %v1390
        %v2349 = vunpack.c.l.b16 %v1391
        %v2350 = vunpack.c.l.b16 %v1392
        %v2351 = vunpack.c.l.b16 %v1393
        %v2352 = vunpack.c.l.b16 %v1394
        %v2353 = vpack.c.b16 %v2338, %v2337
        %v2354 = vpack.c.b16 %v2340, %v2339
        %v2355 = vpack.c.b16 %v2342, %v2341
        %v2356 = vpack.c.b16 %v2344, %v2343
        %v2357 = vpack.c.b16 %v2346, %v2345
        %v2358 = vpack.c.b16 %v2348, %v2347
        %v2359 = vpack.c.b16 %v2350, %v2349
        %v2360 = vpack.c.b16 %v2352, %v2351
        %2369 = vmatprep.subr.bf16.mxu0 0
        %2370 = vmatpush1.bf16.msra.mxu0 %v2360
        %2371 = vmatprep.subr.bf16.mxu0 0
        %2372 = vmatpush1.bf16.msra.mxu0 %v2359
        %2373 = vmatprep.subr.bf16.mxu0 0
        %2374 = vmatpush1.bf16.msra.mxu0 %v2358
        %2375 = vmatprep.subr.bf16.mxu0 0
        %2376 = vmatpush1.bf16.msra.mxu0 %v2357
        %2377 = vmatprep.subr.bf16.mxu0 0
        %2378 = vmatpush1.bf16.msra.mxu0 %v2356
        %2379 = vmatprep.subr.bf16.mxu0 0
        %2380 = vmatpush1.bf16.msra.mxu0 %v2355
        %2381 = vmatprep.subr.bf16.mxu0 0
        %2382 = vmatpush1.bf16.msra.mxu0 %v2354
        %2383 = vmatprep.subr.bf16.mxu0 0
        %2384 = vmatpush1.bf16.msra.mxu0 %v2353
        %2385 = vmatprep.subr.bf16.mxu0 0
        %2386 = vmatpush2.bf16.msra.mxu0 0
        %2387 = vmatprep.subr.bf16.mxu0 0
        %2388 = vmatpush2.bf16.msra.mxu0 0
        %2389 = vmatprep.subr.bf16.mxu0 0
        %2390 = vmatpush2.bf16.msra.mxu0 0
        %2391 = vmatprep.subr.bf16.mxu0 0
        %2392 = vmatpush2.bf16.msra.mxu0 0
        %2393 = vmatprep.subr.bf16.mxu0 0
        %2394 = vmatpush2.bf16.msra.mxu0 0
        %2395 = vmatprep.subr.bf16.mxu0 0
        %2396 = vmatpush2.bf16.msra.mxu0 0
        %2397 = vmatprep.subr.bf16.mxu0 0
        %2398 = vmatpush2.bf16.msra.mxu0 0
        %2399 = vmatprep.subr.bf16.mxu0 0
        %2400 = vmatpush2.bf16.msra.mxu0 0
        %2401 = vmatprep.mubr.bf16.mxu0 0
        %2402 = vmatmul.mubr.bf16.gmra.mxu0 %v2285
        %v2403 = vpop.f32.mrf.mxu0
        %v2404 = vadd.f32 %v2320, %v2403
        %v2405 = vpop.f32.mrf.mxu0
        %v2406 = vpop.f32.mrf.mxu0
        %v2407 = vadd.f32 %v2320, %v2406
        %v2408 = vpop.f32.mrf.mxu0
        %2409 = vmatprep.mubr.bf16.mxu0 0
        %2410 = vmatmul.mubr.bf16.gmra.mxu0 %v2286
        %v2411 = vpop.f32.mrf.mxu0
        %v2412 = vadd.f32 %v2320, %v2411
        %v2413 = vpop.f32.mrf.mxu0
        %v2414 = vpop.f32.mrf.mxu0
        %v2415 = vadd.f32 %v2320, %v2414
        %v2416 = vpop.f32.mrf.mxu0
        %2417 = vmatprep.mubr.bf16.mxu0 0
        %2418 = vmatmul.mubr.bf16.gmra.mxu0 %v2287
        %v2419 = vpop.f32.mrf.mxu0
        %v2420 = vadd.f32 %v2320, %v2419
        %v2421 = vpop.f32.mrf.mxu0
        %v2422 = vpop.f32.mrf.mxu0
        %v2423 = vadd.f32 %v2320, %v2422
        %v2424 = vpop.f32.mrf.mxu0
        %2425 = vmatprep.mubr.bf16.mxu0 0
        %2426 = vmatmul.mubr.bf16.gmra.mxu0 %v2288
        %v2427 = vpop.f32.mrf.mxu0
        %v2428 = vadd.f32 %v2320, %v2427
        %v2429 = vpop.f32.mrf.mxu0
        %v2430 = vpop.f32.mrf.mxu0
        %v2431 = vadd.f32 %v2320, %v2430
        %v2432 = vpop.f32.mrf.mxu0
        %2433 = vmatprep.mubr.bf16.mxu0 0
        %2434 = vmatmul.mubr.bf16.gmra.mxu0 %v2289
        %v2435 = vpop.f32.mrf.mxu0
        %v2436 = vadd.f32 %v2320, %v2435
        %v2437 = vpop.f32.mrf.mxu0
        %v2438 = vpop.f32.mrf.mxu0
        %v2439 = vadd.f32 %v2320, %v2438
        %v2440 = vpop.f32.mrf.mxu0
        %2441 = vmatprep.mubr.bf16.mxu0 0
        %2442 = vmatmul.mubr.bf16.gmra.mxu0 %v2290
        %v2443 = vpop.f32.mrf.mxu0
        %v2444 = vadd.f32 %v2320, %v2443
        %v2445 = vpop.f32.mrf.mxu0
        %v2446 = vpop.f32.mrf.mxu0
        %v2447 = vadd.f32 %v2320, %v2446
        %v2448 = vpop.f32.mrf.mxu0
        %2449 = vmatprep.mubr.bf16.mxu0 0
        %2450 = vmatmul.mubr.bf16.gmra.mxu0 %v2291
        %v2451 = vpop.f32.mrf.mxu0
        %v2452 = vadd.f32 %v2320, %v2451
        %v2453 = vpop.f32.mrf.mxu0
        %v2454 = vpop.f32.mrf.mxu0
        %v2455 = vadd.f32 %v2320, %v2454
        %v2456 = vpop.f32.mrf.mxu0
        %2457 = vmatprep.mubr.bf16.mxu0 0
        %2458 = vmatmul.mubr.bf16.gmra.mxu0 %v2292
        %v2459 = vpop.f32.mrf.mxu0
        %v2460 = vadd.f32 %v2320, %v2459
        %v2461 = vpop.f32.mrf.mxu0
        %v2462 = vpop.f32.mrf.mxu0
        %v2463 = vadd.f32 %v2320, %v2462
        %v2464 = vpop.f32.mrf.mxu0
        %2465 = vmatprep.mubr.bf16.mxu0 0
        %2466 = vmatmul.mubr.bf16.gmra.mxu0 %v2293
        %v2467 = vpop.f32.mrf.mxu0
        %v2468 = vadd.f32 %v2320, %v2467
        %v2469 = vpop.f32.mrf.mxu0
        %v2470 = vpop.f32.mrf.mxu0
        %v2471 = vadd.f32 %v2320, %v2470
        %v2472 = vpop.f32.mrf.mxu0
        %2473 = vmatprep.mubr.bf16.mxu0 0
        %2474 = vmatmul.mubr.bf16.gmra.mxu0 %v2294
        %v2475 = vpop.f32.mrf.mxu0
        %v2476 = vadd.f32 %v2320, %v2475
        %v2477 = vpop.f32.mrf.mxu0
        %v2478 = vpop.f32.mrf.mxu0
        %v2479 = vadd.f32 %v2320, %v2478
        %v2480 = vpop.f32.mrf.mxu0
        %2481 = vmatprep.mubr.bf16.mxu0 0
        %2482 = vmatmul.mubr.bf16.gmra.mxu0 %v2295
        %v2483 = vpop.f32.mrf.mxu0
        %v2484 = vadd.f32 %v2320, %v2483
        %v2485 = vpop.f32.mrf.mxu0
        %v2486 = vpop.f32.mrf.mxu0
        %v2487 = vadd.f32 %v2320, %v2486
        %v2488 = vpop.f32.mrf.mxu0
        %2489 = vmatprep.mubr.bf16.mxu0 0
        %2490 = vmatmul.mubr.bf16.gmra.mxu0 %v2296
        %v2491 = vpop.f32.mrf.mxu0
        %v2492 = vadd.f32 %v2320, %v2491
        %v2493 = vpop.f32.mrf.mxu0
        %v2494 = vpop.f32.mrf.mxu0
        %v2495 = vadd.f32 %v2320, %v2494
        %v2496 = vpop.f32.mrf.mxu0
        %2497 = vmatprep.mubr.bf16.mxu0 0
        %2498 = vmatmul.mubr.bf16.gmra.mxu0 %v2297
        %v2499 = vpop.f32.mrf.mxu0
        %v2500 = vadd.f32 %v2320, %v2499
        %v2501 = vpop.f32.mrf.mxu0
        %v2502 = vpop.f32.mrf.mxu0
        %v2503 = vadd.f32 %v2320, %v2502
        %v2504 = vpop.f32.mrf.mxu0
        %2505 = vmatprep.mubr.bf16.mxu0 0
        %2506 = vmatmul.mubr.bf16.gmra.mxu0 %v2298
        %v2507 = vpop.f32.mrf.mxu0
        %v2508 = vadd.f32 %v2320, %v2507
        %v2509 = vpop.f32.mrf.mxu0
        %v2510 = vpop.f32.mrf.mxu0
        %v2511 = vadd.f32 %v2320, %v2510
        %v2512 = vpop.f32.mrf.mxu0
        %2513 = vmatprep.mubr.bf16.mxu0 0
        %2514 = vmatmul.mubr.bf16.gmra.mxu0 %v2299
        %v2515 = vpop.f32.mrf.mxu0
        %v2516 = vadd.f32 %v2320, %v2515
        %v2517 = vpop.f32.mrf.mxu0
        %v2518 = vpop.f32.mrf.mxu0
        %v2519 = vadd.f32 %v2320, %v2518
        %v2520 = vpop.f32.mrf.mxu0
        %2521 = vmatprep.mubr.bf16.mxu0 0
        %2522 = vmatmul.mubr.bf16.gmra.mxu0 %v2300
        %v2523 = vpop.f32.mrf.mxu0
        %v2524 = vadd.f32 %v2320, %v2523
        %v2525 = vpop.f32.mrf.mxu0
        %v2526 = vpop.f32.mrf.mxu0
        %v2527 = vadd.f32 %v2320, %v2526
        %v2528 = vpop.f32.mrf.mxu0
        %2529 = vmatprep.mubr.bf16.mxu0 0
        %2530 = vmatmul.mubr.bf16.gmra.mxu0 %v2301
        %v2531 = vpop.f32.mrf.mxu0
        %v2532 = vadd.f32 %v2320, %v2531
        %v2533 = vpop.f32.mrf.mxu0
        %v2534 = vpop.f32.mrf.mxu0
        %v2535 = vadd.f32 %v2320, %v2534
        %v2536 = vpop.f32.mrf.mxu0
        %2537 = vmatprep.mubr.bf16.mxu0 0
        %2538 = vmatmul.mubr.bf16.gmra.mxu0 %v2302
        %v2539 = vpop.f32.mrf.mxu0
        %v2540 = vadd.f32 %v2320, %v2539
        %v2541 = vpop.f32.mrf.mxu0
        %v2542 = vpop.f32.mrf.mxu0
        %v2543 = vadd.f32 %v2320, %v2542
        %v2544 = vpop.f32.mrf.mxu0
        %2545 = vmatprep.mubr.bf16.mxu0 0
        %2546 = vmatmul.mubr.bf16.gmra.mxu0 %v2303
        %v2547 = vpop.f32.mrf.mxu0
        %v2548 = vadd.f32 %v2320, %v2547
        %v2549 = vpop.f32.mrf.mxu0
        %v2550 = vpop.f32.mrf.mxu0
        %v2551 = vadd.f32 %v2320, %v2550
        %v2552 = vpop.f32.mrf.mxu0
        %2553 = vmatprep.mubr.bf16.mxu0 0
        %2554 = vmatmul.mubr.bf16.gmra.mxu0 %v2304
        %v2555 = vpop.f32.mrf.mxu0
        %v2556 = vadd.f32 %v2320, %v2555
        %v2557 = vpop.f32.mrf.mxu0
        %v2558 = vpop.f32.mrf.mxu0
        %v2559 = vadd.f32 %v2320, %v2558
        %v2560 = vpop.f32.mrf.mxu0
        %2561 = vmatprep.mubr.bf16.mxu0 0
        %2562 = vmatmul.mubr.bf16.gmra.mxu0 %v2305
        %v2563 = vpop.f32.mrf.mxu0
        %v2564 = vadd.f32 %v2320, %v2563
        %v2565 = vpop.f32.mrf.mxu0
        %v2566 = vpop.f32.mrf.mxu0
        %v2567 = vadd.f32 %v2320, %v2566
        %v2568 = vpop.f32.mrf.mxu0
        %2569 = vmatprep.mubr.bf16.mxu0 0
        %2570 = vmatmul.mubr.bf16.gmra.mxu0 %v2306
        %v2571 = vpop.f32.mrf.mxu0
        %v2572 = vadd.f32 %v2320, %v2571
        %v2573 = vpop.f32.mrf.mxu0
        %v2574 = vpop.f32.mrf.mxu0
        %v2575 = vadd.f32 %v2320, %v2574
        %v2576 = vpop.f32.mrf.mxu0
        %2577 = vmatprep.mubr.bf16.mxu0 0
        %2578 = vmatmul.mubr.bf16.gmra.mxu0 %v2307
        %v2579 = vpop.f32.mrf.mxu0
        %v2580 = vadd.f32 %v2320, %v2579
        %v2581 = vpop.f32.mrf.mxu0
        %v2582 = vpop.f32.mrf.mxu0
        %v2583 = vadd.f32 %v2320, %v2582
        %v2584 = vpop.f32.mrf.mxu0
        %2585 = vmatprep.mubr.bf16.mxu0 0
        %2586 = vmatmul.mubr.bf16.gmra.mxu0 %v2308
        %v2587 = vpop.f32.mrf.mxu0
        %v2588 = vadd.f32 %v2320, %v2587
        %v2589 = vpop.f32.mrf.mxu0
        %v2590 = vpop.f32.mrf.mxu0
        %v2591 = vadd.f32 %v2320, %v2590
        %v2592 = vpop.f32.mrf.mxu0
        %2593 = vmatprep.mubr.bf16.mxu0 0
        %2594 = vmatmul.mubr.bf16.gmra.mxu0 %v2309
        %v2595 = vpop.f32.mrf.mxu0
        %v2596 = vadd.f32 %v2320, %v2595
        %v2597 = vpop.f32.mrf.mxu0
        %v2598 = vpop.f32.mrf.mxu0
        %v2599 = vadd.f32 %v2320, %v2598
        %v2600 = vpop.f32.mrf.mxu0
        %2601 = vmatprep.mubr.bf16.mxu0 0
        %2602 = vmatmul.mubr.bf16.gmra.mxu0 %v2310
        %v2603 = vpop.f32.mrf.mxu0
        %v2604 = vadd.f32 %v2320, %v2603
        %v2605 = vpop.f32.mrf.mxu0
        %v2606 = vpop.f32.mrf.mxu0
        %v2607 = vadd.f32 %v2320, %v2606
        %v2608 = vpop.f32.mrf.mxu0
        %2609 = vmatprep.mubr.bf16.mxu0 0
        %2610 = vmatmul.mubr.bf16.gmra.mxu0 %v2311
        %v2611 = vpop.f32.mrf.mxu0
        %v2612 = vadd.f32 %v2320, %v2611
        %v2613 = vpop.f32.mrf.mxu0
        %v2614 = vpop.f32.mrf.mxu0
        %v2615 = vadd.f32 %v2320, %v2614
        %v2616 = vpop.f32.mrf.mxu0
        %2617 = vmatprep.mubr.bf16.mxu0 0
        %2618 = vmatmul.mubr.bf16.gmra.mxu0 %v2312
        %v2619 = vpop.f32.mrf.mxu0
        %v2620 = vadd.f32 %v2320, %v2619
        %v2621 = vpop.f32.mrf.mxu0
        %v2622 = vpop.f32.mrf.mxu0
        %v2623 = vadd.f32 %v2320, %v2622
        %v2624 = vpop.f32.mrf.mxu0
        %2625 = vmatprep.mubr.bf16.mxu0 0
        %2626 = vmatmul.mubr.bf16.gmra.mxu0 %v2313
        %v2627 = vpop.f32.mrf.mxu0
        %v2628 = vadd.f32 %v2320, %v2627
        %v2629 = vpop.f32.mrf.mxu0
        %v2630 = vpop.f32.mrf.mxu0
        %v2631 = vadd.f32 %v2320, %v2630
        %v2632 = vpop.f32.mrf.mxu0
        %2633 = vmatprep.mubr.bf16.mxu0 0
        %2634 = vmatmul.mubr.bf16.gmra.mxu0 %v2314
        %v2635 = vpop.f32.mrf.mxu0
        %v2636 = vadd.f32 %v2320, %v2635
        %v2637 = vpop.f32.mrf.mxu0
        %v2638 = vpop.f32.mrf.mxu0
        %v2639 = vadd.f32 %v2320, %v2638
        %v2640 = vpop.f32.mrf.mxu0
        %2641 = vmatprep.mubr.bf16.mxu0 0
        %2642 = vmatmul.mubr.bf16.gmra.mxu0 %v2315
        %v2643 = vpop.f32.mrf.mxu0
        %v2644 = vadd.f32 %v2320, %v2643
        %v2645 = vpop.f32.mrf.mxu0
        %v2646 = vpop.f32.mrf.mxu0
        %v2647 = vadd.f32 %v2320, %v2646
        %v2648 = vpop.f32.mrf.mxu0
        %2649 = vmatprep.mubr.bf16.mxu0 0
        %2650 = vmatmul.mubr.bf16.gmra.mxu0 %v2316
        %v2651 = vpop.f32.mrf.mxu0
        %v2652 = vadd.f32 %v2320, %v2651
        %v2653 = vpop.f32.mrf.mxu0
        %v2654 = vpop.f32.mrf.mxu0
        %v2655 = vadd.f32 %v2320, %v2654
        %v2656 = vpop.f32.mrf.mxu0
        %2657 = vdwg.mxu0
        %v2658 = vmax.f32 %v2404, 0.0
        %v2659 = vmax.f32 %v2407, 0.0
        %v2660 = vmax.f32 %v2412, 0.0
        %v2661 = vmax.f32 %v2415, 0.0
        %v2662 = vmax.f32 %v2420, 0.0
        %v2663 = vmax.f32 %v2423, 0.0
        %v2664 = vmax.f32 %v2428, 0.0
        %v2665 = vmax.f32 %v2431, 0.0
        %v2666 = vmax.f32 %v2436, 0.0
        %v2667 = vmax.f32 %v2439, 0.0
        %v2668 = vmax.f32 %v2444, 0.0
        %v2669 = vmax.f32 %v2447, 0.0
        %v2670 = vmax.f32 %v2452, 0.0
        %v2671 = vmax.f32 %v2455, 0.0
        %v2672 = vmax.f32 %v2460, 0.0
        %v2673 = vmax.f32 %v2463, 0.0
        %v2674 = vmax.f32 %v2468, 0.0
        %v2675 = vmax.f32 %v2471, 0.0
        %v2676 = vmax.f32 %v2476, 0.0
        %v2677 = vmax.f32 %v2479, 0.0
        %v2678 = vmax.f32 %v2484, 0.0
        %v2679 = vmax.f32 %v2487, 0.0
        %v2680 = vmax.f32 %v2492, 0.0
        %v2681 = vmax.f32 %v2495, 0.0
        %v2682 = vmax.f32 %v2500, 0.0
        %v2683 = vmax.f32 %v2503, 0.0
        %v2684 = vmax.f32 %v2508, 0.0
        %v2685 = vmax.f32 %v2511, 0.0
        %v2686 = vmax.f32 %v2516, 0.0
        %v2687 = vmax.f32 %v2519, 0.0
        %v2688 = vmax.f32 %v2524, 0.0
        %v2689 = vmax.f32 %v2527, 0.0
        %v2690 = vmax.f32 %v2532, 0.0
        %v2691 = vmax.f32 %v2535, 0.0
        %v2692 = vmax.f32 %v2540, 0.0
        %v2693 = vmax.f32 %v2543, 0.0
        %v2694 = vmax.f32 %v2548, 0.0
        %v2695 = vmax.f32 %v2551, 0.0
        %v2696 = vmax.f32 %v2556, 0.0
        %v2697 = vmax.f32 %v2559, 0.0
        %v2698 = vmax.f32 %v2564, 0.0
        %v2699 = vmax.f32 %v2567, 0.0
        %v2700 = vmax.f32 %v2572, 0.0
        %v2701 = vmax.f32 %v2575, 0.0
        %v2702 = vmax.f32 %v2580, 0.0
        %v2703 = vmax.f32 %v2583, 0.0
        %v2704 = vmax.f32 %v2588, 0.0
        %v2705 = vmax.f32 %v2591, 0.0
        %v2706 = vmax.f32 %v2596, 0.0
        %v2707 = vmax.f32 %v2599, 0.0
        %v2708 = vmax.f32 %v2604, 0.0
        %v2709 = vmax.f32 %v2607, 0.0
        %v2710 = vmax.f32 %v2612, 0.0
        %v2711 = vmax.f32 %v2615, 0.0
        %v2712 = vmax.f32 %v2620, 0.0
        %v2713 = vmax.f32 %v2623, 0.0
        %v2714 = vmax.f32 %v2628, 0.0
        %v2715 = vmax.f32 %v2631, 0.0
        %v2716 = vmax.f32 %v2636, 0.0
        %v2717 = vmax.f32 %v2639, 0.0
        %v2718 = vmax.f32 %v2644, 0.0
        %v2719 = vmax.f32 %v2647, 0.0
        %v2720 = vmax.f32 %v2652, 0.0
        %v2721 = vmax.f32 %v2655, 0.0
        %v2722 = vpack.c.bf16 %v2659, %v2658
        %v2723 = vpack.c.bf16 %v2661, %v2660
        %v2724 = vpack.c.bf16 %v2663, %v2662
        %v2725 = vpack.c.bf16 %v2665, %v2664
        %v2726 = vpack.c.bf16 %v2667, %v2666
        %v2727 = vpack.c.bf16 %v2669, %v2668
        %v2728 = vpack.c.bf16 %v2671, %v2670
        %v2729 = vpack.c.bf16 %v2673, %v2672
        %v2730 = vpack.c.bf16 %v2675, %v2674
        %v2731 = vpack.c.bf16 %v2677, %v2676
        %v2732 = vpack.c.bf16 %v2679, %v2678
        %v2733 = vpack.c.bf16 %v2681, %v2680
        %v2734 = vpack.c.bf16 %v2683, %v2682
        %v2735 = vpack.c.bf16 %v2685, %v2684
        %v2736 = vpack.c.bf16 %v2687, %v2686
        %v2737 = vpack.c.bf16 %v2689, %v2688
        %v2738 = vpack.c.bf16 %v2691, %v2690
        %v2739 = vpack.c.bf16 %v2693, %v2692
        %v2740 = vpack.c.bf16 %v2695, %v2694
        %v2741 = vpack.c.bf16 %v2697, %v2696
        %v2742 = vpack.c.bf16 %v2699, %v2698
        %v2743 = vpack.c.bf16 %v2701, %v2700
        %v2744 = vpack.c.bf16 %v2703, %v2702
        %v2745 = vpack.c.bf16 %v2705, %v2704
        %v2746 = vpack.c.bf16 %v2707, %v2706
        %v2747 = vpack.c.bf16 %v2709, %v2708
        %v2748 = vpack.c.bf16 %v2711, %v2710
        %v2749 = vpack.c.bf16 %v2713, %v2712
        %v2750 = vpack.c.bf16 %v2715, %v2714
        %v2751 = vpack.c.bf16 %v2717, %v2716
        %v2752 = vpack.c.bf16 %v2719, %v2718
        %v2753 = vpack.c.bf16 %v2721, %v2720
        %v2754 = vlaneseq
        %v2755 = vshrl.u32 %v2754, 7
        %v2756 = vsub.s32 4, %v2755
        %v2757 = vrot.slane %v725, %v2756
        %v2774 = vunpack.c.l.b16 %v1395
        %v2775 = vunpack.c.l.b16 %v1396
        %v2776 = vunpack.c.l.b16 %v1397
        %v2777 = vunpack.c.l.b16 %v1398
        %v2778 = vunpack.c.l.b16 %v1399
        %v2779 = vunpack.c.l.b16 %v1400
        %v2780 = vunpack.c.l.b16 %v1401
        %v2781 = vunpack.c.l.b16 %v1402
        %v2782 = vunpack.c.l.b16 %v1403
        %v2783 = vunpack.c.l.b16 %v1404
        %v2784 = vunpack.c.l.b16 %v1405
        %v2785 = vunpack.c.l.b16 %v1406
        %v2786 = vunpack.c.l.b16 %v1407
        %v2787 = vunpack.c.l.b16 %v1408
        %v2788 = vunpack.c.l.b16 %v1409
        %v2789 = vunpack.c.l.b16 %v1410
        %v2790 = vpack.c.b16 %v2775, %v2774
        %v2791 = vpack.c.b16 %v2777, %v2776
        %v2792 = vpack.c.b16 %v2779, %v2778
        %v2793 = vpack.c.b16 %v2781, %v2780
        %v2794 = vpack.c.b16 %v2783, %v2782
        %v2795 = vpack.c.b16 %v2785, %v2784
        %v2796 = vpack.c.b16 %v2787, %v2786
        %v2797 = vpack.c.b16 %v2789, %v2788
        %2806 = vmatprep.subr.bf16.mxu0 0
        %2807 = vmatpush1.bf16.msra.mxu0 %v2797
        %2808 = vmatprep.subr.bf16.mxu0 0
        %2809 = vmatpush1.bf16.msra.mxu0 %v2796
        %2810 = vmatprep.subr.bf16.mxu0 0
        %2811 = vmatpush1.bf16.msra.mxu0 %v2795
        %2812 = vmatprep.subr.bf16.mxu0 0
        %2813 = vmatpush1.bf16.msra.mxu0 %v2794
        %2814 = vmatprep.subr.bf16.mxu0 0
        %2815 = vmatpush1.bf16.msra.mxu0 %v2793
        %2816 = vmatprep.subr.bf16.mxu0 0
        %2817 = vmatpush1.bf16.msra.mxu0 %v2792
        %2818 = vmatprep.subr.bf16.mxu0 0
        %2819 = vmatpush1.bf16.msra.mxu0 %v2791
        %2820 = vmatprep.subr.bf16.mxu0 0
        %2821 = vmatpush1.bf16.msra.mxu0 %v2790
        %2822 = vmatprep.subr.bf16.mxu0 0
        %2823 = vmatpush2.bf16.msra.mxu0 0
        %2824 = vmatprep.subr.bf16.mxu0 0
        %2825 = vmatpush2.bf16.msra.mxu0 0
        %2826 = vmatprep.subr.bf16.mxu0 0
        %2827 = vmatpush2.bf16.msra.mxu0 0
        %2828 = vmatprep.subr.bf16.mxu0 0
        %2829 = vmatpush2.bf16.msra.mxu0 0
        %2830 = vmatprep.subr.bf16.mxu0 0
        %2831 = vmatpush2.bf16.msra.mxu0 0
        %2832 = vmatprep.subr.bf16.mxu0 0
        %2833 = vmatpush2.bf16.msra.mxu0 0
        %2834 = vmatprep.subr.bf16.mxu0 0
        %2835 = vmatpush2.bf16.msra.mxu0 0
        %2836 = vmatprep.subr.bf16.mxu0 0
        %2837 = vmatpush2.bf16.msra.mxu0 0
        %2838 = vmatprep.mubr.bf16.mxu0 0
        %2839 = vmatmul.mubr.bf16.gmra.mxu0 %v2722
        %v2840 = vpop.f32.mrf.mxu0
        %v2841 = vadd.f32 %v2757, %v2840
        %v2842 = vpop.f32.mrf.mxu0
        %v2843 = vpop.f32.mrf.mxu0
        %v2844 = vadd.f32 %v2757, %v2843
        %v2845 = vpop.f32.mrf.mxu0
        %2846 = vmatprep.mubr.bf16.mxu0 0
        %2847 = vmatmul.mubr.bf16.gmra.mxu0 %v2723
        %v2848 = vpop.f32.mrf.mxu0
        %v2849 = vadd.f32 %v2757, %v2848
        %v2850 = vpop.f32.mrf.mxu0
        %v2851 = vpop.f32.mrf.mxu0
        %v2852 = vadd.f32 %v2757, %v2851
        %v2853 = vpop.f32.mrf.mxu0
        %2854 = vmatprep.mubr.bf16.mxu0 0
        %2855 = vmatmul.mubr.bf16.gmra.mxu0 %v2724
        %v2856 = vpop.f32.mrf.mxu0
        %v2857 = vadd.f32 %v2757, %v2856
        %v2858 = vpop.f32.mrf.mxu0
        %v2859 = vpop.f32.mrf.mxu0
        %v2860 = vadd.f32 %v2757, %v2859
        %v2861 = vpop.f32.mrf.mxu0
        %2862 = vmatprep.mubr.bf16.mxu0 0
        %2863 = vmatmul.mubr.bf16.gmra.mxu0 %v2725
        %v2864 = vpop.f32.mrf.mxu0
        %v2865 = vadd.f32 %v2757, %v2864
        %v2866 = vpop.f32.mrf.mxu0
        %v2867 = vpop.f32.mrf.mxu0
        %v2868 = vadd.f32 %v2757, %v2867
        %v2869 = vpop.f32.mrf.mxu0
        %2870 = vmatprep.mubr.bf16.mxu0 0
        %2871 = vmatmul.mubr.bf16.gmra.mxu0 %v2726
        %v2872 = vpop.f32.mrf.mxu0
        %v2873 = vadd.f32 %v2757, %v2872
        %v2874 = vpop.f32.mrf.mxu0
        %v2875 = vpop.f32.mrf.mxu0
        %v2876 = vadd.f32 %v2757, %v2875
        %v2877 = vpop.f32.mrf.mxu0
        %2878 = vmatprep.mubr.bf16.mxu0 0
        %2879 = vmatmul.mubr.bf16.gmra.mxu0 %v2727
        %v2880 = vpop.f32.mrf.mxu0
        %v2881 = vadd.f32 %v2757, %v2880
        %v2882 = vpop.f32.mrf.mxu0
        %v2883 = vpop.f32.mrf.mxu0
        %v2884 = vadd.f32 %v2757, %v2883
        %v2885 = vpop.f32.mrf.mxu0
        %2886 = vmatprep.mubr.bf16.mxu0 0
        %2887 = vmatmul.mubr.bf16.gmra.mxu0 %v2728
        %v2888 = vpop.f32.mrf.mxu0
        %v2889 = vadd.f32 %v2757, %v2888
        %v2890 = vpop.f32.mrf.mxu0
        %v2891 = vpop.f32.mrf.mxu0
        %v2892 = vadd.f32 %v2757, %v2891
        %v2893 = vpop.f32.mrf.mxu0
        %2894 = vmatprep.mubr.bf16.mxu0 0
        %2895 = vmatmul.mubr.bf16.gmra.mxu0 %v2729
        %v2896 = vpop.f32.mrf.mxu0
        %v2897 = vadd.f32 %v2757, %v2896
        %v2898 = vpop.f32.mrf.mxu0
        %v2899 = vpop.f32.mrf.mxu0
        %v2900 = vadd.f32 %v2757, %v2899
        %v2901 = vpop.f32.mrf.mxu0
        %2902 = vmatprep.mubr.bf16.mxu0 0
        %2903 = vmatmul.mubr.bf16.gmra.mxu0 %v2730
        %v2904 = vpop.f32.mrf.mxu0
        %v2905 = vadd.f32 %v2757, %v2904
        %v2906 = vpop.f32.mrf.mxu0
        %v2907 = vpop.f32.mrf.mxu0
        %v2908 = vadd.f32 %v2757, %v2907
        %v2909 = vpop.f32.mrf.mxu0
        %2910 = vmatprep.mubr.bf16.mxu0 0
        %2911 = vmatmul.mubr.bf16.gmra.mxu0 %v2731
        %v2912 = vpop.f32.mrf.mxu0
        %v2913 = vadd.f32 %v2757, %v2912
        %v2914 = vpop.f32.mrf.mxu0
        %v2915 = vpop.f32.mrf.mxu0
        %v2916 = vadd.f32 %v2757, %v2915
        %v2917 = vpop.f32.mrf.mxu0
        %2918 = vmatprep.mubr.bf16.mxu0 0
        %2919 = vmatmul.mubr.bf16.gmra.mxu0 %v2732
        %v2920 = vpop.f32.mrf.mxu0
        %v2921 = vadd.f32 %v2757, %v2920
        %v2922 = vpop.f32.mrf.mxu0
        %v2923 = vpop.f32.mrf.mxu0
        %v2924 = vadd.f32 %v2757, %v2923
        %v2925 = vpop.f32.mrf.mxu0
        %2926 = vmatprep.mubr.bf16.mxu0 0
        %2927 = vmatmul.mubr.bf16.gmra.mxu0 %v2733
        %v2928 = vpop.f32.mrf.mxu0
        %v2929 = vadd.f32 %v2757, %v2928
        %v2930 = vpop.f32.mrf.mxu0
        %v2931 = vpop.f32.mrf.mxu0
        %v2932 = vadd.f32 %v2757, %v2931
        %v2933 = vpop.f32.mrf.mxu0
        %2934 = vmatprep.mubr.bf16.mxu0 0
        %2935 = vmatmul.mubr.bf16.gmra.mxu0 %v2734
        %v2936 = vpop.f32.mrf.mxu0
        %v2937 = vadd.f32 %v2757, %v2936
        %v2938 = vpop.f32.mrf.mxu0
        %v2939 = vpop.f32.mrf.mxu0
        %v2940 = vadd.f32 %v2757, %v2939
        %v2941 = vpop.f32.mrf.mxu0
        %2942 = vmatprep.mubr.bf16.mxu0 0
        %2943 = vmatmul.mubr.bf16.gmra.mxu0 %v2735
        %v2944 = vpop.f32.mrf.mxu0
        %v2945 = vadd.f32 %v2757, %v2944
        %v2946 = vpop.f32.mrf.mxu0
        %v2947 = vpop.f32.mrf.mxu0
        %v2948 = vadd.f32 %v2757, %v2947
        %v2949 = vpop.f32.mrf.mxu0
        %2950 = vmatprep.mubr.bf16.mxu0 0
        %2951 = vmatmul.mubr.bf16.gmra.mxu0 %v2736
        %v2952 = vpop.f32.mrf.mxu0
        %v2953 = vadd.f32 %v2757, %v2952
        %v2954 = vpop.f32.mrf.mxu0
        %v2955 = vpop.f32.mrf.mxu0
        %v2956 = vadd.f32 %v2757, %v2955
        %v2957 = vpop.f32.mrf.mxu0
        %2958 = vmatprep.mubr.bf16.mxu0 0
        %2959 = vmatmul.mubr.bf16.gmra.mxu0 %v2737
        %v2960 = vpop.f32.mrf.mxu0
        %v2961 = vadd.f32 %v2757, %v2960
        %v2962 = vpop.f32.mrf.mxu0
        %v2963 = vpop.f32.mrf.mxu0
        %v2964 = vadd.f32 %v2757, %v2963
        %v2965 = vpop.f32.mrf.mxu0
        %2966 = vmatprep.mubr.bf16.mxu0 0
        %2967 = vmatmul.mubr.bf16.gmra.mxu0 %v2738
        %v2968 = vpop.f32.mrf.mxu0
        %v2969 = vadd.f32 %v2757, %v2968
        %v2970 = vpop.f32.mrf.mxu0
        %v2971 = vpop.f32.mrf.mxu0
        %v2972 = vadd.f32 %v2757, %v2971
        %v2973 = vpop.f32.mrf.mxu0
        %2974 = vmatprep.mubr.bf16.mxu0 0
        %2975 = vmatmul.mubr.bf16.gmra.mxu0 %v2739
        %v2976 = vpop.f32.mrf.mxu0
        %v2977 = vadd.f32 %v2757, %v2976
        %v2978 = vpop.f32.mrf.mxu0
        %v2979 = vpop.f32.mrf.mxu0
        %v2980 = vadd.f32 %v2757, %v2979
        %v2981 = vpop.f32.mrf.mxu0
        %2982 = vmatprep.mubr.bf16.mxu0 0
        %2983 = vmatmul.mubr.bf16.gmra.mxu0 %v2740
        %v2984 = vpop.f32.mrf.mxu0
        %v2985 = vadd.f32 %v2757, %v2984
        %v2986 = vpop.f32.mrf.mxu0
        %v2987 = vpop.f32.mrf.mxu0
        %v2988 = vadd.f32 %v2757, %v2987
        %v2989 = vpop.f32.mrf.mxu0
        %2990 = vmatprep.mubr.bf16.mxu0 0
        %2991 = vmatmul.mubr.bf16.gmra.mxu0 %v2741
        %v2992 = vpop.f32.mrf.mxu0
        %v2993 = vadd.f32 %v2757, %v2992
        %v2994 = vpop.f32.mrf.mxu0
        %v2995 = vpop.f32.mrf.mxu0
        %v2996 = vadd.f32 %v2757, %v2995
        %v2997 = vpop.f32.mrf.mxu0
        %2998 = vmatprep.mubr.bf16.mxu0 0
        %2999 = vmatmul.mubr.bf16.gmra.mxu0 %v2742
        %v3000 = vpop.f32.mrf.mxu0
        %v3001 = vadd.f32 %v2757, %v3000
        %v3002 = vpop.f32.mrf.mxu0
        %v3003 = vpop.f32.mrf.mxu0
        %v3004 = vadd.f32 %v2757, %v3003
        %v3005 = vpop.f32.mrf.mxu0
        %3006 = vmatprep.mubr.bf16.mxu0 0
        %3007 = vmatmul.mubr.bf16.gmra.mxu0 %v2743
        %v3008 = vpop.f32.mrf.mxu0
        %v3009 = vadd.f32 %v2757, %v3008
        %v3010 = vpop.f32.mrf.mxu0
        %v3011 = vpop.f32.mrf.mxu0
        %v3012 = vadd.f32 %v2757, %v3011
        %v3013 = vpop.f32.mrf.mxu0
        %3014 = vmatprep.mubr.bf16.mxu0 0
        %3015 = vmatmul.mubr.bf16.gmra.mxu0 %v2744
        %v3016 = vpop.f32.mrf.mxu0
        %v3017 = vadd.f32 %v2757, %v3016
        %v3018 = vpop.f32.mrf.mxu0
        %v3019 = vpop.f32.mrf.mxu0
        %v3020 = vadd.f32 %v2757, %v3019
        %v3021 = vpop.f32.mrf.mxu0
        %3022 = vmatprep.mubr.bf16.mxu0 0
        %3023 = vmatmul.mubr.bf16.gmra.mxu0 %v2745
        %v3024 = vpop.f32.mrf.mxu0
        %v3025 = vadd.f32 %v2757, %v3024
        %v3026 = vpop.f32.mrf.mxu0
        %v3027 = vpop.f32.mrf.mxu0
        %v3028 = vadd.f32 %v2757, %v3027
        %v3029 = vpop.f32.mrf.mxu0
        %3030 = vmatprep.mubr.bf16.mxu0 0
        %3031 = vmatmul.mubr.bf16.gmra.mxu0 %v2746
        %v3032 = vpop.f32.mrf.mxu0
        %v3033 = vadd.f32 %v2757, %v3032
        %v3034 = vpop.f32.mrf.mxu0
        %v3035 = vpop.f32.mrf.mxu0
        %v3036 = vadd.f32 %v2757, %v3035
        %v3037 = vpop.f32.mrf.mxu0
        %3038 = vmatprep.mubr.bf16.mxu0 0
        %3039 = vmatmul.mubr.bf16.gmra.mxu0 %v2747
        %v3040 = vpop.f32.mrf.mxu0
        %v3041 = vadd.f32 %v2757, %v3040
        %v3042 = vpop.f32.mrf.mxu0
        %v3043 = vpop.f32.mrf.mxu0
        %v3044 = vadd.f32 %v2757, %v3043
        %v3045 = vpop.f32.mrf.mxu0
        %3046 = vmatprep.mubr.bf16.mxu0 0
        %3047 = vmatmul.mubr.bf16.gmra.mxu0 %v2748
        %v3048 = vpop.f32.mrf.mxu0
        %v3049 = vadd.f32 %v2757, %v3048
        %v3050 = vpop.f32.mrf.mxu0
        %v3051 = vpop.f32.mrf.mxu0
        %v3052 = vadd.f32 %v2757, %v3051
        %v3053 = vpop.f32.mrf.mxu0
        %3054 = vmatprep.mubr.bf16.mxu0 0
        %3055 = vmatmul.mubr.bf16.gmra.mxu0 %v2749
        %v3056 = vpop.f32.mrf.mxu0
        %v3057 = vadd.f32 %v2757, %v3056
        %v3058 = vpop.f32.mrf.mxu0
        %v3059 = vpop.f32.mrf.mxu0
        %v3060 = vadd.f32 %v2757, %v3059
        %v3061 = vpop.f32.mrf.mxu0
        %3062 = vmatprep.mubr.bf16.mxu0 0
        %3063 = vmatmul.mubr.bf16.gmra.mxu0 %v2750
        %v3064 = vpop.f32.mrf.mxu0
        %v3065 = vadd.f32 %v2757, %v3064
        %v3066 = vpop.f32.mrf.mxu0
        %v3067 = vpop.f32.mrf.mxu0
        %v3068 = vadd.f32 %v2757, %v3067
        %v3069 = vpop.f32.mrf.mxu0
        %3070 = vmatprep.mubr.bf16.mxu0 0
        %3071 = vmatmul.mubr.bf16.gmra.mxu0 %v2751
        %v3072 = vpop.f32.mrf.mxu0
        %v3073 = vadd.f32 %v2757, %v3072
        %v3074 = vpop.f32.mrf.mxu0
        %v3075 = vpop.f32.mrf.mxu0
        %v3076 = vadd.f32 %v2757, %v3075
        %v3077 = vpop.f32.mrf.mxu0
        %3078 = vmatprep.mubr.bf16.mxu0 0
        %3079 = vmatmul.mubr.bf16.gmra.mxu0 %v2752
        %v3080 = vpop.f32.mrf.mxu0
        %v3081 = vadd.f32 %v2757, %v3080
        %v3082 = vpop.f32.mrf.mxu0
        %v3083 = vpop.f32.mrf.mxu0
        %v3084 = vadd.f32 %v2757, %v3083
        %v3085 = vpop.f32.mrf.mxu0
        %3086 = vmatprep.mubr.bf16.mxu0 0
        %3087 = vmatmul.mubr.bf16.gmra.mxu0 %v2753
        %v3088 = vpop.f32.mrf.mxu0
        %v3089 = vadd.f32 %v2757, %v3088
        %v3090 = vpop.f32.mrf.mxu0
        %v3091 = vpop.f32.mrf.mxu0
        %v3092 = vadd.f32 %v2757, %v3091
        %v3093 = vpop.f32.mrf.mxu0
        %3094 = vdwg.mxu0
        %v3095 = vmax.f32 %v2841, 0.0
        %v3096 = vmax.f32 %v2844, 0.0
        %v3097 = vmax.f32 %v2849, 0.0
        %v3098 = vmax.f32 %v2852, 0.0
        %v3099 = vmax.f32 %v2857, 0.0
        %v3100 = vmax.f32 %v2860, 0.0
        %v3101 = vmax.f32 %v2865, 0.0
        %v3102 = vmax.f32 %v2868, 0.0
        %v3103 = vmax.f32 %v2873, 0.0
        %v3104 = vmax.f32 %v2876, 0.0
        %v3105 = vmax.f32 %v2881, 0.0
        %v3106 = vmax.f32 %v2884, 0.0
        %v3107 = vmax.f32 %v2889, 0.0
        %v3108 = vmax.f32 %v2892, 0.0
        %v3109 = vmax.f32 %v2897, 0.0
        %v3110 = vmax.f32 %v2900, 0.0
        %v3111 = vmax.f32 %v2905, 0.0
        %v3112 = vmax.f32 %v2908, 0.0
        %v3113 = vmax.f32 %v2913, 0.0
        %v3114 = vmax.f32 %v2916, 0.0
        %v3115 = vmax.f32 %v2921, 0.0
        %v3116 = vmax.f32 %v2924, 0.0
        %v3117 = vmax.f32 %v2929, 0.0
        %v3118 = vmax.f32 %v2932, 0.0
        %v3119 = vmax.f32 %v2937, 0.0
        %v3120 = vmax.f32 %v2940, 0.0
        %v3121 = vmax.f32 %v2945, 0.0
        %v3122 = vmax.f32 %v2948, 0.0
        %v3123 = vmax.f32 %v2953, 0.0
        %v3124 = vmax.f32 %v2956, 0.0
        %v3125 = vmax.f32 %v2961, 0.0
        %v3126 = vmax.f32 %v2964, 0.0
        %v3127 = vmax.f32 %v2969, 0.0
        %v3128 = vmax.f32 %v2972, 0.0
        %v3129 = vmax.f32 %v2977, 0.0
        %v3130 = vmax.f32 %v2980, 0.0
        %v3131 = vmax.f32 %v2985, 0.0
        %v3132 = vmax.f32 %v2988, 0.0
        %v3133 = vmax.f32 %v2993, 0.0
        %v3134 = vmax.f32 %v2996, 0.0
        %v3135 = vmax.f32 %v3001, 0.0
        %v3136 = vmax.f32 %v3004, 0.0
        %v3137 = vmax.f32 %v3009, 0.0
        %v3138 = vmax.f32 %v3012, 0.0
        %v3139 = vmax.f32 %v3017, 0.0
        %v3140 = vmax.f32 %v3020, 0.0
        %v3141 = vmax.f32 %v3025, 0.0
        %v3142 = vmax.f32 %v3028, 0.0
        %v3143 = vmax.f32 %v3033, 0.0
        %v3144 = vmax.f32 %v3036, 0.0
        %v3145 = vmax.f32 %v3041, 0.0
        %v3146 = vmax.f32 %v3044, 0.0
        %v3147 = vmax.f32 %v3049, 0.0
        %v3148 = vmax.f32 %v3052, 0.0
        %v3149 = vmax.f32 %v3057, 0.0
        %v3150 = vmax.f32 %v3060, 0.0
        %v3151 = vmax.f32 %v3065, 0.0
        %v3152 = vmax.f32 %v3068, 0.0
        %v3153 = vmax.f32 %v3073, 0.0
        %v3154 = vmax.f32 %v3076, 0.0
        %v3155 = vmax.f32 %v3081, 0.0
        %v3156 = vmax.f32 %v3084, 0.0
        %v3157 = vmax.f32 %v3089, 0.0
        %v3158 = vmax.f32 %v3092, 0.0
        %v3159 = vpack.c.bf16 %v3096, %v3095
        %v3160 = vpack.c.bf16 %v3098, %v3097
        %v3161 = vpack.c.bf16 %v3100, %v3099
        %v3162 = vpack.c.bf16 %v3102, %v3101
        %v3163 = vpack.c.bf16 %v3104, %v3103
        %v3164 = vpack.c.bf16 %v3106, %v3105
        %v3165 = vpack.c.bf16 %v3108, %v3107
        %v3166 = vpack.c.bf16 %v3110, %v3109
        %v3167 = vpack.c.bf16 %v3112, %v3111
        %v3168 = vpack.c.bf16 %v3114, %v3113
        %v3169 = vpack.c.bf16 %v3116, %v3115
        %v3170 = vpack.c.bf16 %v3118, %v3117
        %v3171 = vpack.c.bf16 %v3120, %v3119
        %v3172 = vpack.c.bf16 %v3122, %v3121
        %v3173 = vpack.c.bf16 %v3124, %v3123
        %v3174 = vpack.c.bf16 %v3126, %v3125
        %v3175 = vpack.c.bf16 %v3128, %v3127
        %v3176 = vpack.c.bf16 %v3130, %v3129
        %v3177 = vpack.c.bf16 %v3132, %v3131
        %v3178 = vpack.c.bf16 %v3134, %v3133
        %v3179 = vpack.c.bf16 %v3136, %v3135
        %v3180 = vpack.c.bf16 %v3138, %v3137
        %v3181 = vpack.c.bf16 %v3140, %v3139
        %v3182 = vpack.c.bf16 %v3142, %v3141
        %v3183 = vpack.c.bf16 %v3144, %v3143
        %v3184 = vpack.c.bf16 %v3146, %v3145
        %v3185 = vpack.c.bf16 %v3148, %v3147
        %v3186 = vpack.c.bf16 %v3150, %v3149
        %v3187 = vpack.c.bf16 %v3152, %v3151
        %v3188 = vpack.c.bf16 %v3154, %v3153
        %v3189 = vpack.c.bf16 %v3156, %v3155
        %v3190 = vpack.c.bf16 %v3158, %v3157
        %v3191 = vld [vmem:[%s3] sm:$0xf]
        %v3192 = vld [vmem:[%s3 + $0x4] sm:$0xf]
        %v3193 = vld [vmem:[%s3 + $0x8] sm:$0xf]
        %v3194 = vld [vmem:[%s3 + $0xc] sm:$0xf]
        %v3195 = vld [vmem:[%s3 + $0x10] sm:$0xf]
        %v3196 = vld [vmem:[%s3 + $0x14] sm:$0xf]
        %v3197 = vld [vmem:[%s3 + $0x18] sm:$0xf]
        %v3198 = vld [vmem:[%s3 + $0x1c] sm:$0xf]
        %v3199 = vld [vmem:[%s3 + $0x20] sm:$0xf]
        %v3200 = vld [vmem:[%s3 + $0x24] sm:$0xf]
        %v3201 = vld [vmem:[%s3 + $0x28] sm:$0xf]
        %v3202 = vld [vmem:[%s3 + $0x2c] sm:$0xf]
        %v3203 = vld [vmem:[%s3 + $0x30] sm:$0xf]
        %v3204 = vld [vmem:[%s3 + $0x34] sm:$0xf]
        %v3205 = vld [vmem:[%s3 + $0x38] sm:$0xf]
        %v3206 = vld [vmem:[%s3 + $0x3c] sm:$0xf]
        %v3207 = vld [vmem:[%s3 + $0x40] sm:$0xf]
        %v3208 = vld [vmem:[%s3 + $0x44] sm:$0xf]
        %v3209 = vld [vmem:[%s3 + $0x48] sm:$0xf]
        %v3210 = vld [vmem:[%s3 + $0x4c] sm:$0xf]
        %v3211 = vld [vmem:[%s3 + $0x50] sm:$0xf]
        %v3212 = vld [vmem:[%s3 + $0x54] sm:$0xf]
        %v3213 = vld [vmem:[%s3 + $0x58] sm:$0xf]
        %v3214 = vld [vmem:[%s3 + $0x5c] sm:$0xf]
        %v3215 = vld [vmem:[%s3 + $0x60] sm:$0xf]
        %v3216 = vld [vmem:[%s3 + $0x64] sm:$0xf]
        %v3217 = vld [vmem:[%s3 + $0x68] sm:$0xf]
        %v3218 = vld [vmem:[%s3 + $0x6c] sm:$0xf]
        %v3219 = vld [vmem:[%s3 + $0x70] sm:$0xf]
        %v3220 = vld [vmem:[%s3 + $0x74] sm:$0xf]
        %v3221 = vld [vmem:[%s3 + $0x78] sm:$0xf]
        %v3222 = vld [vmem:[%s3 + $0x7c] sm:$0xf]
        %v3223 = vlaneseq
        %v3224 = vshrl.u32 %v3223, 7
        %v3225 = vsub.s32 5, %v3224
        %v3226 = vrot.slane %v725, %v3225
        %v3259 = vunpack.c.l.b16 %v3191
        %v3260 = vunpack.c.l.b16 %v3192
        %v3261 = vunpack.c.l.b16 %v3193
        %v3262 = vunpack.c.l.b16 %v3194
        %v3263 = vunpack.c.l.b16 %v3195
        %v3264 = vunpack.c.l.b16 %v3196
        %v3265 = vunpack.c.l.b16 %v3197
        %v3266 = vunpack.c.l.b16 %v3198
        %v3267 = vunpack.c.l.b16 %v3199
        %v3268 = vunpack.c.l.b16 %v3200
        %v3269 = vunpack.c.l.b16 %v3201
        %v3270 = vunpack.c.l.b16 %v3202
        %v3271 = vunpack.c.l.b16 %v3203
        %v3272 = vunpack.c.l.b16 %v3204
        %v3273 = vunpack.c.l.b16 %v3205
        %v3274 = vunpack.c.l.b16 %v3206
        %v3275 = vunpack.c.l.b16 %v3207
        %v3276 = vunpack.c.l.b16 %v3208
        %v3277 = vunpack.c.l.b16 %v3209
        %v3278 = vunpack.c.l.b16 %v3210
        %v3279 = vunpack.c.l.b16 %v3211
        %v3280 = vunpack.c.l.b16 %v3212
        %v3281 = vunpack.c.l.b16 %v3213
        %v3282 = vunpack.c.l.b16 %v3214
        %v3283 = vunpack.c.l.b16 %v3215
        %v3284 = vunpack.c.l.b16 %v3216
        %v3285 = vunpack.c.l.b16 %v3217
        %v3286 = vunpack.c.l.b16 %v3218
        %v3287 = vunpack.c.l.b16 %v3219
        %v3288 = vunpack.c.l.b16 %v3220
        %v3289 = vunpack.c.l.b16 %v3221
        %v3290 = vunpack.c.l.b16 %v3222
        %v3291 = vpack.c.b16 %v3260, %v3259
        %v3292 = vpack.c.b16 %v3262, %v3261
        %v3293 = vpack.c.b16 %v3264, %v3263
        %v3294 = vpack.c.b16 %v3266, %v3265
        %v3295 = vpack.c.b16 %v3268, %v3267
        %v3296 = vpack.c.b16 %v3270, %v3269
        %v3297 = vpack.c.b16 %v3272, %v3271
        %v3298 = vpack.c.b16 %v3274, %v3273
        %v3299 = vpack.c.b16 %v3276, %v3275
        %v3300 = vpack.c.b16 %v3278, %v3277
        %v3301 = vpack.c.b16 %v3280, %v3279
        %v3302 = vpack.c.b16 %v3282, %v3281
        %v3303 = vpack.c.b16 %v3284, %v3283
        %v3304 = vpack.c.b16 %v3286, %v3285
        %v3305 = vpack.c.b16 %v3288, %v3287
        %v3306 = vpack.c.b16 %v3290, %v3289
        %3323 = vmatprep.subr.bf16.mxu0 0
        %3324 = vmatpush1.bf16.msra.mxu0 %v3298
        %3325 = vmatprep.subr.bf16.mxu0 0
        %3326 = vmatpush1.bf16.msra.mxu0 %v3297
        %3327 = vmatprep.subr.bf16.mxu0 0
        %3328 = vmatpush1.bf16.msra.mxu0 %v3296
        %3329 = vmatprep.subr.bf16.mxu0 0
        %3330 = vmatpush1.bf16.msra.mxu0 %v3295
        %3331 = vmatprep.subr.bf16.mxu0 0
        %3332 = vmatpush1.bf16.msra.mxu0 %v3294
        %3333 = vmatprep.subr.bf16.mxu0 0
        %3334 = vmatpush1.bf16.msra.mxu0 %v3293
        %3335 = vmatprep.subr.bf16.mxu0 0
        %3336 = vmatpush1.bf16.msra.mxu0 %v3292
        %3337 = vmatprep.subr.bf16.mxu0 0
        %3338 = vmatpush1.bf16.msra.mxu0 %v3291
        %3339 = vmatprep.subr.bf16.mxu0 0
        %3340 = vmatpush2.bf16.msra.mxu0 %v3306
        %3341 = vmatprep.subr.bf16.mxu0 0
        %3342 = vmatpush2.bf16.msra.mxu0 %v3305
        %3343 = vmatprep.subr.bf16.mxu0 0
        %3344 = vmatpush2.bf16.msra.mxu0 %v3304
        %3345 = vmatprep.subr.bf16.mxu0 0
        %3346 = vmatpush2.bf16.msra.mxu0 %v3303
        %3347 = vmatprep.subr.bf16.mxu0 0
        %3348 = vmatpush2.bf16.msra.mxu0 %v3302
        %3349 = vmatprep.subr.bf16.mxu0 0
        %3350 = vmatpush2.bf16.msra.mxu0 %v3301
        %3351 = vmatprep.subr.bf16.mxu0 0
        %3352 = vmatpush2.bf16.msra.mxu0 %v3300
        %3353 = vmatprep.subr.bf16.mxu0 0
        %3354 = vmatpush2.bf16.msra.mxu0 %v3299
        %3355 = vmatprep.mubr.bf16.mxu0 %v3167
        %3356 = vmatmul.mubr.bf16.gmra.mxu0 %v3159
        %v3357 = vpop.f32.mrf.mxu0
        %v3358 = vadd.f32 %v3226, %v3357
        %v3359 = vpop.f32.mrf.mxu0
        %v3360 = vpop.f32.mrf.mxu0
        %v3361 = vadd.f32 %v3226, %v3360
        %v3362 = vpop.f32.mrf.mxu0
        %3363 = vmatprep.mubr.bf16.mxu0 %v3168
        %3364 = vmatmul.mubr.bf16.gmra.mxu0 %v3160
        %v3365 = vpop.f32.mrf.mxu0
        %v3366 = vadd.f32 %v3226, %v3365
        %v3367 = vpop.f32.mrf.mxu0
        %v3368 = vpop.f32.mrf.mxu0
        %v3369 = vadd.f32 %v3226, %v3368
        %v3370 = vpop.f32.mrf.mxu0
        %3371 = vmatprep.mubr.bf16.mxu0 %v3169
        %3372 = vmatmul.mubr.bf16.gmra.mxu0 %v3161
        %v3373 = vpop.f32.mrf.mxu0
        %v3374 = vadd.f32 %v3226, %v3373
        %v3375 = vpop.f32.mrf.mxu0
        %v3376 = vpop.f32.mrf.mxu0
        %v3377 = vadd.f32 %v3226, %v3376
        %v3378 = vpop.f32.mrf.mxu0
        %3379 = vmatprep.mubr.bf16.mxu0 %v3170
        %3380 = vmatmul.mubr.bf16.gmra.mxu0 %v3162
        %v3381 = vpop.f32.mrf.mxu0
        %v3382 = vadd.f32 %v3226, %v3381
        %v3383 = vpop.f32.mrf.mxu0
        %v3384 = vpop.f32.mrf.mxu0
        %v3385 = vadd.f32 %v3226, %v3384
        %v3386 = vpop.f32.mrf.mxu0
        %3387 = vmatprep.mubr.bf16.mxu0 %v3171
        %3388 = vmatmul.mubr.bf16.gmra.mxu0 %v3163
        %v3389 = vpop.f32.mrf.mxu0
        %v3390 = vadd.f32 %v3226, %v3389
        %v3391 = vpop.f32.mrf.mxu0
        %v3392 = vpop.f32.mrf.mxu0
        %v3393 = vadd.f32 %v3226, %v3392
        %v3394 = vpop.f32.mrf.mxu0
        %3395 = vmatprep.mubr.bf16.mxu0 %v3172
        %3396 = vmatmul.mubr.bf16.gmra.mxu0 %v3164
        %v3397 = vpop.f32.mrf.mxu0
        %v3398 = vadd.f32 %v3226, %v3397
        %v3399 = vpop.f32.mrf.mxu0
        %v3400 = vpop.f32.mrf.mxu0
        %v3401 = vadd.f32 %v3226, %v3400
        %v3402 = vpop.f32.mrf.mxu0
        %3403 = vmatprep.mubr.bf16.mxu0 %v3173
        %3404 = vmatmul.mubr.bf16.gmra.mxu0 %v3165
        %v3405 = vpop.f32.mrf.mxu0
        %v3406 = vadd.f32 %v3226, %v3405
        %v3407 = vpop.f32.mrf.mxu0
        %v3408 = vpop.f32.mrf.mxu0
        %v3409 = vadd.f32 %v3226, %v3408
        %v3410 = vpop.f32.mrf.mxu0
        %3411 = vmatprep.mubr.bf16.mxu0 %v3174
        %3412 = vmatmul.mubr.bf16.gmra.mxu0 %v3166
        %v3413 = vpop.f32.mrf.mxu0
        %v3414 = vadd.f32 %v3226, %v3413
        %v3415 = vpop.f32.mrf.mxu0
        %v3416 = vpop.f32.mrf.mxu0
        %v3417 = vadd.f32 %v3226, %v3416
        %v3418 = vpop.f32.mrf.mxu0
        %3419 = vmatprep.mubr.bf16.mxu0 %v3175
        %3420 = vmatmul.mubr.bf16.gmra.mxu0 %v3167
        %v3421 = vpop.f32.mrf.mxu0
        %v3422 = vadd.f32 %v3226, %v3421
        %v3423 = vpop.f32.mrf.mxu0
        %v3424 = vpop.f32.mrf.mxu0
        %v3425 = vadd.f32 %v3226, %v3424
        %v3426 = vpop.f32.mrf.mxu0
        %3427 = vmatprep.mubr.bf16.mxu0 %v3176
        %3428 = vmatmul.mubr.bf16.gmra.mxu0 %v3168
        %v3429 = vpop.f32.mrf.mxu0
        %v3430 = vadd.f32 %v3226, %v3429
        %v3431 = vpop.f32.mrf.mxu0
        %v3432 = vpop.f32.mrf.mxu0
        %v3433 = vadd.f32 %v3226, %v3432
        %v3434 = vpop.f32.mrf.mxu0
        %3435 = vmatprep.mubr.bf16.mxu0 %v3177
        %3436 = vmatmul.mubr.bf16.gmra.mxu0 %v3169
        %v3437 = vpop.f32.mrf.mxu0
        %v3438 = vadd.f32 %v3226, %v3437
        %v3439 = vpop.f32.mrf.mxu0
        %v3440 = vpop.f32.mrf.mxu0
        %v3441 = vadd.f32 %v3226, %v3440
        %v3442 = vpop.f32.mrf.mxu0
        %3443 = vmatprep.mubr.bf16.mxu0 %v3178
        %3444 = vmatmul.mubr.bf16.gmra.mxu0 %v3170
        %v3445 = vpop.f32.mrf.mxu0
        %v3446 = vadd.f32 %v3226, %v3445
        %v3447 = vpop.f32.mrf.mxu0
        %v3448 = vpop.f32.mrf.mxu0
        %v3449 = vadd.f32 %v3226, %v3448
        %v3450 = vpop.f32.mrf.mxu0
        %3451 = vmatprep.mubr.bf16.mxu0 %v3179
        %3452 = vmatmul.mubr.bf16.gmra.mxu0 %v3171
        %v3453 = vpop.f32.mrf.mxu0
        %v3454 = vadd.f32 %v3226, %v3453
        %v3455 = vpop.f32.mrf.mxu0
        %v3456 = vpop.f32.mrf.mxu0
        %v3457 = vadd.f32 %v3226, %v3456
        %v3458 = vpop.f32.mrf.mxu0
        %3459 = vmatprep.mubr.bf16.mxu0 %v3180
        %3460 = vmatmul.mubr.bf16.gmra.mxu0 %v3172
        %v3461 = vpop.f32.mrf.mxu0
        %v3462 = vadd.f32 %v3226, %v3461
        %v3463 = vpop.f32.mrf.mxu0
        %v3464 = vpop.f32.mrf.mxu0
        %v3465 = vadd.f32 %v3226, %v3464
        %v3466 = vpop.f32.mrf.mxu0
        %3467 = vmatprep.mubr.bf16.mxu0 %v3181
        %3468 = vmatmul.mubr.bf16.gmra.mxu0 %v3173
        %v3469 = vpop.f32.mrf.mxu0
        %v3470 = vadd.f32 %v3226, %v3469
        %v3471 = vpop.f32.mrf.mxu0
        %v3472 = vpop.f32.mrf.mxu0
        %v3473 = vadd.f32 %v3226, %v3472
        %v3474 = vpop.f32.mrf.mxu0
        %3475 = vmatprep.mubr.bf16.mxu0 %v3182
        %3476 = vmatmul.mubr.bf16.gmra.mxu0 %v3174
        %v3477 = vpop.f32.mrf.mxu0
        %v3478 = vadd.f32 %v3226, %v3477
        %v3479 = vpop.f32.mrf.mxu0
        %v3480 = vpop.f32.mrf.mxu0
        %v3481 = vadd.f32 %v3226, %v3480
        %v3482 = vpop.f32.mrf.mxu0
        %3483 = vmatprep.mubr.bf16.mxu0 %v3183
        %3484 = vmatmul.mubr.bf16.gmra.mxu0 %v3175
        %v3485 = vpop.f32.mrf.mxu0
        %v3486 = vadd.f32 %v3226, %v3485
        %v3487 = vpop.f32.mrf.mxu0
        %v3488 = vpop.f32.mrf.mxu0
        %v3489 = vadd.f32 %v3226, %v3488
        %v3490 = vpop.f32.mrf.mxu0
        %3491 = vmatprep.mubr.bf16.mxu0 %v3184
        %3492 = vmatmul.mubr.bf16.gmra.mxu0 %v3176
        %v3493 = vpop.f32.mrf.mxu0
        %v3494 = vadd.f32 %v3226, %v3493
        %v3495 = vpop.f32.mrf.mxu0
        %v3496 = vpop.f32.mrf.mxu0
        %v3497 = vadd.f32 %v3226, %v3496
        %v3498 = vpop.f32.mrf.mxu0
        %3499 = vmatprep.mubr.bf16.mxu0 %v3185
        %3500 = vmatmul.mubr.bf16.gmra.mxu0 %v3177
        %v3501 = vpop.f32.mrf.mxu0
        %v3502 = vadd.f32 %v3226, %v3501
        %v3503 = vpop.f32.mrf.mxu0
        %v3504 = vpop.f32.mrf.mxu0
        %v3505 = vadd.f32 %v3226, %v3504
        %v3506 = vpop.f32.mrf.mxu0
        %3507 = vmatprep.mubr.bf16.mxu0 %v3186
        %3508 = vmatmul.mubr.bf16.gmra.mxu0 %v3178
        %v3509 = vpop.f32.mrf.mxu0
        %v3510 = vadd.f32 %v3226, %v3509
        %v3511 = vpop.f32.mrf.mxu0
        %v3512 = vpop.f32.mrf.mxu0
        %v3513 = vadd.f32 %v3226, %v3512
        %v3514 = vpop.f32.mrf.mxu0
        %3515 = vmatprep.mubr.bf16.mxu0 %v3187
        %3516 = vmatmul.mubr.bf16.gmra.mxu0 %v3179
        %v3517 = vpop.f32.mrf.mxu0
        %v3518 = vadd.f32 %v3226, %v3517
        %v3519 = vpop.f32.mrf.mxu0
        %v3520 = vpop.f32.mrf.mxu0
        %v3521 = vadd.f32 %v3226, %v3520
        %v3522 = vpop.f32.mrf.mxu0
        %3523 = vmatprep.mubr.bf16.mxu0 %v3188
        %3524 = vmatmul.mubr.bf16.gmra.mxu0 %v3180
        %v3525 = vpop.f32.mrf.mxu0
        %v3526 = vadd.f32 %v3226, %v3525
        %v3527 = vpop.f32.mrf.mxu0
        %v3528 = vpop.f32.mrf.mxu0
        %v3529 = vadd.f32 %v3226, %v3528
        %v3530 = vpop.f32.mrf.mxu0
        %3531 = vmatprep.mubr.bf16.mxu0 %v3189
        %3532 = vmatmul.mubr.bf16.gmra.mxu0 %v3181
        %v3533 = vpop.f32.mrf.mxu0
        %v3534 = vadd.f32 %v3226, %v3533
        %v3535 = vpop.f32.mrf.mxu0
        %v3536 = vpop.f32.mrf.mxu0
        %v3537 = vadd.f32 %v3226, %v3536
        %v3538 = vpop.f32.mrf.mxu0
        %3539 = vmatprep.mubr.bf16.mxu0 %v3190
        %3540 = vmatmul.mubr.bf16.gmra.mxu0 %v3182
        %v3541 = vpop.f32.mrf.mxu0
        %v3542 = vadd.f32 %v3226, %v3541
        %v3543 = vpop.f32.mrf.mxu0
        %v3544 = vpop.f32.mrf.mxu0
        %v3545 = vadd.f32 %v3226, %v3544
        %v3546 = vpop.f32.mrf.mxu0
        %3547 = vdwg.mxu0
        %v3548 = vmax.f32 %v3358, 0.0
        %v3549 = vmax.f32 %v3361, 0.0
        %v3550 = vmax.f32 %v3366, 0.0
        %v3551 = vmax.f32 %v3369, 0.0
        %v3552 = vmax.f32 %v3374, 0.0
        %v3553 = vmax.f32 %v3377, 0.0
        %v3554 = vmax.f32 %v3382, 0.0
        %v3555 = vmax.f32 %v3385, 0.0
        %v3556 = vmax.f32 %v3390, 0.0
        %v3557 = vmax.f32 %v3393, 0.0
        %v3558 = vmax.f32 %v3398, 0.0
        %v3559 = vmax.f32 %v3401, 0.0
        %v3560 = vmax.f32 %v3406, 0.0
        %v3561 = vmax.f32 %v3409, 0.0
        %v3562 = vmax.f32 %v3414, 0.0
        %v3563 = vmax.f32 %v3417, 0.0
        %v3564 = vmax.f32 %v3422, 0.0
        %v3565 = vmax.f32 %v3425, 0.0
        %v3566 = vmax.f32 %v3430, 0.0
        %v3567 = vmax.f32 %v3433, 0.0
        %v3568 = vmax.f32 %v3438, 0.0
        %v3569 = vmax.f32 %v3441, 0.0
        %v3570 = vmax.f32 %v3446, 0.0
        %v3571 = vmax.f32 %v3449, 0.0
        %v3572 = vmax.f32 %v3454, 0.0
        %v3573 = vmax.f32 %v3457, 0.0
        %v3574 = vmax.f32 %v3462, 0.0
        %v3575 = vmax.f32 %v3465, 0.0
        %v3576 = vmax.f32 %v3470, 0.0
        %v3577 = vmax.f32 %v3473, 0.0
        %v3578 = vmax.f32 %v3478, 0.0
        %v3579 = vmax.f32 %v3481, 0.0
        %v3580 = vmax.f32 %v3486, 0.0
        %v3581 = vmax.f32 %v3489, 0.0
        %v3582 = vmax.f32 %v3494, 0.0
        %v3583 = vmax.f32 %v3497, 0.0
        %v3584 = vmax.f32 %v3502, 0.0
        %v3585 = vmax.f32 %v3505, 0.0
        %v3586 = vmax.f32 %v3510, 0.0
        %v3587 = vmax.f32 %v3513, 0.0
        %v3588 = vmax.f32 %v3518, 0.0
        %v3589 = vmax.f32 %v3521, 0.0
        %v3590 = vmax.f32 %v3526, 0.0
        %v3591 = vmax.f32 %v3529, 0.0
        %v3592 = vmax.f32 %v3534, 0.0
        %v3593 = vmax.f32 %v3537, 0.0
        %v3594 = vmax.f32 %v3542, 0.0
        %v3595 = vmax.f32 %v3545, 0.0
        %v3596 = vld [vmem:[%s4] sm:$0xf]
        %v3597 = vld [vmem:[%s4 + $0x4] sm:$0xf]
        %v3598 = vld [vmem:[%s4 + $0x8] sm:$0xf]
        %v3599 = vld [vmem:[%s4 + $0xc] sm:$0xf]
        %v3600 = vld [vmem:[%s4 + $0x10] sm:$0xf]
        %v3601 = vld [vmem:[%s4 + $0x14] sm:$0xf]
        %v3602 = vld [vmem:[%s4 + $0x18] sm:$0xf]
        %v3603 = vld [vmem:[%s4 + $0x1c] sm:$0xf]
        %v3604 = vld [vmem:[%s4 + $0x20] sm:$0xf]
        %v3605 = vld [vmem:[%s4 + $0x24] sm:$0xf]
        %v3606 = vld [vmem:[%s4 + $0x28] sm:$0xf]
        %v3607 = vld [vmem:[%s4 + $0x2c] sm:$0xf]
        %v3608 = vld [vmem:[%s4 + $0x30] sm:$0xf]
        %v3609 = vld [vmem:[%s4 + $0x34] sm:$0xf]
        %v3610 = vld [vmem:[%s4 + $0x38] sm:$0xf]
        %v3611 = vld [vmem:[%s4 + $0x3c] sm:$0xf]
        %v3612 = vld [vmem:[%s4 + $0x40] sm:$0xf]
        %v3613 = vld [vmem:[%s4 + $0x44] sm:$0xf]
        %v3614 = vld [vmem:[%s4 + $0x48] sm:$0xf]
        %v3615 = vld [vmem:[%s4 + $0x4c] sm:$0xf]
        %v3616 = vld [vmem:[%s4 + $0x50] sm:$0xf]
        %v3617 = vld [vmem:[%s4 + $0x54] sm:$0xf]
        %v3618 = vld [vmem:[%s4 + $0x58] sm:$0xf]
        %v3619 = vld [vmem:[%s4 + $0x5c] sm:$0xf]
        %v3620 = vld [vmem:[%s4 + $0x60] sm:$0xf]
        %v3621 = vld [vmem:[%s4 + $0x64] sm:$0xf]
        %v3622 = vld [vmem:[%s4 + $0x68] sm:$0xf]
        %v3623 = vld [vmem:[%s4 + $0x6c] sm:$0xf]
        %v3624 = vld [vmem:[%s4 + $0x70] sm:$0xf]
        %v3625 = vld [vmem:[%s4 + $0x74] sm:$0xf]
        %v3626 = vld [vmem:[%s4 + $0x78] sm:$0xf]
        %v3627 = vld [vmem:[%s4 + $0x7c] sm:$0xf]
        %v3628 = vpack.c.bf16 %v3549, %v3548
        %v3629 = vpack.c.bf16 %v3551, %v3550
        %v3630 = vpack.c.bf16 %v3553, %v3552
        %v3631 = vpack.c.bf16 %v3555, %v3554
        %v3632 = vpack.c.bf16 %v3557, %v3556
        %v3633 = vpack.c.bf16 %v3559, %v3558
        %v3634 = vpack.c.bf16 %v3561, %v3560
        %v3635 = vpack.c.bf16 %v3563, %v3562
        %v3636 = vpack.c.bf16 %v3565, %v3564
        %v3637 = vpack.c.bf16 %v3567, %v3566
        %v3638 = vpack.c.bf16 %v3569, %v3568
        %v3639 = vpack.c.bf16 %v3571, %v3570
        %v3640 = vpack.c.bf16 %v3573, %v3572
        %v3641 = vpack.c.bf16 %v3575, %v3574
        %v3642 = vpack.c.bf16 %v3577, %v3576
        %v3643 = vpack.c.bf16 %v3579, %v3578
        %v3644 = vpack.c.bf16 %v3581, %v3580
        %v3645 = vpack.c.bf16 %v3583, %v3582
        %v3646 = vpack.c.bf16 %v3585, %v3584
        %v3647 = vpack.c.bf16 %v3587, %v3586
        %v3648 = vpack.c.bf16 %v3589, %v3588
        %v3649 = vpack.c.bf16 %v3591, %v3590
        %v3650 = vpack.c.bf16 %v3593, %v3592
        %v3651 = vpack.c.bf16 %v3595, %v3594
        %v3668 = vunpack.c.l.b16 %v3596
        %v3669 = vunpack.c.l.b16 %v3597
        %v3670 = vunpack.c.l.b16 %v3598
        %v3671 = vunpack.c.l.b16 %v3599
        %v3672 = vunpack.c.l.b16 %v3600
        %v3673 = vunpack.c.l.b16 %v3601
        %v3674 = vunpack.c.l.b16 %v3602
        %v3675 = vunpack.c.l.b16 %v3603
        %v3676 = vunpack.c.l.b16 %v3604
        %v3677 = vunpack.c.l.b16 %v3605
        %v3678 = vunpack.c.l.b16 %v3606
        %v3679 = vunpack.c.l.b16 %v3607
        %v3680 = vunpack.c.l.b16 %v3608
        %v3681 = vunpack.c.l.b16 %v3609
        %v3682 = vunpack.c.l.b16 %v3610
        %v3683 = vunpack.c.l.b16 %v3611
        %v3684 = vpack.c.b16 %v3669, %v3668
        %v3685 = vpack.c.b16 %v3671, %v3670
        %v3686 = vpack.c.b16 %v3673, %v3672
        %v3687 = vpack.c.b16 %v3675, %v3674
        %v3688 = vpack.c.b16 %v3677, %v3676
        %v3689 = vpack.c.b16 %v3679, %v3678
        %v3690 = vpack.c.b16 %v3681, %v3680
        %v3691 = vpack.c.b16 %v3683, %v3682
        %3700 = vmatprep.subr.bf16.mxu0 0
        %3701 = vmatpush1.bf16.msra.mxu0 %v3691
        %3702 = vmatprep.subr.bf16.mxu0 0
        %3703 = vmatpush1.bf16.msra.mxu0 %v3690
        %3704 = vmatprep.subr.bf16.mxu0 0
        %3705 = vmatpush1.bf16.msra.mxu0 %v3689
        %3706 = vmatprep.subr.bf16.mxu0 0
        %3707 = vmatpush1.bf16.msra.mxu0 %v3688
        %3708 = vmatprep.subr.bf16.mxu0 0
        %3709 = vmatpush1.bf16.msra.mxu0 %v3687
        %3710 = vmatprep.subr.bf16.mxu0 0
        %3711 = vmatpush1.bf16.msra.mxu0 %v3686
        %3712 = vmatprep.subr.bf16.mxu0 0
        %3713 = vmatpush1.bf16.msra.mxu0 %v3685
        %3714 = vmatprep.subr.bf16.mxu0 0
        %3715 = vmatpush1.bf16.msra.mxu0 %v3684
        %3716 = vmatprep.subr.bf16.mxu0 0
        %3717 = vmatpush2.bf16.msra.mxu0 0
        %3718 = vmatprep.subr.bf16.mxu0 0
        %3719 = vmatpush2.bf16.msra.mxu0 0
        %3720 = vmatprep.subr.bf16.mxu0 0
        %3721 = vmatpush2.bf16.msra.mxu0 0
        %3722 = vmatprep.subr.bf16.mxu0 0
        %3723 = vmatpush2.bf16.msra.mxu0 0
        %3724 = vmatprep.subr.bf16.mxu0 0
        %3725 = vmatpush2.bf16.msra.mxu0 0
        %3726 = vmatprep.subr.bf16.mxu0 0
        %3727 = vmatpush2.bf16.msra.mxu0 0
        %3728 = vmatprep.subr.bf16.mxu0 0
        %3729 = vmatpush2.bf16.msra.mxu0 0
        %3730 = vmatprep.subr.bf16.mxu0 0
        %3731 = vmatpush2.bf16.msra.mxu0 0
        %3732 = vmatprep.mubr.bf16.mxu0 0
        %3733 = vmatmul.mubr.bf16.gmra.mxu0 %v3628
        %v3734 = vpop.f32.mrf.mxu0
        %v3735 = vadd.f32 0.0, %v3734
        %v3736 = vpop.f32.mrf.mxu0
        %v3737 = vpop.f32.mrf.mxu0
        %v3738 = vadd.f32 0.0, %v3737
        %v3739 = vpop.f32.mrf.mxu0
        %3740 = vmatprep.mubr.bf16.mxu0 0
        %3741 = vmatmul.mubr.bf16.gmra.mxu0 %v3629
        %v3742 = vpop.f32.mrf.mxu0
        %v3743 = vadd.f32 0.0, %v3742
        %v3744 = vpop.f32.mrf.mxu0
        %v3745 = vpop.f32.mrf.mxu0
        %v3746 = vadd.f32 0.0, %v3745
        %v3747 = vpop.f32.mrf.mxu0
        %3748 = vmatprep.mubr.bf16.mxu0 0
        %3749 = vmatmul.mubr.bf16.gmra.mxu0 %v3630
        %v3750 = vpop.f32.mrf.mxu0
        %v3751 = vadd.f32 0.0, %v3750
        %v3752 = vpop.f32.mrf.mxu0
        %v3753 = vpop.f32.mrf.mxu0
        %v3754 = vadd.f32 0.0, %v3753
        %v3755 = vpop.f32.mrf.mxu0
        %3756 = vmatprep.mubr.bf16.mxu0 0
        %3757 = vmatmul.mubr.bf16.gmra.mxu0 %v3631
        %v3758 = vpop.f32.mrf.mxu0
        %v3759 = vadd.f32 0.0, %v3758
        %v3760 = vpop.f32.mrf.mxu0
        %v3761 = vpop.f32.mrf.mxu0
        %v3762 = vadd.f32 0.0, %v3761
        %v3763 = vpop.f32.mrf.mxu0
        %3764 = vmatprep.mubr.bf16.mxu0 0
        %3765 = vmatmul.mubr.bf16.gmra.mxu0 %v3632
        %v3766 = vpop.f32.mrf.mxu0
        %v3767 = vadd.f32 0.0, %v3766
        %v3768 = vpop.f32.mrf.mxu0
        %v3769 = vpop.f32.mrf.mxu0
        %v3770 = vadd.f32 0.0, %v3769
        %v3771 = vpop.f32.mrf.mxu0
        %3772 = vmatprep.mubr.bf16.mxu0 0
        %3773 = vmatmul.mubr.bf16.gmra.mxu0 %v3633
        %v3774 = vpop.f32.mrf.mxu0
        %v3775 = vadd.f32 0.0, %v3774
        %v3776 = vpop.f32.mrf.mxu0
        %v3777 = vpop.f32.mrf.mxu0
        %v3778 = vadd.f32 0.0, %v3777
        %v3779 = vpop.f32.mrf.mxu0
        %3780 = vmatprep.mubr.bf16.mxu0 0
        %3781 = vmatmul.mubr.bf16.gmra.mxu0 %v3634
        %v3782 = vpop.f32.mrf.mxu0
        %v3783 = vadd.f32 0.0, %v3782
        %v3784 = vpop.f32.mrf.mxu0
        %v3785 = vpop.f32.mrf.mxu0
        %v3786 = vadd.f32 0.0, %v3785
        %v3787 = vpop.f32.mrf.mxu0
        %3788 = vmatprep.mubr.bf16.mxu0 0
        %3789 = vmatmul.mubr.bf16.gmra.mxu0 %v3635
        %v3790 = vpop.f32.mrf.mxu0
        %v3791 = vadd.f32 0.0, %v3790
        %v3792 = vpop.f32.mrf.mxu0
        %v3793 = vpop.f32.mrf.mxu0
        %v3794 = vadd.f32 0.0, %v3793
        %v3795 = vpop.f32.mrf.mxu0
        %3796 = vmatprep.mubr.bf16.mxu0 0
        %3797 = vmatmul.mubr.bf16.gmra.mxu0 %v3636
        %v3798 = vpop.f32.mrf.mxu0
        %v3799 = vadd.f32 0.0, %v3798
        %v3800 = vpop.f32.mrf.mxu0
        %v3801 = vpop.f32.mrf.mxu0
        %v3802 = vadd.f32 0.0, %v3801
        %v3803 = vpop.f32.mrf.mxu0
        %3804 = vmatprep.mubr.bf16.mxu0 0
        %3805 = vmatmul.mubr.bf16.gmra.mxu0 %v3637
        %v3806 = vpop.f32.mrf.mxu0
        %v3807 = vadd.f32 0.0, %v3806
        %v3808 = vpop.f32.mrf.mxu0
        %v3809 = vpop.f32.mrf.mxu0
        %v3810 = vadd.f32 0.0, %v3809
        %v3811 = vpop.f32.mrf.mxu0
        %3812 = vmatprep.mubr.bf16.mxu0 0
        %3813 = vmatmul.mubr.bf16.gmra.mxu0 %v3638
        %v3814 = vpop.f32.mrf.mxu0
        %v3815 = vadd.f32 0.0, %v3814
        %v3816 = vpop.f32.mrf.mxu0
        %v3817 = vpop.f32.mrf.mxu0
        %v3818 = vadd.f32 0.0, %v3817
        %v3819 = vpop.f32.mrf.mxu0
        %3820 = vmatprep.mubr.bf16.mxu0 0
        %3821 = vmatmul.mubr.bf16.gmra.mxu0 %v3639
        %v3822 = vpop.f32.mrf.mxu0
        %v3823 = vadd.f32 0.0, %v3822
        %v3824 = vpop.f32.mrf.mxu0
        %v3825 = vpop.f32.mrf.mxu0
        %v3826 = vadd.f32 0.0, %v3825
        %v3827 = vpop.f32.mrf.mxu0
        %3828 = vmatprep.mubr.bf16.mxu0 0
        %3829 = vmatmul.mubr.bf16.gmra.mxu0 %v3640
        %v3830 = vpop.f32.mrf.mxu0
        %v3831 = vadd.f32 0.0, %v3830
        %v3832 = vpop.f32.mrf.mxu0
        %v3833 = vpop.f32.mrf.mxu0
        %v3834 = vadd.f32 0.0, %v3833
        %v3835 = vpop.f32.mrf.mxu0
        %3836 = vmatprep.mubr.bf16.mxu0 0
        %3837 = vmatmul.mubr.bf16.gmra.mxu0 %v3641
        %v3838 = vpop.f32.mrf.mxu0
        %v3839 = vadd.f32 0.0, %v3838
        %v3840 = vpop.f32.mrf.mxu0
        %v3841 = vpop.f32.mrf.mxu0
        %v3842 = vadd.f32 0.0, %v3841
        %v3843 = vpop.f32.mrf.mxu0
        %3844 = vmatprep.mubr.bf16.mxu0 0
        %3845 = vmatmul.mubr.bf16.gmra.mxu0 %v3642
        %v3846 = vpop.f32.mrf.mxu0
        %v3847 = vadd.f32 0.0, %v3846
        %v3848 = vpop.f32.mrf.mxu0
        %v3849 = vpop.f32.mrf.mxu0
        %v3850 = vadd.f32 0.0, %v3849
        %v3851 = vpop.f32.mrf.mxu0
        %3852 = vmatprep.mubr.bf16.mxu0 0
        %3853 = vmatmul.mubr.bf16.gmra.mxu0 %v3643
        %v3854 = vpop.f32.mrf.mxu0
        %v3855 = vadd.f32 0.0, %v3854
        %v3856 = vpop.f32.mrf.mxu0
        %v3857 = vpop.f32.mrf.mxu0
        %v3858 = vadd.f32 0.0, %v3857
        %v3859 = vpop.f32.mrf.mxu0
        %3860 = vmatprep.mubr.bf16.mxu0 0
        %3861 = vmatmul.mubr.bf16.gmra.mxu0 %v3644
        %v3862 = vpop.f32.mrf.mxu0
        %v3863 = vadd.f32 0.0, %v3862
        %v3864 = vpop.f32.mrf.mxu0
        %v3865 = vpop.f32.mrf.mxu0
        %v3866 = vadd.f32 0.0, %v3865
        %v3867 = vpop.f32.mrf.mxu0
        %3868 = vmatprep.mubr.bf16.mxu0 0
        %3869 = vmatmul.mubr.bf16.gmra.mxu0 %v3645
        %v3870 = vpop.f32.mrf.mxu0
        %v3871 = vadd.f32 0.0, %v3870
        %v3872 = vpop.f32.mrf.mxu0
        %v3873 = vpop.f32.mrf.mxu0
        %v3874 = vadd.f32 0.0, %v3873
        %v3875 = vpop.f32.mrf.mxu0
        %3876 = vmatprep.mubr.bf16.mxu0 0
        %3877 = vmatmul.mubr.bf16.gmra.mxu0 %v3646
        %v3878 = vpop.f32.mrf.mxu0
        %v3879 = vadd.f32 0.0, %v3878
        %v3880 = vpop.f32.mrf.mxu0
        %v3881 = vpop.f32.mrf.mxu0
        %v3882 = vadd.f32 0.0, %v3881
        %v3883 = vpop.f32.mrf.mxu0
        %3884 = vmatprep.mubr.bf16.mxu0 0
        %3885 = vmatmul.mubr.bf16.gmra.mxu0 %v3647
        %v3886 = vpop.f32.mrf.mxu0
        %v3887 = vadd.f32 0.0, %v3886
        %v3888 = vpop.f32.mrf.mxu0
        %v3889 = vpop.f32.mrf.mxu0
        %v3890 = vadd.f32 0.0, %v3889
        %v3891 = vpop.f32.mrf.mxu0
        %3892 = vmatprep.mubr.bf16.mxu0 0
        %3893 = vmatmul.mubr.bf16.gmra.mxu0 %v3648
        %v3894 = vpop.f32.mrf.mxu0
        %v3895 = vadd.f32 0.0, %v3894
        %v3896 = vpop.f32.mrf.mxu0
        %v3897 = vpop.f32.mrf.mxu0
        %v3898 = vadd.f32 0.0, %v3897
        %v3899 = vpop.f32.mrf.mxu0
        %3900 = vmatprep.mubr.bf16.mxu0 0
        %3901 = vmatmul.mubr.bf16.gmra.mxu0 %v3649
        %v3902 = vpop.f32.mrf.mxu0
        %v3903 = vadd.f32 0.0, %v3902
        %v3904 = vpop.f32.mrf.mxu0
        %v3905 = vpop.f32.mrf.mxu0
        %v3906 = vadd.f32 0.0, %v3905
        %v3907 = vpop.f32.mrf.mxu0
        %3908 = vmatprep.mubr.bf16.mxu0 0
        %3909 = vmatmul.mubr.bf16.gmra.mxu0 %v3650
        %v3910 = vpop.f32.mrf.mxu0
        %v3911 = vadd.f32 0.0, %v3910
        %v3912 = vpop.f32.mrf.mxu0
        %v3913 = vpop.f32.mrf.mxu0
        %v3914 = vadd.f32 0.0, %v3913
        %v3915 = vpop.f32.mrf.mxu0
        %3916 = vmatprep.mubr.bf16.mxu0 0
        %3917 = vmatmul.mubr.bf16.gmra.mxu0 %v3651
        %v3918 = vpop.f32.mrf.mxu0
        %v3919 = vadd.f32 0.0, %v3918
        %v3920 = vpop.f32.mrf.mxu0
        %v3921 = vpop.f32.mrf.mxu0
        %v3922 = vadd.f32 0.0, %v3921
        %v3923 = vpop.f32.mrf.mxu0
        %3924 = vdwg.mxu0
        %v3925 = vadd.f32 %v3548, %v3735
        %v3926 = vadd.f32 %v3549, %v3738
        %v3927 = vadd.f32 %v3550, %v3743
        %v3928 = vadd.f32 %v3551, %v3746
        %v3929 = vadd.f32 %v3552, %v3751
        %v3930 = vadd.f32 %v3553, %v3754
        %v3931 = vadd.f32 %v3554, %v3759
        %v3932 = vadd.f32 %v3555, %v3762
        %v3933 = vadd.f32 %v3556, %v3767
        %v3934 = vadd.f32 %v3557, %v3770
        %v3935 = vadd.f32 %v3558, %v3775
        %v3936 = vadd.f32 %v3559, %v3778
        %v3937 = vadd.f32 %v3560, %v3783
        %v3938 = vadd.f32 %v3561, %v3786
        %v3939 = vadd.f32 %v3562, %v3791
        %v3940 = vadd.f32 %v3563, %v3794
        %v3941 = vadd.f32 %v3564, %v3799
        %v3942 = vadd.f32 %v3565, %v3802
        %v3943 = vadd.f32 %v3566, %v3807
        %v3944 = vadd.f32 %v3567, %v3810
        %v3945 = vadd.f32 %v3568, %v3815
        %v3946 = vadd.f32 %v3569, %v3818
        %v3947 = vadd.f32 %v3570, %v3823
        %v3948 = vadd.f32 %v3571, %v3826
        %v3949 = vadd.f32 %v3572, %v3831
        %v3950 = vadd.f32 %v3573, %v3834
        %v3951 = vadd.f32 %v3574, %v3839
        %v3952 = vadd.f32 %v3575, %v3842
        %v3953 = vadd.f32 %v3576, %v3847
        %v3954 = vadd.f32 %v3577, %v3850
        %v3955 = vadd.f32 %v3578, %v3855
        %v3956 = vadd.f32 %v3579, %v3858
        %v3957 = vadd.f32 %v3580, %v3863
        %v3958 = vadd.f32 %v3581, %v3866
        %v3959 = vadd.f32 %v3582, %v3871
        %v3960 = vadd.f32 %v3583, %v3874
        %v3961 = vadd.f32 %v3584, %v3879
        %v3962 = vadd.f32 %v3585, %v3882
        %v3963 = vadd.f32 %v3586, %v3887
        %v3964 = vadd.f32 %v3587, %v3890
        %v3965 = vadd.f32 %v3588, %v3895
        %v3966 = vadd.f32 %v3589, %v3898
        %v3967 = vadd.f32 %v3590, %v3903
        %v3968 = vadd.f32 %v3591, %v3906
        %v3969 = vadd.f32 %v3592, %v3911
        %v3970 = vadd.f32 %v3593, %v3914
        %v3971 = vadd.f32 %v3594, %v3919
        %v3972 = vadd.f32 %v3595, %v3922
        %v3973 = vlaneseq
        %v3974 = vshrl.u32 %v3973, 7
        %v3975 = vsub.s32 6, %v3974
        %v3976 = vrot.slane %v725, %v3975
        %v3977 = vadd.f32 %v3925, %v3976
        %v3978 = vadd.f32 %v3926, %v3976
        %v3979 = vadd.f32 %v3927, %v3976
        %v3980 = vadd.f32 %v3928, %v3976
        %v3981 = vadd.f32 %v3929, %v3976
        %v3982 = vadd.f32 %v3930, %v3976
        %v3983 = vadd.f32 %v3931, %v3976
        %v3984 = vadd.f32 %v3932, %v3976
        %v3985 = vadd.f32 %v3933, %v3976
        %v3986 = vadd.f32 %v3934, %v3976
        %v3987 = vadd.f32 %v3935, %v3976
        %v3988 = vadd.f32 %v3936, %v3976
        %v3989 = vadd.f32 %v3937, %v3976
        %v3990 = vadd.f32 %v3938, %v3976
        %v3991 = vadd.f32 %v3939, %v3976
        %v3992 = vadd.f32 %v3940, %v3976
        %v3993 = vadd.f32 %v3941, %v3976
        %v3994 = vadd.f32 %v3942, %v3976
        %v3995 = vadd.f32 %v3943, %v3976
        %v3996 = vadd.f32 %v3944, %v3976
        %v3997 = vadd.f32 %v3945, %v3976
        %v3998 = vadd.f32 %v3946, %v3976
        %v3999 = vadd.f32 %v3947, %v3976
        %v4000 = vadd.f32 %v3948, %v3976
        %v4001 = vadd.f32 %v3949, %v3976
        %v4002 = vadd.f32 %v3950, %v3976
        %v4003 = vadd.f32 %v3951, %v3976
        %v4004 = vadd.f32 %v3952, %v3976
        %v4005 = vadd.f32 %v3953, %v3976
        %v4006 = vadd.f32 %v3954, %v3976
        %v4007 = vadd.f32 %v3955, %v3976
        %v4008 = vadd.f32 %v3956, %v3976
        %v4009 = vadd.f32 %v3957, %v3976
        %v4010 = vadd.f32 %v3958, %v3976
        %v4011 = vadd.f32 %v3959, %v3976
        %v4012 = vadd.f32 %v3960, %v3976
        %v4013 = vadd.f32 %v3961, %v3976
        %v4014 = vadd.f32 %v3962, %v3976
        %v4015 = vadd.f32 %v3963, %v3976
        %v4016 = vadd.f32 %v3964, %v3976
        %v4017 = vadd.f32 %v3965, %v3976
        %v4018 = vadd.f32 %v3966, %v3976
        %v4019 = vadd.f32 %v3967, %v3976
        %v4020 = vadd.f32 %v3968, %v3976
        %v4021 = vadd.f32 %v3969, %v3976
        %v4022 = vadd.f32 %v3970, %v3976
        %v4023 = vadd.f32 %v3971, %v3976
        %v4024 = vadd.f32 %v3972, %v3976
        %v4025 = vmax.f32 %v3977, 0.0
        %v4026 = vmax.f32 %v3978, 0.0
        %v4027 = vmax.f32 %v3979, 0.0
        %v4028 = vmax.f32 %v3980, 0.0
        %v4029 = vmax.f32 %v3981, 0.0
        %v4030 = vmax.f32 %v3982, 0.0
        %v4031 = vmax.f32 %v3983, 0.0
        %v4032 = vmax.f32 %v3984, 0.0
        %v4033 = vmax.f32 %v3985, 0.0
        %v4034 = vmax.f32 %v3986, 0.0
        %v4035 = vmax.f32 %v3987, 0.0
        %v4036 = vmax.f32 %v3988, 0.0
        %v4037 = vmax.f32 %v3989, 0.0
        %v4038 = vmax.f32 %v3990, 0.0
        %v4039 = vmax.f32 %v3991, 0.0
        %v4040 = vmax.f32 %v3992, 0.0
        %v4041 = vmax.f32 %v3993, 0.0
        %v4042 = vmax.f32 %v3994, 0.0
        %v4043 = vmax.f32 %v3995, 0.0
        %v4044 = vmax.f32 %v3996, 0.0
        %v4045 = vmax.f32 %v3997, 0.0
        %v4046 = vmax.f32 %v3998, 0.0
        %v4047 = vmax.f32 %v3999, 0.0
        %v4048 = vmax.f32 %v4000, 0.0
        %v4049 = vmax.f32 %v4001, 0.0
        %v4050 = vmax.f32 %v4002, 0.0
        %v4051 = vmax.f32 %v4003, 0.0
        %v4052 = vmax.f32 %v4004, 0.0
        %v4053 = vmax.f32 %v4005, 0.0
        %v4054 = vmax.f32 %v4006, 0.0
        %v4055 = vmax.f32 %v4007, 0.0
        %v4056 = vmax.f32 %v4008, 0.0
        %v4057 = vmax.f32 %v4009, 0.0
        %v4058 = vmax.f32 %v4010, 0.0
        %v4059 = vmax.f32 %v4011, 0.0
        %v4060 = vmax.f32 %v4012, 0.0
        %v4061 = vmax.f32 %v4013, 0.0
        %v4062 = vmax.f32 %v4014, 0.0
        %v4063 = vmax.f32 %v4015, 0.0
        %v4064 = vmax.f32 %v4016, 0.0
        %v4065 = vmax.f32 %v4017, 0.0
        %v4066 = vmax.f32 %v4018, 0.0
        %v4067 = vmax.f32 %v4019, 0.0
        %v4068 = vmax.f32 %v4020, 0.0
        %v4069 = vmax.f32 %v4021, 0.0
        %v4070 = vmax.f32 %v4022, 0.0
        %v4071 = vmax.f32 %v4023, 0.0
        %v4072 = vmax.f32 %v4024, 0.0
        %v4073 = vpack.c.bf16 %v4026, %v4025
        %v4074 = vpack.c.bf16 %v4028, %v4027
        %v4075 = vpack.c.bf16 %v4030, %v4029
        %v4076 = vpack.c.bf16 %v4032, %v4031
        %v4077 = vpack.c.bf16 %v4034, %v4033
        %v4078 = vpack.c.bf16 %v4036, %v4035
        %v4079 = vpack.c.bf16 %v4038, %v4037
        %v4080 = vpack.c.bf16 %v4040, %v4039
        %v4081 = vpack.c.bf16 %v4042, %v4041
        %v4082 = vpack.c.bf16 %v4044, %v4043
        %v4083 = vpack.c.bf16 %v4046, %v4045
        %v4084 = vpack.c.bf16 %v4048, %v4047
        %v4085 = vpack.c.bf16 %v4050, %v4049
        %v4086 = vpack.c.bf16 %v4052, %v4051
        %v4087 = vpack.c.bf16 %v4054, %v4053
        %v4088 = vpack.c.bf16 %v4056, %v4055
        %v4089 = vpack.c.bf16 %v4058, %v4057
        %v4090 = vpack.c.bf16 %v4060, %v4059
        %v4091 = vpack.c.bf16 %v4062, %v4061
        %v4092 = vpack.c.bf16 %v4064, %v4063
        %v4093 = vpack.c.bf16 %v4066, %v4065
        %v4094 = vpack.c.bf16 %v4068, %v4067
        %v4095 = vpack.c.bf16 %v4070, %v4069
        %v4096 = vpack.c.bf16 %v4072, %v4071
        %v4113 = vunpack.c.l.b16 %v3612
        %v4114 = vunpack.c.l.b16 %v3613
        %v4115 = vunpack.c.l.b16 %v3614
        %v4116 = vunpack.c.l.b16 %v3615
        %v4117 = vunpack.c.l.b16 %v3616
        %v4118 = vunpack.c.l.b16 %v3617
        %v4119 = vunpack.c.l.b16 %v3618
        %v4120 = vunpack.c.l.b16 %v3619
        %v4121 = vunpack.c.l.b16 %v3620
        %v4122 = vunpack.c.l.b16 %v3621
        %v4123 = vunpack.c.l.b16 %v3622
        %v4124 = vunpack.c.l.b16 %v3623
        %v4125 = vunpack.c.l.b16 %v3624
        %v4126 = vunpack.c.l.b16 %v3625
        %v4127 = vunpack.c.l.b16 %v3626
        %v4128 = vunpack.c.l.b16 %v3627
        %v4129 = vpack.c.b16 %v4114, %v4113
        %v4130 = vpack.c.b16 %v4116, %v4115
        %v4131 = vpack.c.b16 %v4118, %v4117
        %v4132 = vpack.c.b16 %v4120, %v4119
        %v4133 = vpack.c.b16 %v4122, %v4121
        %v4134 = vpack.c.b16 %v4124, %v4123
        %v4135 = vpack.c.b16 %v4126, %v4125
        %v4136 = vpack.c.b16 %v4128, %v4127
        %4145 = vmatprep.subr.bf16.mxu0 0
        %4146 = vmatpush1.bf16.msra.mxu0 %v4136
        %4147 = vmatprep.subr.bf16.mxu0 0
        %4148 = vmatpush1.bf16.msra.mxu0 %v4135
        %4149 = vmatprep.subr.bf16.mxu0 0
        %4150 = vmatpush1.bf16.msra.mxu0 %v4134
        %4151 = vmatprep.subr.bf16.mxu0 0
        %4152 = vmatpush1.bf16.msra.mxu0 %v4133
        %4153 = vmatprep.subr.bf16.mxu0 0
        %4154 = vmatpush1.bf16.msra.mxu0 %v4132
        %4155 = vmatprep.subr.bf16.mxu0 0
        %4156 = vmatpush1.bf16.msra.mxu0 %v4131
        %4157 = vmatprep.subr.bf16.mxu0 0
        %4158 = vmatpush1.bf16.msra.mxu0 %v4130
        %4159 = vmatprep.subr.bf16.mxu0 0
        %4160 = vmatpush1.bf16.msra.mxu0 %v4129
        %4161 = vmatprep.subr.bf16.mxu0 0
        %4162 = vmatpush2.bf16.msra.mxu0 0
        %4163 = vmatprep.subr.bf16.mxu0 0
        %4164 = vmatpush2.bf16.msra.mxu0 0
        %4165 = vmatprep.subr.bf16.mxu0 0
        %4166 = vmatpush2.bf16.msra.mxu0 0
        %4167 = vmatprep.subr.bf16.mxu0 0
        %4168 = vmatpush2.bf16.msra.mxu0 0
        %4169 = vmatprep.subr.bf16.mxu0 0
        %4170 = vmatpush2.bf16.msra.mxu0 0
        %4171 = vmatprep.subr.bf16.mxu0 0
        %4172 = vmatpush2.bf16.msra.mxu0 0
        %4173 = vmatprep.subr.bf16.mxu0 0
        %4174 = vmatpush2.bf16.msra.mxu0 0
        %4175 = vmatprep.subr.bf16.mxu0 0
        %4176 = vmatpush2.bf16.msra.mxu0 0
        %4177 = vmatprep.mubr.bf16.mxu0 0
        %4178 = vmatmul.mubr.bf16.gmra.mxu0 %v4073
        %v4179 = vpop.f32.mrf.mxu0
        %v4180 = vadd.f32 0.0, %v4179
        %v4181 = vpop.f32.mrf.mxu0
        %v4182 = vpop.f32.mrf.mxu0
        %v4183 = vadd.f32 0.0, %v4182
        %v4184 = vpop.f32.mrf.mxu0
        %4185 = vmatprep.mubr.bf16.mxu0 0
        %4186 = vmatmul.mubr.bf16.gmra.mxu0 %v4074
        %v4187 = vpop.f32.mrf.mxu0
        %v4188 = vadd.f32 0.0, %v4187
        %v4189 = vpop.f32.mrf.mxu0
        %v4190 = vpop.f32.mrf.mxu0
        %v4191 = vadd.f32 0.0, %v4190
        %v4192 = vpop.f32.mrf.mxu0
        %4193 = vmatprep.mubr.bf16.mxu0 0
        %4194 = vmatmul.mubr.bf16.gmra.mxu0 %v4075
        %v4195 = vpop.f32.mrf.mxu0
        %v4196 = vadd.f32 0.0, %v4195
        %v4197 = vpop.f32.mrf.mxu0
        %v4198 = vpop.f32.mrf.mxu0
        %v4199 = vadd.f32 0.0, %v4198
        %v4200 = vpop.f32.mrf.mxu0
        %4201 = vmatprep.mubr.bf16.mxu0 0
        %4202 = vmatmul.mubr.bf16.gmra.mxu0 %v4076
        %v4203 = vpop.f32.mrf.mxu0
        %v4204 = vadd.f32 0.0, %v4203
        %v4205 = vpop.f32.mrf.mxu0
        %v4206 = vpop.f32.mrf.mxu0
        %v4207 = vadd.f32 0.0, %v4206
        %v4208 = vpop.f32.mrf.mxu0
        %4209 = vmatprep.mubr.bf16.mxu0 0
        %4210 = vmatmul.mubr.bf16.gmra.mxu0 %v4077
        %v4211 = vpop.f32.mrf.mxu0
        %v4212 = vadd.f32 0.0, %v4211
        %v4213 = vpop.f32.mrf.mxu0
        %v4214 = vpop.f32.mrf.mxu0
        %v4215 = vadd.f32 0.0, %v4214
        %v4216 = vpop.f32.mrf.mxu0
        %4217 = vmatprep.mubr.bf16.mxu0 0
        %4218 = vmatmul.mubr.bf16.gmra.mxu0 %v4078
        %v4219 = vpop.f32.mrf.mxu0
        %v4220 = vadd.f32 0.0, %v4219
        %v4221 = vpop.f32.mrf.mxu0
        %v4222 = vpop.f32.mrf.mxu0
        %v4223 = vadd.f32 0.0, %v4222
        %v4224 = vpop.f32.mrf.mxu0
        %4225 = vmatprep.mubr.bf16.mxu0 0
        %4226 = vmatmul.mubr.bf16.gmra.mxu0 %v4079
        %v4227 = vpop.f32.mrf.mxu0
        %v4228 = vadd.f32 0.0, %v4227
        %v4229 = vpop.f32.mrf.mxu0
        %v4230 = vpop.f32.mrf.mxu0
        %v4231 = vadd.f32 0.0, %v4230
        %v4232 = vpop.f32.mrf.mxu0
        %4233 = vmatprep.mubr.bf16.mxu0 0
        %4234 = vmatmul.mubr.bf16.gmra.mxu0 %v4080
        %v4235 = vpop.f32.mrf.mxu0
        %v4236 = vadd.f32 0.0, %v4235
        %v4237 = vpop.f32.mrf.mxu0
        %v4238 = vpop.f32.mrf.mxu0
        %v4239 = vadd.f32 0.0, %v4238
        %v4240 = vpop.f32.mrf.mxu0
        %4241 = vmatprep.mubr.bf16.mxu0 0
        %4242 = vmatmul.mubr.bf16.gmra.mxu0 %v4081
        %v4243 = vpop.f32.mrf.mxu0
        %v4244 = vadd.f32 0.0, %v4243
        %v4245 = vpop.f32.mrf.mxu0
        %v4246 = vpop.f32.mrf.mxu0
        %v4247 = vadd.f32 0.0, %v4246
        %v4248 = vpop.f32.mrf.mxu0
        %4249 = vmatprep.mubr.bf16.mxu0 0
        %4250 = vmatmul.mubr.bf16.gmra.mxu0 %v4082
        %v4251 = vpop.f32.mrf.mxu0
        %v4252 = vadd.f32 0.0, %v4251
        %v4253 = vpop.f32.mrf.mxu0
        %v4254 = vpop.f32.mrf.mxu0
        %v4255 = vadd.f32 0.0, %v4254
        %v4256 = vpop.f32.mrf.mxu0
        %4257 = vmatprep.mubr.bf16.mxu0 0
        %4258 = vmatmul.mubr.bf16.gmra.mxu0 %v4083
        %v4259 = vpop.f32.mrf.mxu0
        %v4260 = vadd.f32 0.0, %v4259
        %v4261 = vpop.f32.mrf.mxu0
        %v4262 = vpop.f32.mrf.mxu0
        %v4263 = vadd.f32 0.0, %v4262
        %v4264 = vpop.f32.mrf.mxu0
        %4265 = vmatprep.mubr.bf16.mxu0 0
        %4266 = vmatmul.mubr.bf16.gmra.mxu0 %v4084
        %v4267 = vpop.f32.mrf.mxu0
        %v4268 = vadd.f32 0.0, %v4267
        %v4269 = vpop.f32.mrf.mxu0
        %v4270 = vpop.f32.mrf.mxu0
        %v4271 = vadd.f32 0.0, %v4270
        %v4272 = vpop.f32.mrf.mxu0
        %4273 = vmatprep.mubr.bf16.mxu0 0
        %4274 = vmatmul.mubr.bf16.gmra.mxu0 %v4085
        %v4275 = vpop.f32.mrf.mxu0
        %v4276 = vadd.f32 0.0, %v4275
        %v4277 = vpop.f32.mrf.mxu0
        %v4278 = vpop.f32.mrf.mxu0
        %v4279 = vadd.f32 0.0, %v4278
        %v4280 = vpop.f32.mrf.mxu0
        %4281 = vmatprep.mubr.bf16.mxu0 0
        %4282 = vmatmul.mubr.bf16.gmra.mxu0 %v4086
        %v4283 = vpop.f32.mrf.mxu0
        %v4284 = vadd.f32 0.0, %v4283
        %v4285 = vpop.f32.mrf.mxu0
        %v4286 = vpop.f32.mrf.mxu0
        %v4287 = vadd.f32 0.0, %v4286
        %v4288 = vpop.f32.mrf.mxu0
        %4289 = vmatprep.mubr.bf16.mxu0 0
        %4290 = vmatmul.mubr.bf16.gmra.mxu0 %v4087
        %v4291 = vpop.f32.mrf.mxu0
        %v4292 = vadd.f32 0.0, %v4291
        %v4293 = vpop.f32.mrf.mxu0
        %v4294 = vpop.f32.mrf.mxu0
        %v4295 = vadd.f32 0.0, %v4294
        %v4296 = vpop.f32.mrf.mxu0
        %4297 = vmatprep.mubr.bf16.mxu0 0
        %4298 = vmatmul.mubr.bf16.gmra.mxu0 %v4088
        %v4299 = vpop.f32.mrf.mxu0
        %v4300 = vadd.f32 0.0, %v4299
        %v4301 = vpop.f32.mrf.mxu0
        %v4302 = vpop.f32.mrf.mxu0
        %v4303 = vadd.f32 0.0, %v4302
        %v4304 = vpop.f32.mrf.mxu0
        %4305 = vmatprep.mubr.bf16.mxu0 0
        %4306 = vmatmul.mubr.bf16.gmra.mxu0 %v4089
        %v4307 = vpop.f32.mrf.mxu0
        %v4308 = vadd.f32 0.0, %v4307
        %v4309 = vpop.f32.mrf.mxu0
        %v4310 = vpop.f32.mrf.mxu0
        %v4311 = vadd.f32 0.0, %v4310
        %v4312 = vpop.f32.mrf.mxu0
        %4313 = vmatprep.mubr.bf16.mxu0 0
        %4314 = vmatmul.mubr.bf16.gmra.mxu0 %v4090
        %v4315 = vpop.f32.mrf.mxu0
        %v4316 = vadd.f32 0.0, %v4315
        %v4317 = vpop.f32.mrf.mxu0
        %v4318 = vpop.f32.mrf.mxu0
        %v4319 = vadd.f32 0.0, %v4318
        %v4320 = vpop.f32.mrf.mxu0
        %4321 = vmatprep.mubr.bf16.mxu0 0
        %4322 = vmatmul.mubr.bf16.gmra.mxu0 %v4091
        %v4323 = vpop.f32.mrf.mxu0
        %v4324 = vadd.f32 0.0, %v4323
        %v4325 = vpop.f32.mrf.mxu0
        %v4326 = vpop.f32.mrf.mxu0
        %v4327 = vadd.f32 0.0, %v4326
        %v4328 = vpop.f32.mrf.mxu0
        %4329 = vmatprep.mubr.bf16.mxu0 0
        %4330 = vmatmul.mubr.bf16.gmra.mxu0 %v4092
        %v4331 = vpop.f32.mrf.mxu0
        %v4332 = vadd.f32 0.0, %v4331
        %v4333 = vpop.f32.mrf.mxu0
        %v4334 = vpop.f32.mrf.mxu0
        %v4335 = vadd.f32 0.0, %v4334
        %v4336 = vpop.f32.mrf.mxu0
        %4337 = vmatprep.mubr.bf16.mxu0 0
        %4338 = vmatmul.mubr.bf16.gmra.mxu0 %v4093
        %v4339 = vpop.f32.mrf.mxu0
        %v4340 = vadd.f32 0.0, %v4339
        %v4341 = vpop.f32.mrf.mxu0
        %v4342 = vpop.f32.mrf.mxu0
        %v4343 = vadd.f32 0.0, %v4342
        %v4344 = vpop.f32.mrf.mxu0
        %4345 = vmatprep.mubr.bf16.mxu0 0
        %4346 = vmatmul.mubr.bf16.gmra.mxu0 %v4094
        %v4347 = vpop.f32.mrf.mxu0
        %v4348 = vadd.f32 0.0, %v4347
        %v4349 = vpop.f32.mrf.mxu0
        %v4350 = vpop.f32.mrf.mxu0
        %v4351 = vadd.f32 0.0, %v4350
        %v4352 = vpop.f32.mrf.mxu0
        %4353 = vmatprep.mubr.bf16.mxu0 0
        %4354 = vmatmul.mubr.bf16.gmra.mxu0 %v4095
        %v4355 = vpop.f32.mrf.mxu0
        %v4356 = vadd.f32 0.0, %v4355
        %v4357 = vpop.f32.mrf.mxu0
        %v4358 = vpop.f32.mrf.mxu0
        %v4359 = vadd.f32 0.0, %v4358
        %v4360 = vpop.f32.mrf.mxu0
        %4361 = vmatprep.mubr.bf16.mxu0 0
        %4362 = vmatmul.mubr.bf16.gmra.mxu0 %v4096
        %v4363 = vpop.f32.mrf.mxu0
        %v4364 = vadd.f32 0.0, %v4363
        %v4365 = vpop.f32.mrf.mxu0
        %v4366 = vpop.f32.mrf.mxu0
        %v4367 = vadd.f32 0.0, %v4366
        %v4368 = vpop.f32.mrf.mxu0
        %4369 = vdwg.mxu0
        %v4370 = vadd.f32 %v4025, %v4180
        %v4371 = vadd.f32 %v4026, %v4183
        %v4372 = vadd.f32 %v4027, %v4188
        %v4373 = vadd.f32 %v4028, %v4191
        %v4374 = vadd.f32 %v4029, %v4196
        %v4375 = vadd.f32 %v4030, %v4199
        %v4376 = vadd.f32 %v4031, %v4204
        %v4377 = vadd.f32 %v4032, %v4207
        %v4378 = vadd.f32 %v4033, %v4212
        %v4379 = vadd.f32 %v4034, %v4215
        %v4380 = vadd.f32 %v4035, %v4220
        %v4381 = vadd.f32 %v4036, %v4223
        %v4382 = vadd.f32 %v4037, %v4228
        %v4383 = vadd.f32 %v4038, %v4231
        %v4384 = vadd.f32 %v4039, %v4236
        %v4385 = vadd.f32 %v4040, %v4239
        %v4386 = vadd.f32 %v4041, %v4244
        %v4387 = vadd.f32 %v4042, %v4247
        %v4388 = vadd.f32 %v4043, %v4252
        %v4389 = vadd.f32 %v4044, %v4255
        %v4390 = vadd.f32 %v4045, %v4260
        %v4391 = vadd.f32 %v4046, %v4263
        %v4392 = vadd.f32 %v4047, %v4268
        %v4393 = vadd.f32 %v4048, %v4271
        %v4394 = vadd.f32 %v4049, %v4276
        %v4395 = vadd.f32 %v4050, %v4279
        %v4396 = vadd.f32 %v4051, %v4284
        %v4397 = vadd.f32 %v4052, %v4287
        %v4398 = vadd.f32 %v4053, %v4292
        %v4399 = vadd.f32 %v4054, %v4295
        %v4400 = vadd.f32 %v4055, %v4300
        %v4401 = vadd.f32 %v4056, %v4303
        %v4402 = vadd.f32 %v4057, %v4308
        %v4403 = vadd.f32 %v4058, %v4311
        %v4404 = vadd.f32 %v4059, %v4316
        %v4405 = vadd.f32 %v4060, %v4319
        %v4406 = vadd.f32 %v4061, %v4324
        %v4407 = vadd.f32 %v4062, %v4327
        %v4408 = vadd.f32 %v4063, %v4332
        %v4409 = vadd.f32 %v4064, %v4335
        %v4410 = vadd.f32 %v4065, %v4340
        %v4411 = vadd.f32 %v4066, %v4343
        %v4412 = vadd.f32 %v4067, %v4348
        %v4413 = vadd.f32 %v4068, %v4351
        %v4414 = vadd.f32 %v4069, %v4356
        %v4415 = vadd.f32 %v4070, %v4359
        %v4416 = vadd.f32 %v4071, %v4364
        %v4417 = vadd.f32 %v4072, %v4367
        %v4418 = vlaneseq
        %v4419 = vshrl.u32 %v4418, 7
        %v4420 = vsub.s32 7, %v4419
        %v4421 = vrot.slane %v725, %v4420
        %v4422 = vadd.f32 %v4370, %v4421
        %v4423 = vadd.f32 %v4371, %v4421
        %v4424 = vadd.f32 %v4372, %v4421
        %v4425 = vadd.f32 %v4373, %v4421
        %v4426 = vadd.f32 %v4374, %v4421
        %v4427 = vadd.f32 %v4375, %v4421
        %v4428 = vadd.f32 %v4376, %v4421
        %v4429 = vadd.f32 %v4377, %v4421
        %v4430 = vadd.f32 %v4378, %v4421
        %v4431 = vadd.f32 %v4379, %v4421
        %v4432 = vadd.f32 %v4380, %v4421
        %v4433 = vadd.f32 %v4381, %v4421
        %v4434 = vadd.f32 %v4382, %v4421
        %v4435 = vadd.f32 %v4383, %v4421
        %v4436 = vadd.f32 %v4384, %v4421
        %v4437 = vadd.f32 %v4385, %v4421
        %v4438 = vadd.f32 %v4386, %v4421
        %v4439 = vadd.f32 %v4387, %v4421
        %v4440 = vadd.f32 %v4388, %v4421
        %v4441 = vadd.f32 %v4389, %v4421
        %v4442 = vadd.f32 %v4390, %v4421
        %v4443 = vadd.f32 %v4391, %v4421
        %v4444 = vadd.f32 %v4392, %v4421
        %v4445 = vadd.f32 %v4393, %v4421
        %v4446 = vadd.f32 %v4394, %v4421
        %v4447 = vadd.f32 %v4395, %v4421
        %v4448 = vadd.f32 %v4396, %v4421
        %v4449 = vadd.f32 %v4397, %v4421
        %v4450 = vadd.f32 %v4398, %v4421
        %v4451 = vadd.f32 %v4399, %v4421
        %v4452 = vadd.f32 %v4400, %v4421
        %v4453 = vadd.f32 %v4401, %v4421
        %v4454 = vadd.f32 %v4402, %v4421
        %v4455 = vadd.f32 %v4403, %v4421
        %v4456 = vadd.f32 %v4404, %v4421
        %v4457 = vadd.f32 %v4405, %v4421
        %v4458 = vadd.f32 %v4406, %v4421
        %v4459 = vadd.f32 %v4407, %v4421
        %v4460 = vadd.f32 %v4408, %v4421
        %v4461 = vadd.f32 %v4409, %v4421
        %v4462 = vadd.f32 %v4410, %v4421
        %v4463 = vadd.f32 %v4411, %v4421
        %v4464 = vadd.f32 %v4412, %v4421
        %v4465 = vadd.f32 %v4413, %v4421
        %v4466 = vadd.f32 %v4414, %v4421
        %v4467 = vadd.f32 %v4415, %v4421
        %v4468 = vadd.f32 %v4416, %v4421
        %v4469 = vadd.f32 %v4417, %v4421
        %v4470 = vmax.f32 %v4422, 0.0
        %v4471 = vmax.f32 %v4423, 0.0
        %v4472 = vmax.f32 %v4424, 0.0
        %v4473 = vmax.f32 %v4425, 0.0
        %v4474 = vmax.f32 %v4426, 0.0
        %v4475 = vmax.f32 %v4427, 0.0
        %v4476 = vmax.f32 %v4428, 0.0
        %v4477 = vmax.f32 %v4429, 0.0
        %v4478 = vmax.f32 %v4430, 0.0
        %v4479 = vmax.f32 %v4431, 0.0
        %v4480 = vmax.f32 %v4432, 0.0
        %v4481 = vmax.f32 %v4433, 0.0
        %v4482 = vmax.f32 %v4434, 0.0
        %v4483 = vmax.f32 %v4435, 0.0
        %v4484 = vmax.f32 %v4436, 0.0
        %v4485 = vmax.f32 %v4437, 0.0
        %v4486 = vmax.f32 %v4438, 0.0
        %v4487 = vmax.f32 %v4439, 0.0
        %v4488 = vmax.f32 %v4440, 0.0
        %v4489 = vmax.f32 %v4441, 0.0
        %v4490 = vmax.f32 %v4442, 0.0
        %v4491 = vmax.f32 %v4443, 0.0
        %v4492 = vmax.f32 %v4444, 0.0
        %v4493 = vmax.f32 %v4445, 0.0
        %v4494 = vmax.f32 %v4446, 0.0
        %v4495 = vmax.f32 %v4447, 0.0
        %v4496 = vmax.f32 %v4448, 0.0
        %v4497 = vmax.f32 %v4449, 0.0
        %v4498 = vmax.f32 %v4450, 0.0
        %v4499 = vmax.f32 %v4451, 0.0
        %v4500 = vmax.f32 %v4452, 0.0
        %v4501 = vmax.f32 %v4453, 0.0
        %v4502 = vmax.f32 %v4454, 0.0
        %v4503 = vmax.f32 %v4455, 0.0
        %v4504 = vmax.f32 %v4456, 0.0
        %v4505 = vmax.f32 %v4457, 0.0
        %v4506 = vmax.f32 %v4458, 0.0
        %v4507 = vmax.f32 %v4459, 0.0
        %v4508 = vmax.f32 %v4460, 0.0
        %v4509 = vmax.f32 %v4461, 0.0
        %v4510 = vmax.f32 %v4462, 0.0
        %v4511 = vmax.f32 %v4463, 0.0
        %v4512 = vmax.f32 %v4464, 0.0
        %v4513 = vmax.f32 %v4465, 0.0
        %v4514 = vmax.f32 %v4466, 0.0
        %v4515 = vmax.f32 %v4467, 0.0
        %v4516 = vmax.f32 %v4468, 0.0
        %v4517 = vmax.f32 %v4469, 0.0
        %v4518 = vpack.c.bf16 %v4471, %v4470
        %v4519 = vpack.c.bf16 %v4473, %v4472
        %v4520 = vpack.c.bf16 %v4475, %v4474
        %v4521 = vpack.c.bf16 %v4477, %v4476
        %v4522 = vpack.c.bf16 %v4479, %v4478
        %v4523 = vpack.c.bf16 %v4481, %v4480
        %v4524 = vpack.c.bf16 %v4483, %v4482
        %v4525 = vpack.c.bf16 %v4485, %v4484
        %v4526 = vpack.c.bf16 %v4487, %v4486
        %v4527 = vpack.c.bf16 %v4489, %v4488
        %v4528 = vpack.c.bf16 %v4491, %v4490
        %v4529 = vpack.c.bf16 %v4493, %v4492
        %v4530 = vpack.c.bf16 %v4495, %v4494
        %v4531 = vpack.c.bf16 %v4497, %v4496
        %v4532 = vpack.c.bf16 %v4499, %v4498
        %v4533 = vpack.c.bf16 %v4501, %v4500
        %v4534 = vpack.c.bf16 %v4503, %v4502
        %v4535 = vpack.c.bf16 %v4505, %v4504
        %v4536 = vpack.c.bf16 %v4507, %v4506
        %v4537 = vpack.c.bf16 %v4509, %v4508
        %v4538 = vpack.c.bf16 %v4511, %v4510
        %v4539 = vpack.c.bf16 %v4513, %v4512
        %v4540 = vpack.c.bf16 %v4515, %v4514
        %v4541 = vpack.c.bf16 %v4517, %v4516
        %v4542 = vld [vmem:[%s5] sm:$0xf]
        %v4543 = vld [vmem:[%s5 + $0x4] sm:$0xf]
        %v4544 = vld [vmem:[%s5 + $0x8] sm:$0xf]
        %v4545 = vld [vmem:[%s5 + $0xc] sm:$0xf]
        %v4546 = vld [vmem:[%s5 + $0x10] sm:$0xf]
        %v4547 = vld [vmem:[%s5 + $0x14] sm:$0xf]
        %v4548 = vld [vmem:[%s5 + $0x18] sm:$0xf]
        %v4549 = vld [vmem:[%s5 + $0x1c] sm:$0xf]
        %v4550 = vld [vmem:[%s5 + $0x20] sm:$0xf]
        %v4551 = vld [vmem:[%s5 + $0x24] sm:$0xf]
        %v4552 = vld [vmem:[%s5 + $0x28] sm:$0xf]
        %v4553 = vld [vmem:[%s5 + $0x2c] sm:$0xf]
        %v4554 = vld [vmem:[%s5 + $0x30] sm:$0xf]
        %v4555 = vld [vmem:[%s5 + $0x34] sm:$0xf]
        %v4556 = vld [vmem:[%s5 + $0x38] sm:$0xf]
        %v4557 = vld [vmem:[%s5 + $0x3c] sm:$0xf]
        %v4558 = vld [vmem:[%s5 + $0x40] sm:$0xf]
        %v4559 = vld [vmem:[%s5 + $0x44] sm:$0xf]
        %v4560 = vld [vmem:[%s5 + $0x48] sm:$0xf]
        %v4561 = vld [vmem:[%s5 + $0x4c] sm:$0xf]
        %v4562 = vld [vmem:[%s5 + $0x50] sm:$0xf]
        %v4563 = vld [vmem:[%s5 + $0x54] sm:$0xf]
        %v4564 = vld [vmem:[%s5 + $0x58] sm:$0xf]
        %v4565 = vld [vmem:[%s5 + $0x5c] sm:$0xf]
        %v4566 = vld [vmem:[%s5 + $0x60] sm:$0xf]
        %v4567 = vld [vmem:[%s5 + $0x64] sm:$0xf]
        %v4568 = vld [vmem:[%s5 + $0x68] sm:$0xf]
        %v4569 = vld [vmem:[%s5 + $0x6c] sm:$0xf]
        %v4570 = vld [vmem:[%s5 + $0x70] sm:$0xf]
        %v4571 = vld [vmem:[%s5 + $0x74] sm:$0xf]
        %v4572 = vld [vmem:[%s5 + $0x78] sm:$0xf]
        %v4573 = vld [vmem:[%s5 + $0x7c] sm:$0xf]
        %v4574 = vlaneseq
        %v4575 = vshrl.u32 %v4574, 7
        %v4576 = vsub.s32 0, %v4575
        %v4577 = vrot.slane %v726, %v4576
        %v4610 = vunpack.c.l.b16 %v4542
        %v4611 = vunpack.c.l.b16 %v4543
        %v4612 = vunpack.c.l.b16 %v4544
        %v4613 = vunpack.c.l.b16 %v4545
        %v4614 = vunpack.c.l.b16 %v4546
        %v4615 = vunpack.c.l.b16 %v4547
        %v4616 = vunpack.c.l.b16 %v4548
        %v4617 = vunpack.c.l.b16 %v4549
        %v4618 = vunpack.c.l.b16 %v4550
        %v4619 = vunpack.c.l.b16 %v4551
        %v4620 = vunpack.c.l.b16 %v4552
        %v4621 = vunpack.c.l.b16 %v4553
        %v4622 = vunpack.c.l.b16 %v4554
        %v4623 = vunpack.c.l.b16 %v4555
        %v4624 = vunpack.c.l.b16 %v4556
        %v4625 = vunpack.c.l.b16 %v4557
        %v4626 = vunpack.c.l.b16 %v4558
        %v4627 = vunpack.c.l.b16 %v4559
        %v4628 = vunpack.c.l.b16 %v4560
        %v4629 = vunpack.c.l.b16 %v4561
        %v4630 = vunpack.c.l.b16 %v4562
        %v4631 = vunpack.c.l.b16 %v4563
        %v4632 = vunpack.c.l.b16 %v4564
        %v4633 = vunpack.c.l.b16 %v4565
        %v4634 = vunpack.c.l.b16 %v4566
        %v4635 = vunpack.c.l.b16 %v4567
        %v4636 = vunpack.c.l.b16 %v4568
        %v4637 = vunpack.c.l.b16 %v4569
        %v4638 = vunpack.c.l.b16 %v4570
        %v4639 = vunpack.c.l.b16 %v4571
        %v4640 = vunpack.c.l.b16 %v4572
        %v4641 = vunpack.c.l.b16 %v4573
        %v4642 = vpack.c.b16 %v4611, %v4610
        %v4643 = vpack.c.b16 %v4613, %v4612
        %v4644 = vpack.c.b16 %v4615, %v4614
        %v4645 = vpack.c.b16 %v4617, %v4616
        %v4646 = vpack.c.b16 %v4619, %v4618
        %v4647 = vpack.c.b16 %v4621, %v4620
        %v4648 = vpack.c.b16 %v4623, %v4622
        %v4649 = vpack.c.b16 %v4625, %v4624
        %v4650 = vpack.c.b16 %v4627, %v4626
        %v4651 = vpack.c.b16 %v4629, %v4628
        %v4652 = vpack.c.b16 %v4631, %v4630
        %v4653 = vpack.c.b16 %v4633, %v4632
        %v4654 = vpack.c.b16 %v4635, %v4634
        %v4655 = vpack.c.b16 %v4637, %v4636
        %v4656 = vpack.c.b16 %v4639, %v4638
        %v4657 = vpack.c.b16 %v4641, %v4640
        %4674 = vmatprep.subr.bf16.mxu0 0
        %4675 = vmatpush1.bf16.msra.mxu0 %v4649
        %4676 = vmatprep.subr.bf16.mxu0 0
        %4677 = vmatpush1.bf16.msra.mxu0 %v4648
        %4678 = vmatprep.subr.bf16.mxu0 0
        %4679 = vmatpush1.bf16.msra.mxu0 %v4647
        %4680 = vmatprep.subr.bf16.mxu0 0
        %4681 = vmatpush1.bf16.msra.mxu0 %v4646
        %4682 = vmatprep.subr.bf16.mxu0 0
        %4683 = vmatpush1.bf16.msra.mxu0 %v4645
        %4684 = vmatprep.subr.bf16.mxu0 0
        %4685 = vmatpush1.bf16.msra.mxu0 %v4644
        %4686 = vmatprep.subr.bf16.mxu0 0
        %4687 = vmatpush1.bf16.msra.mxu0 %v4643
        %4688 = vmatprep.subr.bf16.mxu0 0
        %4689 = vmatpush1.bf16.msra.mxu0 %v4642
        %4690 = vmatprep.subr.bf16.mxu0 0
        %4691 = vmatpush2.bf16.msra.mxu0 %v4657
        %4692 = vmatprep.subr.bf16.mxu0 0
        %4693 = vmatpush2.bf16.msra.mxu0 %v4656
        %4694 = vmatprep.subr.bf16.mxu0 0
        %4695 = vmatpush2.bf16.msra.mxu0 %v4655
        %4696 = vmatprep.subr.bf16.mxu0 0
        %4697 = vmatpush2.bf16.msra.mxu0 %v4654
        %4698 = vmatprep.subr.bf16.mxu0 0
        %4699 = vmatpush2.bf16.msra.mxu0 %v4653
        %4700 = vmatprep.subr.bf16.mxu0 0
        %4701 = vmatpush2.bf16.msra.mxu0 %v4652
        %4702 = vmatprep.subr.bf16.mxu0 0
        %4703 = vmatpush2.bf16.msra.mxu0 %v4651
        %4704 = vmatprep.subr.bf16.mxu0 0
        %4705 = vmatpush2.bf16.msra.mxu0 %v4650
        %4706 = vmatprep.mubr.bf16.mxu0 %v4526
        %4707 = vmatmul.mubr.bf16.gmra.mxu0 %v4518
        %v4708 = vpop.f32.mrf.mxu0
        %v4709 = vadd.f32 %v4577, %v4708
        %v4710 = vpop.f32.mrf.mxu0
        %v4711 = vpop.f32.mrf.mxu0
        %v4712 = vadd.f32 %v4577, %v4711
        %v4713 = vpop.f32.mrf.mxu0
        %4714 = vmatprep.mubr.bf16.mxu0 %v4527
        %4715 = vmatmul.mubr.bf16.gmra.mxu0 %v4519
        %v4716 = vpop.f32.mrf.mxu0
        %v4717 = vadd.f32 %v4577, %v4716
        %v4718 = vpop.f32.mrf.mxu0
        %v4719 = vpop.f32.mrf.mxu0
        %v4720 = vadd.f32 %v4577, %v4719
        %v4721 = vpop.f32.mrf.mxu0
        %4722 = vmatprep.mubr.bf16.mxu0 %v4528
        %4723 = vmatmul.mubr.bf16.gmra.mxu0 %v4520
        %v4724 = vpop.f32.mrf.mxu0
        %v4725 = vadd.f32 %v4577, %v4724
        %v4726 = vpop.f32.mrf.mxu0
        %v4727 = vpop.f32.mrf.mxu0
        %v4728 = vadd.f32 %v4577, %v4727
        %v4729 = vpop.f32.mrf.mxu0
        %4730 = vmatprep.mubr.bf16.mxu0 %v4529
        %4731 = vmatmul.mubr.bf16.gmra.mxu0 %v4521
        %v4732 = vpop.f32.mrf.mxu0
        %v4733 = vadd.f32 %v4577, %v4732
        %v4734 = vpop.f32.mrf.mxu0
        %v4735 = vpop.f32.mrf.mxu0
        %v4736 = vadd.f32 %v4577, %v4735
        %v4737 = vpop.f32.mrf.mxu0
        %4738 = vmatprep.mubr.bf16.mxu0 %v4530
        %4739 = vmatmul.mubr.bf16.gmra.mxu0 %v4522
        %v4740 = vpop.f32.mrf.mxu0
        %v4741 = vadd.f32 %v4577, %v4740
        %v4742 = vpop.f32.mrf.mxu0
        %v4743 = vpop.f32.mrf.mxu0
        %v4744 = vadd.f32 %v4577, %v4743
        %v4745 = vpop.f32.mrf.mxu0
        %4746 = vmatprep.mubr.bf16.mxu0 %v4531
        %4747 = vmatmul.mubr.bf16.gmra.mxu0 %v4523
        %v4748 = vpop.f32.mrf.mxu0
        %v4749 = vadd.f32 %v4577, %v4748
        %v4750 = vpop.f32.mrf.mxu0
        %v4751 = vpop.f32.mrf.mxu0
        %v4752 = vadd.f32 %v4577, %v4751
        %v4753 = vpop.f32.mrf.mxu0
        %4754 = vmatprep.mubr.bf16.mxu0 %v4532
        %4755 = vmatmul.mubr.bf16.gmra.mxu0 %v4524
        %v4756 = vpop.f32.mrf.mxu0
        %v4757 = vadd.f32 %v4577, %v4756
        %v4758 = vpop.f32.mrf.mxu0
        %v4759 = vpop.f32.mrf.mxu0
        %v4760 = vadd.f32 %v4577, %v4759
        %v4761 = vpop.f32.mrf.mxu0
        %4762 = vmatprep.mubr.bf16.mxu0 %v4533
        %4763 = vmatmul.mubr.bf16.gmra.mxu0 %v4525
        %v4764 = vpop.f32.mrf.mxu0
        %v4765 = vadd.f32 %v4577, %v4764
        %v4766 = vpop.f32.mrf.mxu0
        %v4767 = vpop.f32.mrf.mxu0
        %v4768 = vadd.f32 %v4577, %v4767
        %v4769 = vpop.f32.mrf.mxu0
        %4770 = vmatprep.mubr.bf16.mxu0 %v4534
        %4771 = vmatmul.mubr.bf16.gmra.mxu0 %v4526
        %v4772 = vpop.f32.mrf.mxu0
        %v4773 = vadd.f32 %v4577, %v4772
        %v4774 = vpop.f32.mrf.mxu0
        %v4775 = vpop.f32.mrf.mxu0
        %v4776 = vadd.f32 %v4577, %v4775
        %v4777 = vpop.f32.mrf.mxu0
        %4778 = vmatprep.mubr.bf16.mxu0 %v4535
        %4779 = vmatmul.mubr.bf16.gmra.mxu0 %v4527
        %v4780 = vpop.f32.mrf.mxu0
        %v4781 = vadd.f32 %v4577, %v4780
        %v4782 = vpop.f32.mrf.mxu0
        %v4783 = vpop.f32.mrf.mxu0
        %v4784 = vadd.f32 %v4577, %v4783
        %v4785 = vpop.f32.mrf.mxu0
        %4786 = vmatprep.mubr.bf16.mxu0 %v4536
        %4787 = vmatmul.mubr.bf16.gmra.mxu0 %v4528
        %v4788 = vpop.f32.mrf.mxu0
        %v4789 = vadd.f32 %v4577, %v4788
        %v4790 = vpop.f32.mrf.mxu0
        %v4791 = vpop.f32.mrf.mxu0
        %v4792 = vadd.f32 %v4577, %v4791
        %v4793 = vpop.f32.mrf.mxu0
        %4794 = vmatprep.mubr.bf16.mxu0 %v4537
        %4795 = vmatmul.mubr.bf16.gmra.mxu0 %v4529
        %v4796 = vpop.f32.mrf.mxu0
        %v4797 = vadd.f32 %v4577, %v4796
        %v4798 = vpop.f32.mrf.mxu0
        %v4799 = vpop.f32.mrf.mxu0
        %v4800 = vadd.f32 %v4577, %v4799
        %v4801 = vpop.f32.mrf.mxu0
        %4802 = vmatprep.mubr.bf16.mxu0 %v4538
        %4803 = vmatmul.mubr.bf16.gmra.mxu0 %v4530
        %v4804 = vpop.f32.mrf.mxu0
        %v4805 = vadd.f32 %v4577, %v4804
        %v4806 = vpop.f32.mrf.mxu0
        %v4807 = vpop.f32.mrf.mxu0
        %v4808 = vadd.f32 %v4577, %v4807
        %v4809 = vpop.f32.mrf.mxu0
        %4810 = vmatprep.mubr.bf16.mxu0 %v4539
        %4811 = vmatmul.mubr.bf16.gmra.mxu0 %v4531
        %v4812 = vpop.f32.mrf.mxu0
        %v4813 = vadd.f32 %v4577, %v4812
        %v4814 = vpop.f32.mrf.mxu0
        %v4815 = vpop.f32.mrf.mxu0
        %v4816 = vadd.f32 %v4577, %v4815
        %v4817 = vpop.f32.mrf.mxu0
        %4818 = vmatprep.mubr.bf16.mxu0 %v4540
        %4819 = vmatmul.mubr.bf16.gmra.mxu0 %v4532
        %v4820 = vpop.f32.mrf.mxu0
        %v4821 = vadd.f32 %v4577, %v4820
        %v4822 = vpop.f32.mrf.mxu0
        %v4823 = vpop.f32.mrf.mxu0
        %v4824 = vadd.f32 %v4577, %v4823
        %v4825 = vpop.f32.mrf.mxu0
        %4826 = vmatprep.mubr.bf16.mxu0 %v4541
        %4827 = vmatmul.mubr.bf16.gmra.mxu0 %v4533
        %v4828 = vpop.f32.mrf.mxu0
        %v4829 = vadd.f32 %v4577, %v4828
        %v4830 = vpop.f32.mrf.mxu0
        %v4831 = vpop.f32.mrf.mxu0
        %v4832 = vadd.f32 %v4577, %v4831
        %v4833 = vpop.f32.mrf.mxu0
        %4834 = vdwg.mxu0
        %v4835 = vmax.f32 %v4709, 0.0
        %v4836 = vmax.f32 %v4712, 0.0
        %v4837 = vmax.f32 %v4717, 0.0
        %v4838 = vmax.f32 %v4720, 0.0
        %v4839 = vmax.f32 %v4725, 0.0
        %v4840 = vmax.f32 %v4728, 0.0
        %v4841 = vmax.f32 %v4733, 0.0
        %v4842 = vmax.f32 %v4736, 0.0
        %v4843 = vmax.f32 %v4741, 0.0
        %v4844 = vmax.f32 %v4744, 0.0
        %v4845 = vmax.f32 %v4749, 0.0
        %v4846 = vmax.f32 %v4752, 0.0
        %v4847 = vmax.f32 %v4757, 0.0
        %v4848 = vmax.f32 %v4760, 0.0
        %v4849 = vmax.f32 %v4765, 0.0
        %v4850 = vmax.f32 %v4768, 0.0
        %v4851 = vmax.f32 %v4773, 0.0
        %v4852 = vmax.f32 %v4776, 0.0
        %v4853 = vmax.f32 %v4781, 0.0
        %v4854 = vmax.f32 %v4784, 0.0
        %v4855 = vmax.f32 %v4789, 0.0
        %v4856 = vmax.f32 %v4792, 0.0
        %v4857 = vmax.f32 %v4797, 0.0
        %v4858 = vmax.f32 %v4800, 0.0
        %v4859 = vmax.f32 %v4805, 0.0
        %v4860 = vmax.f32 %v4808, 0.0
        %v4861 = vmax.f32 %v4813, 0.0
        %v4862 = vmax.f32 %v4816, 0.0
        %v4863 = vmax.f32 %v4821, 0.0
        %v4864 = vmax.f32 %v4824, 0.0
        %v4865 = vmax.f32 %v4829, 0.0
        %v4866 = vmax.f32 %v4832, 0.0
        %v4867 = vld [vmem:[%s6] sm:$0xf]
        %v4868 = vld [vmem:[%s6 + $0x4] sm:$0xf]
        %v4869 = vld [vmem:[%s6 + $0x8] sm:$0xf]
        %v4870 = vld [vmem:[%s6 + $0xc] sm:$0xf]
        %v4871 = vld [vmem:[%s6 + $0x10] sm:$0xf]
        %v4872 = vld [vmem:[%s6 + $0x14] sm:$0xf]
        %v4873 = vld [vmem:[%s6 + $0x18] sm:$0xf]
        %v4874 = vld [vmem:[%s6 + $0x1c] sm:$0xf]
        %v4875 = vld [vmem:[%s6 + $0x20] sm:$0xf]
        %v4876 = vld [vmem:[%s6 + $0x24] sm:$0xf]
        %v4877 = vld [vmem:[%s6 + $0x28] sm:$0xf]
        %v4878 = vld [vmem:[%s6 + $0x2c] sm:$0xf]
        %v4879 = vld [vmem:[%s6 + $0x30] sm:$0xf]
        %v4880 = vld [vmem:[%s6 + $0x34] sm:$0xf]
        %v4881 = vld [vmem:[%s6 + $0x38] sm:$0xf]
        %v4882 = vld [vmem:[%s6 + $0x3c] sm:$0xf]
        %v4883 = vld [vmem:[%s6 + $0x40] sm:$0xf]
        %v4884 = vld [vmem:[%s6 + $0x44] sm:$0xf]
        %v4885 = vld [vmem:[%s6 + $0x48] sm:$0xf]
        %v4886 = vld [vmem:[%s6 + $0x4c] sm:$0xf]
        %v4887 = vld [vmem:[%s6 + $0x50] sm:$0xf]
        %v4888 = vld [vmem:[%s6 + $0x54] sm:$0xf]
        %v4889 = vld [vmem:[%s6 + $0x58] sm:$0xf]
        %v4890 = vld [vmem:[%s6 + $0x5c] sm:$0xf]
        %v4891 = vld [vmem:[%s6 + $0x60] sm:$0xf]
        %v4892 = vld [vmem:[%s6 + $0x64] sm:$0xf]
        %v4893 = vld [vmem:[%s6 + $0x68] sm:$0xf]
        %v4894 = vld [vmem:[%s6 + $0x6c] sm:$0xf]
        %v4895 = vld [vmem:[%s6 + $0x70] sm:$0xf]
        %v4896 = vld [vmem:[%s6 + $0x74] sm:$0xf]
        %v4897 = vld [vmem:[%s6 + $0x78] sm:$0xf]
        %v4898 = vld [vmem:[%s6 + $0x7c] sm:$0xf]
        %v4899 = vpack.c.bf16 %v4836, %v4835
        %v4900 = vpack.c.bf16 %v4838, %v4837
        %v4901 = vpack.c.bf16 %v4840, %v4839
        %v4902 = vpack.c.bf16 %v4842, %v4841
        %v4903 = vpack.c.bf16 %v4844, %v4843
        %v4904 = vpack.c.bf16 %v4846, %v4845
        %v4905 = vpack.c.bf16 %v4848, %v4847
        %v4906 = vpack.c.bf16 %v4850, %v4849
        %v4907 = vpack.c.bf16 %v4852, %v4851
        %v4908 = vpack.c.bf16 %v4854, %v4853
        %v4909 = vpack.c.bf16 %v4856, %v4855
        %v4910 = vpack.c.bf16 %v4858, %v4857
        %v4911 = vpack.c.bf16 %v4860, %v4859
        %v4912 = vpack.c.bf16 %v4862, %v4861
        %v4913 = vpack.c.bf16 %v4864, %v4863
        %v4914 = vpack.c.bf16 %v4866, %v4865
        %v4931 = vunpack.c.l.b16 %v4867
        %v4932 = vunpack.c.l.b16 %v4868
        %v4933 = vunpack.c.l.b16 %v4869
        %v4934 = vunpack.c.l.b16 %v4870
        %v4935 = vunpack.c.l.b16 %v4871
        %v4936 = vunpack.c.l.b16 %v4872
        %v4937 = vunpack.c.l.b16 %v4873
        %v4938 = vunpack.c.l.b16 %v4874
        %v4939 = vunpack.c.l.b16 %v4875
        %v4940 = vunpack.c.l.b16 %v4876
        %v4941 = vunpack.c.l.b16 %v4877
        %v4942 = vunpack.c.l.b16 %v4878
        %v4943 = vunpack.c.l.b16 %v4879
        %v4944 = vunpack.c.l.b16 %v4880
        %v4945 = vunpack.c.l.b16 %v4881
        %v4946 = vunpack.c.l.b16 %v4882
        %v4947 = vpack.c.b16 %v4932, %v4931
        %v4948 = vpack.c.b16 %v4934, %v4933
        %v4949 = vpack.c.b16 %v4936, %v4935
        %v4950 = vpack.c.b16 %v4938, %v4937
        %v4951 = vpack.c.b16 %v4940, %v4939
        %v4952 = vpack.c.b16 %v4942, %v4941
        %v4953 = vpack.c.b16 %v4944, %v4943
        %v4954 = vpack.c.b16 %v4946, %v4945
        %4963 = vmatprep.subr.bf16.mxu0 0
        %4964 = vmatpush1.bf16.msra.mxu0 %v4954
        %4965 = vmatprep.subr.bf16.mxu0 0
        %4966 = vmatpush1.bf16.msra.mxu0 %v4953
        %4967 = vmatprep.subr.bf16.mxu0 0
        %4968 = vmatpush1.bf16.msra.mxu0 %v4952
        %4969 = vmatprep.subr.bf16.mxu0 0
        %4970 = vmatpush1.bf16.msra.mxu0 %v4951
        %4971 = vmatprep.subr.bf16.mxu0 0
        %4972 = vmatpush1.bf16.msra.mxu0 %v4950
        %4973 = vmatprep.subr.bf16.mxu0 0
        %4974 = vmatpush1.bf16.msra.mxu0 %v4949
        %4975 = vmatprep.subr.bf16.mxu0 0
        %4976 = vmatpush1.bf16.msra.mxu0 %v4948
        %4977 = vmatprep.subr.bf16.mxu0 0
        %4978 = vmatpush1.bf16.msra.mxu0 %v4947
        %4979 = vmatprep.subr.bf16.mxu0 0
        %4980 = vmatpush2.bf16.msra.mxu0 0
        %4981 = vmatprep.subr.bf16.mxu0 0
        %4982 = vmatpush2.bf16.msra.mxu0 0
        %4983 = vmatprep.subr.bf16.mxu0 0
        %4984 = vmatpush2.bf16.msra.mxu0 0
        %4985 = vmatprep.subr.bf16.mxu0 0
        %4986 = vmatpush2.bf16.msra.mxu0 0
        %4987 = vmatprep.subr.bf16.mxu0 0
        %4988 = vmatpush2.bf16.msra.mxu0 0
        %4989 = vmatprep.subr.bf16.mxu0 0
        %4990 = vmatpush2.bf16.msra.mxu0 0
        %4991 = vmatprep.subr.bf16.mxu0 0
        %4992 = vmatpush2.bf16.msra.mxu0 0
        %4993 = vmatprep.subr.bf16.mxu0 0
        %4994 = vmatpush2.bf16.msra.mxu0 0
        %4995 = vmatprep.mubr.bf16.mxu0 0
        %4996 = vmatmul.mubr.bf16.gmra.mxu0 %v4899
        %v4997 = vpop.f32.mrf.mxu0
        %v4998 = vadd.f32 0.0, %v4997
        %v4999 = vpop.f32.mrf.mxu0
        %v5000 = vpop.f32.mrf.mxu0
        %v5001 = vadd.f32 0.0, %v5000
        %v5002 = vpop.f32.mrf.mxu0
        %5003 = vmatprep.mubr.bf16.mxu0 0
        %5004 = vmatmul.mubr.bf16.gmra.mxu0 %v4900
        %v5005 = vpop.f32.mrf.mxu0
        %v5006 = vadd.f32 0.0, %v5005
        %v5007 = vpop.f32.mrf.mxu0
        %v5008 = vpop.f32.mrf.mxu0
        %v5009 = vadd.f32 0.0, %v5008
        %v5010 = vpop.f32.mrf.mxu0
        %5011 = vmatprep.mubr.bf16.mxu0 0
        %5012 = vmatmul.mubr.bf16.gmra.mxu0 %v4901
        %v5013 = vpop.f32.mrf.mxu0
        %v5014 = vadd.f32 0.0, %v5013
        %v5015 = vpop.f32.mrf.mxu0
        %v5016 = vpop.f32.mrf.mxu0
        %v5017 = vadd.f32 0.0, %v5016
        %v5018 = vpop.f32.mrf.mxu0
        %5019 = vmatprep.mubr.bf16.mxu0 0
        %5020 = vmatmul.mubr.bf16.gmra.mxu0 %v4902
        %v5021 = vpop.f32.mrf.mxu0
        %v5022 = vadd.f32 0.0, %v5021
        %v5023 = vpop.f32.mrf.mxu0
        %v5024 = vpop.f32.mrf.mxu0
        %v5025 = vadd.f32 0.0, %v5024
        %v5026 = vpop.f32.mrf.mxu0
        %5027 = vmatprep.mubr.bf16.mxu0 0
        %5028 = vmatmul.mubr.bf16.gmra.mxu0 %v4903
        %v5029 = vpop.f32.mrf.mxu0
        %v5030 = vadd.f32 0.0, %v5029
        %v5031 = vpop.f32.mrf.mxu0
        %v5032 = vpop.f32.mrf.mxu0
        %v5033 = vadd.f32 0.0, %v5032
        %v5034 = vpop.f32.mrf.mxu0
        %5035 = vmatprep.mubr.bf16.mxu0 0
        %5036 = vmatmul.mubr.bf16.gmra.mxu0 %v4904
        %v5037 = vpop.f32.mrf.mxu0
        %v5038 = vadd.f32 0.0, %v5037
        %v5039 = vpop.f32.mrf.mxu0
        %v5040 = vpop.f32.mrf.mxu0
        %v5041 = vadd.f32 0.0, %v5040
        %v5042 = vpop.f32.mrf.mxu0
        %5043 = vmatprep.mubr.bf16.mxu0 0
        %5044 = vmatmul.mubr.bf16.gmra.mxu0 %v4905
        %v5045 = vpop.f32.mrf.mxu0
        %v5046 = vadd.f32 0.0, %v5045
        %v5047 = vpop.f32.mrf.mxu0
        %v5048 = vpop.f32.mrf.mxu0
        %v5049 = vadd.f32 0.0, %v5048
        %v5050 = vpop.f32.mrf.mxu0
        %5051 = vmatprep.mubr.bf16.mxu0 0
        %5052 = vmatmul.mubr.bf16.gmra.mxu0 %v4906
        %v5053 = vpop.f32.mrf.mxu0
        %v5054 = vadd.f32 0.0, %v5053
        %v5055 = vpop.f32.mrf.mxu0
        %v5056 = vpop.f32.mrf.mxu0
        %v5057 = vadd.f32 0.0, %v5056
        %v5058 = vpop.f32.mrf.mxu0
        %5059 = vmatprep.mubr.bf16.mxu0 0
        %5060 = vmatmul.mubr.bf16.gmra.mxu0 %v4907
        %v5061 = vpop.f32.mrf.mxu0
        %v5062 = vadd.f32 0.0, %v5061
        %v5063 = vpop.f32.mrf.mxu0
        %v5064 = vpop.f32.mrf.mxu0
        %v5065 = vadd.f32 0.0, %v5064
        %v5066 = vpop.f32.mrf.mxu0
        %5067 = vmatprep.mubr.bf16.mxu0 0
        %5068 = vmatmul.mubr.bf16.gmra.mxu0 %v4908
        %v5069 = vpop.f32.mrf.mxu0
        %v5070 = vadd.f32 0.0, %v5069
        %v5071 = vpop.f32.mrf.mxu0
        %v5072 = vpop.f32.mrf.mxu0
        %v5073 = vadd.f32 0.0, %v5072
        %v5074 = vpop.f32.mrf.mxu0
        %5075 = vmatprep.mubr.bf16.mxu0 0
        %5076 = vmatmul.mubr.bf16.gmra.mxu0 %v4909
        %v5077 = vpop.f32.mrf.mxu0
        %v5078 = vadd.f32 0.0, %v5077
        %v5079 = vpop.f32.mrf.mxu0
        %v5080 = vpop.f32.mrf.mxu0
        %v5081 = vadd.f32 0.0, %v5080
        %v5082 = vpop.f32.mrf.mxu0
        %5083 = vmatprep.mubr.bf16.mxu0 0
        %5084 = vmatmul.mubr.bf16.gmra.mxu0 %v4910
        %v5085 = vpop.f32.mrf.mxu0
        %v5086 = vadd.f32 0.0, %v5085
        %v5087 = vpop.f32.mrf.mxu0
        %v5088 = vpop.f32.mrf.mxu0
        %v5089 = vadd.f32 0.0, %v5088
        %v5090 = vpop.f32.mrf.mxu0
        %5091 = vmatprep.mubr.bf16.mxu0 0
        %5092 = vmatmul.mubr.bf16.gmra.mxu0 %v4911
        %v5093 = vpop.f32.mrf.mxu0
        %v5094 = vadd.f32 0.0, %v5093
        %v5095 = vpop.f32.mrf.mxu0
        %v5096 = vpop.f32.mrf.mxu0
        %v5097 = vadd.f32 0.0, %v5096
        %v5098 = vpop.f32.mrf.mxu0
        %5099 = vmatprep.mubr.bf16.mxu0 0
        %5100 = vmatmul.mubr.bf16.gmra.mxu0 %v4912
        %v5101 = vpop.f32.mrf.mxu0
        %v5102 = vadd.f32 0.0, %v5101
        %v5103 = vpop.f32.mrf.mxu0
        %v5104 = vpop.f32.mrf.mxu0
        %v5105 = vadd.f32 0.0, %v5104
        %v5106 = vpop.f32.mrf.mxu0
        %5107 = vmatprep.mubr.bf16.mxu0 0
        %5108 = vmatmul.mubr.bf16.gmra.mxu0 %v4913
        %v5109 = vpop.f32.mrf.mxu0
        %v5110 = vadd.f32 0.0, %v5109
        %v5111 = vpop.f32.mrf.mxu0
        %v5112 = vpop.f32.mrf.mxu0
        %v5113 = vadd.f32 0.0, %v5112
        %v5114 = vpop.f32.mrf.mxu0
        %5115 = vmatprep.mubr.bf16.mxu0 0
        %5116 = vmatmul.mubr.bf16.gmra.mxu0 %v4914
        %v5117 = vpop.f32.mrf.mxu0
        %v5118 = vadd.f32 0.0, %v5117
        %v5119 = vpop.f32.mrf.mxu0
        %v5120 = vpop.f32.mrf.mxu0
        %v5121 = vadd.f32 0.0, %v5120
        %v5122 = vpop.f32.mrf.mxu0
        %5123 = vdwg.mxu0
        %v5124 = vadd.f32 %v4835, %v4998
        %v5125 = vadd.f32 %v4836, %v5001
        %v5126 = vadd.f32 %v4837, %v5006
        %v5127 = vadd.f32 %v4838, %v5009
        %v5128 = vadd.f32 %v4839, %v5014
        %v5129 = vadd.f32 %v4840, %v5017
        %v5130 = vadd.f32 %v4841, %v5022
        %v5131 = vadd.f32 %v4842, %v5025
        %v5132 = vadd.f32 %v4843, %v5030
        %v5133 = vadd.f32 %v4844, %v5033
        %v5134 = vadd.f32 %v4845, %v5038
        %v5135 = vadd.f32 %v4846, %v5041
        %v5136 = vadd.f32 %v4847, %v5046
        %v5137 = vadd.f32 %v4848, %v5049
        %v5138 = vadd.f32 %v4849, %v5054
        %v5139 = vadd.f32 %v4850, %v5057
        %v5140 = vadd.f32 %v4851, %v5062
        %v5141 = vadd.f32 %v4852, %v5065
        %v5142 = vadd.f32 %v4853, %v5070
        %v5143 = vadd.f32 %v4854, %v5073
        %v5144 = vadd.f32 %v4855, %v5078
        %v5145 = vadd.f32 %v4856, %v5081
        %v5146 = vadd.f32 %v4857, %v5086
        %v5147 = vadd.f32 %v4858, %v5089
        %v5148 = vadd.f32 %v4859, %v5094
        %v5149 = vadd.f32 %v4860, %v5097
        %v5150 = vadd.f32 %v4861, %v5102
        %v5151 = vadd.f32 %v4862, %v5105
        %v5152 = vadd.f32 %v4863, %v5110
        %v5153 = vadd.f32 %v4864, %v5113
        %v5154 = vadd.f32 %v4865, %v5118
        %v5155 = vadd.f32 %v4866, %v5121
        %v5156 = vlaneseq
        %v5157 = vshrl.u32 %v5156, 7
        %v5158 = vsub.s32 1, %v5157
        %v5159 = vrot.slane %v726, %v5158
        %v5160 = vadd.f32 %v5124, %v5159
        %v5161 = vadd.f32 %v5125, %v5159
        %v5162 = vadd.f32 %v5126, %v5159
        %v5163 = vadd.f32 %v5127, %v5159
        %v5164 = vadd.f32 %v5128, %v5159
        %v5165 = vadd.f32 %v5129, %v5159
        %v5166 = vadd.f32 %v5130, %v5159
        %v5167 = vadd.f32 %v5131, %v5159
        %v5168 = vadd.f32 %v5132, %v5159
        %v5169 = vadd.f32 %v5133, %v5159
        %v5170 = vadd.f32 %v5134, %v5159
        %v5171 = vadd.f32 %v5135, %v5159
        %v5172 = vadd.f32 %v5136, %v5159
        %v5173 = vadd.f32 %v5137, %v5159
        %v5174 = vadd.f32 %v5138, %v5159
        %v5175 = vadd.f32 %v5139, %v5159
        %v5176 = vadd.f32 %v5140, %v5159
        %v5177 = vadd.f32 %v5141, %v5159
        %v5178 = vadd.f32 %v5142, %v5159
        %v5179 = vadd.f32 %v5143, %v5159
        %v5180 = vadd.f32 %v5144, %v5159
        %v5181 = vadd.f32 %v5145, %v5159
        %v5182 = vadd.f32 %v5146, %v5159
        %v5183 = vadd.f32 %v5147, %v5159
        %v5184 = vadd.f32 %v5148, %v5159
        %v5185 = vadd.f32 %v5149, %v5159
        %v5186 = vadd.f32 %v5150, %v5159
        %v5187 = vadd.f32 %v5151, %v5159
        %v5188 = vadd.f32 %v5152, %v5159
        %v5189 = vadd.f32 %v5153, %v5159
        %v5190 = vadd.f32 %v5154, %v5159
        %v5191 = vadd.f32 %v5155, %v5159
        %v5192 = vmax.f32 %v5160, 0.0
        %v5193 = vmax.f32 %v5161, 0.0
        %v5194 = vmax.f32 %v5162, 0.0
        %v5195 = vmax.f32 %v5163, 0.0
        %v5196 = vmax.f32 %v5164, 0.0
        %v5197 = vmax.f32 %v5165, 0.0
        %v5198 = vmax.f32 %v5166, 0.0
        %v5199 = vmax.f32 %v5167, 0.0
        %v5200 = vmax.f32 %v5168, 0.0
        %v5201 = vmax.f32 %v5169, 0.0
        %v5202 = vmax.f32 %v5170, 0.0
        %v5203 = vmax.f32 %v5171, 0.0
        %v5204 = vmax.f32 %v5172, 0.0
        %v5205 = vmax.f32 %v5173, 0.0
        %v5206 = vmax.f32 %v5174, 0.0
        %v5207 = vmax.f32 %v5175, 0.0
        %v5208 = vmax.f32 %v5176, 0.0
        %v5209 = vmax.f32 %v5177, 0.0
        %v5210 = vmax.f32 %v5178, 0.0
        %v5211 = vmax.f32 %v5179, 0.0
        %v5212 = vmax.f32 %v5180, 0.0
        %v5213 = vmax.f32 %v5181, 0.0
        %v5214 = vmax.f32 %v5182, 0.0
        %v5215 = vmax.f32 %v5183, 0.0
        %v5216 = vmax.f32 %v5184, 0.0
        %v5217 = vmax.f32 %v5185, 0.0
        %v5218 = vmax.f32 %v5186, 0.0
        %v5219 = vmax.f32 %v5187, 0.0
        %v5220 = vmax.f32 %v5188, 0.0
        %v5221 = vmax.f32 %v5189, 0.0
        %v5222 = vmax.f32 %v5190, 0.0
        %v5223 = vmax.f32 %v5191, 0.0
        %v5224 = vpack.c.bf16 %v5193, %v5192
        %v5225 = vpack.c.bf16 %v5195, %v5194
        %v5226 = vpack.c.bf16 %v5197, %v5196
        %v5227 = vpack.c.bf16 %v5199, %v5198
        %v5228 = vpack.c.bf16 %v5201, %v5200
        %v5229 = vpack.c.bf16 %v5203, %v5202
        %v5230 = vpack.c.bf16 %v5205, %v5204
        %v5231 = vpack.c.bf16 %v5207, %v5206
        %v5232 = vpack.c.bf16 %v5209, %v5208
        %v5233 = vpack.c.bf16 %v5211, %v5210
        %v5234 = vpack.c.bf16 %v5213, %v5212
        %v5235 = vpack.c.bf16 %v5215, %v5214
        %v5236 = vpack.c.bf16 %v5217, %v5216
        %v5237 = vpack.c.bf16 %v5219, %v5218
        %v5238 = vpack.c.bf16 %v5221, %v5220
        %v5239 = vpack.c.bf16 %v5223, %v5222
        %v5256 = vunpack.c.l.b16 %v4883
        %v5257 = vunpack.c.l.b16 %v4884
        %v5258 = vunpack.c.l.b16 %v4885
        %v5259 = vunpack.c.l.b16 %v4886
        %v5260 = vunpack.c.l.b16 %v4887
        %v5261 = vunpack.c.l.b16 %v4888
        %v5262 = vunpack.c.l.b16 %v4889
        %v5263 = vunpack.c.l.b16 %v4890
        %v5264 = vunpack.c.l.b16 %v4891
        %v5265 = vunpack.c.l.b16 %v4892
        %v5266 = vunpack.c.l.b16 %v4893
        %v5267 = vunpack.c.l.b16 %v4894
        %v5268 = vunpack.c.l.b16 %v4895
        %v5269 = vunpack.c.l.b16 %v4896
        %v5270 = vunpack.c.l.b16 %v4897
        %v5271 = vunpack.c.l.b16 %v4898
        %v5272 = vpack.c.b16 %v5257, %v5256
        %v5273 = vpack.c.b16 %v5259, %v5258
        %v5274 = vpack.c.b16 %v5261, %v5260
        %v5275 = vpack.c.b16 %v5263, %v5262
        %v5276 = vpack.c.b16 %v5265, %v5264
        %v5277 = vpack.c.b16 %v5267, %v5266
        %v5278 = vpack.c.b16 %v5269, %v5268
        %v5279 = vpack.c.b16 %v5271, %v5270
        %5288 = vmatprep.subr.bf16.mxu0 0
        %5289 = vmatpush1.bf16.msra.mxu0 %v5279
        %5290 = vmatprep.subr.bf16.mxu0 0
        %5291 = vmatpush1.bf16.msra.mxu0 %v5278
        %5292 = vmatprep.subr.bf16.mxu0 0
        %5293 = vmatpush1.bf16.msra.mxu0 %v5277
        %5294 = vmatprep.subr.bf16.mxu0 0
        %5295 = vmatpush1.bf16.msra.mxu0 %v5276
        %5296 = vmatprep.subr.bf16.mxu0 0
        %5297 = vmatpush1.bf16.msra.mxu0 %v5275
        %5298 = vmatprep.subr.bf16.mxu0 0
        %5299 = vmatpush1.bf16.msra.mxu0 %v5274
        %5300 = vmatprep.subr.bf16.mxu0 0
        %5301 = vmatpush1.bf16.msra.mxu0 %v5273
        %5302 = vmatprep.subr.bf16.mxu0 0
        %5303 = vmatpush1.bf16.msra.mxu0 %v5272
        %5304 = vmatprep.subr.bf16.mxu0 0
        %5305 = vmatpush2.bf16.msra.mxu0 0
        %5306 = vmatprep.subr.bf16.mxu0 0
        %5307 = vmatpush2.bf16.msra.mxu0 0
        %5308 = vmatprep.subr.bf16.mxu0 0
        %5309 = vmatpush2.bf16.msra.mxu0 0
        %5310 = vmatprep.subr.bf16.mxu0 0
        %5311 = vmatpush2.bf16.msra.mxu0 0
        %5312 = vmatprep.subr.bf16.mxu0 0
        %5313 = vmatpush2.bf16.msra.mxu0 0
        %5314 = vmatprep.subr.bf16.mxu0 0
        %5315 = vmatpush2.bf16.msra.mxu0 0
        %5316 = vmatprep.subr.bf16.mxu0 0
        %5317 = vmatpush2.bf16.msra.mxu0 0
        %5318 = vmatprep.subr.bf16.mxu0 0
        %5319 = vmatpush2.bf16.msra.mxu0 0
        %5320 = vmatprep.mubr.bf16.mxu0 0
        %5321 = vmatmul.mubr.bf16.gmra.mxu0 %v5224
        %v5322 = vpop.f32.mrf.mxu0
        %v5323 = vadd.f32 0.0, %v5322
        %v5324 = vpop.f32.mrf.mxu0
        %v5325 = vpop.f32.mrf.mxu0
        %v5326 = vadd.f32 0.0, %v5325
        %v5327 = vpop.f32.mrf.mxu0
        %5328 = vmatprep.mubr.bf16.mxu0 0
        %5329 = vmatmul.mubr.bf16.gmra.mxu0 %v5225
        %v5330 = vpop.f32.mrf.mxu0
        %v5331 = vadd.f32 0.0, %v5330
        %v5332 = vpop.f32.mrf.mxu0
        %v5333 = vpop.f32.mrf.mxu0
        %v5334 = vadd.f32 0.0, %v5333
        %v5335 = vpop.f32.mrf.mxu0
        %5336 = vmatprep.mubr.bf16.mxu0 0
        %5337 = vmatmul.mubr.bf16.gmra.mxu0 %v5226
        %v5338 = vpop.f32.mrf.mxu0
        %v5339 = vadd.f32 0.0, %v5338
        %v5340 = vpop.f32.mrf.mxu0
        %v5341 = vpop.f32.mrf.mxu0
        %v5342 = vadd.f32 0.0, %v5341
        %v5343 = vpop.f32.mrf.mxu0
        %5344 = vmatprep.mubr.bf16.mxu0 0
        %5345 = vmatmul.mubr.bf16.gmra.mxu0 %v5227
        %v5346 = vpop.f32.mrf.mxu0
        %v5347 = vadd.f32 0.0, %v5346
        %v5348 = vpop.f32.mrf.mxu0
        %v5349 = vpop.f32.mrf.mxu0
        %v5350 = vadd.f32 0.0, %v5349
        %v5351 = vpop.f32.mrf.mxu0
        %5352 = vmatprep.mubr.bf16.mxu0 0
        %5353 = vmatmul.mubr.bf16.gmra.mxu0 %v5228
        %v5354 = vpop.f32.mrf.mxu0
        %v5355 = vadd.f32 0.0, %v5354
        %v5356 = vpop.f32.mrf.mxu0
        %v5357 = vpop.f32.mrf.mxu0
        %v5358 = vadd.f32 0.0, %v5357
        %v5359 = vpop.f32.mrf.mxu0
        %5360 = vmatprep.mubr.bf16.mxu0 0
        %5361 = vmatmul.mubr.bf16.gmra.mxu0 %v5229
        %v5362 = vpop.f32.mrf.mxu0
        %v5363 = vadd.f32 0.0, %v5362
        %v5364 = vpop.f32.mrf.mxu0
        %v5365 = vpop.f32.mrf.mxu0
        %v5366 = vadd.f32 0.0, %v5365
        %v5367 = vpop.f32.mrf.mxu0
        %5368 = vmatprep.mubr.bf16.mxu0 0
        %5369 = vmatmul.mubr.bf16.gmra.mxu0 %v5230
        %v5370 = vpop.f32.mrf.mxu0
        %v5371 = vadd.f32 0.0, %v5370
        %v5372 = vpop.f32.mrf.mxu0
        %v5373 = vpop.f32.mrf.mxu0
        %v5374 = vadd.f32 0.0, %v5373
        %v5375 = vpop.f32.mrf.mxu0
        %5376 = vmatprep.mubr.bf16.mxu0 0
        %5377 = vmatmul.mubr.bf16.gmra.mxu0 %v5231
        %v5378 = vpop.f32.mrf.mxu0
        %v5379 = vadd.f32 0.0, %v5378
        %v5380 = vpop.f32.mrf.mxu0
        %v5381 = vpop.f32.mrf.mxu0
        %v5382 = vadd.f32 0.0, %v5381
        %v5383 = vpop.f32.mrf.mxu0
        %5384 = vmatprep.mubr.bf16.mxu0 0
        %5385 = vmatmul.mubr.bf16.gmra.mxu0 %v5232
        %v5386 = vpop.f32.mrf.mxu0
        %v5387 = vadd.f32 0.0, %v5386
        %v5388 = vpop.f32.mrf.mxu0
        %v5389 = vpop.f32.mrf.mxu0
        %v5390 = vadd.f32 0.0, %v5389
        %v5391 = vpop.f32.mrf.mxu0
        %5392 = vmatprep.mubr.bf16.mxu0 0
        %5393 = vmatmul.mubr.bf16.gmra.mxu0 %v5233
        %v5394 = vpop.f32.mrf.mxu0
        %v5395 = vadd.f32 0.0, %v5394
        %v5396 = vpop.f32.mrf.mxu0
        %v5397 = vpop.f32.mrf.mxu0
        %v5398 = vadd.f32 0.0, %v5397
        %v5399 = vpop.f32.mrf.mxu0
        %5400 = vmatprep.mubr.bf16.mxu0 0
        %5401 = vmatmul.mubr.bf16.gmra.mxu0 %v5234
        %v5402 = vpop.f32.mrf.mxu0
        %v5403 = vadd.f32 0.0, %v5402
        %v5404 = vpop.f32.mrf.mxu0
        %v5405 = vpop.f32.mrf.mxu0
        %v5406 = vadd.f32 0.0, %v5405
        %v5407 = vpop.f32.mrf.mxu0
        %5408 = vmatprep.mubr.bf16.mxu0 0
        %5409 = vmatmul.mubr.bf16.gmra.mxu0 %v5235
        %v5410 = vpop.f32.mrf.mxu0
        %v5411 = vadd.f32 0.0, %v5410
        %v5412 = vpop.f32.mrf.mxu0
        %v5413 = vpop.f32.mrf.mxu0
        %v5414 = vadd.f32 0.0, %v5413
        %v5415 = vpop.f32.mrf.mxu0
        %5416 = vmatprep.mubr.bf16.mxu0 0
        %5417 = vmatmul.mubr.bf16.gmra.mxu0 %v5236
        %v5418 = vpop.f32.mrf.mxu0
        %v5419 = vadd.f32 0.0, %v5418
        %v5420 = vpop.f32.mrf.mxu0
        %v5421 = vpop.f32.mrf.mxu0
        %v5422 = vadd.f32 0.0, %v5421
        %v5423 = vpop.f32.mrf.mxu0
        %5424 = vmatprep.mubr.bf16.mxu0 0
        %5425 = vmatmul.mubr.bf16.gmra.mxu0 %v5237
        %v5426 = vpop.f32.mrf.mxu0
        %v5427 = vadd.f32 0.0, %v5426
        %v5428 = vpop.f32.mrf.mxu0
        %v5429 = vpop.f32.mrf.mxu0
        %v5430 = vadd.f32 0.0, %v5429
        %v5431 = vpop.f32.mrf.mxu0
        %5432 = vmatprep.mubr.bf16.mxu0 0
        %5433 = vmatmul.mubr.bf16.gmra.mxu0 %v5238
        %v5434 = vpop.f32.mrf.mxu0
        %v5435 = vadd.f32 0.0, %v5434
        %v5436 = vpop.f32.mrf.mxu0
        %v5437 = vpop.f32.mrf.mxu0
        %v5438 = vadd.f32 0.0, %v5437
        %v5439 = vpop.f32.mrf.mxu0
        %5440 = vmatprep.mubr.bf16.mxu0 0
        %5441 = vmatmul.mubr.bf16.gmra.mxu0 %v5239
        %v5442 = vpop.f32.mrf.mxu0
        %v5443 = vadd.f32 0.0, %v5442
        %v5444 = vpop.f32.mrf.mxu0
        %v5445 = vpop.f32.mrf.mxu0
        %v5446 = vadd.f32 0.0, %v5445
        %v5447 = vpop.f32.mrf.mxu0
        %5448 = vdwg.mxu0
        %v5449 = vadd.f32 %v5192, %v5323
        %v5450 = vadd.f32 %v5193, %v5326
        %v5451 = vadd.f32 %v5194, %v5331
        %v5452 = vadd.f32 %v5195, %v5334
        %v5453 = vadd.f32 %v5196, %v5339
        %v5454 = vadd.f32 %v5197, %v5342
        %v5455 = vadd.f32 %v5198, %v5347
        %v5456 = vadd.f32 %v5199, %v5350
        %v5457 = vadd.f32 %v5200, %v5355
        %v5458 = vadd.f32 %v5201, %v5358
        %v5459 = vadd.f32 %v5202, %v5363
        %v5460 = vadd.f32 %v5203, %v5366
        %v5461 = vadd.f32 %v5204, %v5371
        %v5462 = vadd.f32 %v5205, %v5374
        %v5463 = vadd.f32 %v5206, %v5379
        %v5464 = vadd.f32 %v5207, %v5382
        %v5465 = vadd.f32 %v5208, %v5387
        %v5466 = vadd.f32 %v5209, %v5390
        %v5467 = vadd.f32 %v5210, %v5395
        %v5468 = vadd.f32 %v5211, %v5398
        %v5469 = vadd.f32 %v5212, %v5403
        %v5470 = vadd.f32 %v5213, %v5406
        %v5471 = vadd.f32 %v5214, %v5411
        %v5472 = vadd.f32 %v5215, %v5414
        %v5473 = vadd.f32 %v5216, %v5419
        %v5474 = vadd.f32 %v5217, %v5422
        %v5475 = vadd.f32 %v5218, %v5427
        %v5476 = vadd.f32 %v5219, %v5430
        %v5477 = vadd.f32 %v5220, %v5435
        %v5478 = vadd.f32 %v5221, %v5438
        %v5479 = vadd.f32 %v5222, %v5443
        %v5480 = vadd.f32 %v5223, %v5446
        %v5481 = vlaneseq
        %v5482 = vshrl.u32 %v5481, 7
        %v5483 = vsub.s32 2, %v5482
        %v5484 = vrot.slane %v726, %v5483
        %v5485 = vadd.f32 %v5449, %v5484
        %v5486 = vadd.f32 %v5450, %v5484
        %v5487 = vadd.f32 %v5451, %v5484
        %v5488 = vadd.f32 %v5452, %v5484
        %v5489 = vadd.f32 %v5453, %v5484
        %v5490 = vadd.f32 %v5454, %v5484
        %v5491 = vadd.f32 %v5455, %v5484
        %v5492 = vadd.f32 %v5456, %v5484
        %v5493 = vadd.f32 %v5457, %v5484
        %v5494 = vadd.f32 %v5458, %v5484
        %v5495 = vadd.f32 %v5459, %v5484
        %v5496 = vadd.f32 %v5460, %v5484
        %v5497 = vadd.f32 %v5461, %v5484
        %v5498 = vadd.f32 %v5462, %v5484
        %v5499 = vadd.f32 %v5463, %v5484
        %v5500 = vadd.f32 %v5464, %v5484
        %v5501 = vadd.f32 %v5465, %v5484
        %v5502 = vadd.f32 %v5466, %v5484
        %v5503 = vadd.f32 %v5467, %v5484
        %v5504 = vadd.f32 %v5468, %v5484
        %v5505 = vadd.f32 %v5469, %v5484
        %v5506 = vadd.f32 %v5470, %v5484
        %v5507 = vadd.f32 %v5471, %v5484
        %v5508 = vadd.f32 %v5472, %v5484
        %v5509 = vadd.f32 %v5473, %v5484
        %v5510 = vadd.f32 %v5474, %v5484
        %v5511 = vadd.f32 %v5475, %v5484
        %v5512 = vadd.f32 %v5476, %v5484
        %v5513 = vadd.f32 %v5477, %v5484
        %v5514 = vadd.f32 %v5478, %v5484
        %v5515 = vadd.f32 %v5479, %v5484
        %v5516 = vadd.f32 %v5480, %v5484
        %v5517 = vmax.f32 %v5485, 0.0
        %v5518 = vmax.f32 %v5486, 0.0
        %v5519 = vmax.f32 %v5487, 0.0
        %v5520 = vmax.f32 %v5488, 0.0
        %v5521 = vmax.f32 %v5489, 0.0
        %v5522 = vmax.f32 %v5490, 0.0
        %v5523 = vmax.f32 %v5491, 0.0
        %v5524 = vmax.f32 %v5492, 0.0
        %v5525 = vmax.f32 %v5493, 0.0
        %v5526 = vmax.f32 %v5494, 0.0
        %v5527 = vmax.f32 %v5495, 0.0
        %v5528 = vmax.f32 %v5496, 0.0
        %v5529 = vmax.f32 %v5497, 0.0
        %v5530 = vmax.f32 %v5498, 0.0
        %v5531 = vmax.f32 %v5499, 0.0
        %v5532 = vmax.f32 %v5500, 0.0
        %v5533 = vmax.f32 %v5501, 0.0
        %v5534 = vmax.f32 %v5502, 0.0
        %v5535 = vmax.f32 %v5503, 0.0
        %v5536 = vmax.f32 %v5504, 0.0
        %v5537 = vmax.f32 %v5505, 0.0
        %v5538 = vmax.f32 %v5506, 0.0
        %v5539 = vmax.f32 %v5507, 0.0
        %v5540 = vmax.f32 %v5508, 0.0
        %v5541 = vmax.f32 %v5509, 0.0
        %v5542 = vmax.f32 %v5510, 0.0
        %v5543 = vmax.f32 %v5511, 0.0
        %v5544 = vmax.f32 %v5512, 0.0
        %v5545 = vmax.f32 %v5513, 0.0
        %v5546 = vmax.f32 %v5514, 0.0
        %v5547 = vmax.f32 %v5515, 0.0
        %v5548 = vmax.f32 %v5516, 0.0
        %v5549 = vpack.c.bf16 %v5518, %v5517
        %v5550 = vpack.c.bf16 %v5520, %v5519
        %v5551 = vpack.c.bf16 %v5522, %v5521
        %v5552 = vpack.c.bf16 %v5524, %v5523
        %v5553 = vpack.c.bf16 %v5526, %v5525
        %v5554 = vpack.c.bf16 %v5528, %v5527
        %v5555 = vpack.c.bf16 %v5530, %v5529
        %v5556 = vpack.c.bf16 %v5532, %v5531
        %v5557 = vpack.c.bf16 %v5534, %v5533
        %v5558 = vpack.c.bf16 %v5536, %v5535
        %v5559 = vpack.c.bf16 %v5538, %v5537
        %v5560 = vpack.c.bf16 %v5540, %v5539
        %v5561 = vpack.c.bf16 %v5542, %v5541
        %v5562 = vpack.c.bf16 %v5544, %v5543
        %v5563 = vpack.c.bf16 %v5546, %v5545
        %v5564 = vpack.c.bf16 %v5548, %v5547
        %v5565 = vld [vmem:[%s7] sm:$0xff]
        %v5566 = vld [vmem:[%s7 + $0x8] sm:$0xff]
        %v5567 = vld [vmem:[%s7 + $0x10] sm:$0xff]
        %v5568 = vld [vmem:[%s7 + $0x18] sm:$0xff]
        %v5569 = vld [vmem:[%s7 + $0x20] sm:$0xff]
        %v5570 = vld [vmem:[%s7 + $0x28] sm:$0xff]
        %v5571 = vld [vmem:[%s7 + $0x30] sm:$0xff]
        %v5572 = vld [vmem:[%s7 + $0x38] sm:$0xff]
        %v5573 = vld [vmem:[%s7 + $0x40] sm:$0xff]
        %v5574 = vld [vmem:[%s7 + $0x48] sm:$0xff]
        %v5575 = vld [vmem:[%s7 + $0x50] sm:$0xff]
        %v5576 = vld [vmem:[%s7 + $0x58] sm:$0xff]
        %v5577 = vld [vmem:[%s7 + $0x60] sm:$0xff]
        %v5578 = vld [vmem:[%s7 + $0x68] sm:$0xff]
        %v5579 = vld [vmem:[%s7 + $0x70] sm:$0xff]
        %v5580 = vld [vmem:[%s7 + $0x78] sm:$0xff]
        %v5581 = vld [vmem:[%s7 + $0x80] sm:$0xff]
        %v5582 = vld [vmem:[%s7 + $0x88] sm:$0xff]
        %v5583 = vld [vmem:[%s7 + $0x90] sm:$0xff]
        %v5584 = vld [vmem:[%s7 + $0x98] sm:$0xff]
        %v5585 = vld [vmem:[%s7 + $0xa0] sm:$0xff]
        %v5586 = vld [vmem:[%s7 + $0xa8] sm:$0xff]
        %v5587 = vld [vmem:[%s7 + $0xb0] sm:$0xff]
        %v5588 = vld [vmem:[%s7 + $0xb8] sm:$0xff]
        %v5589 = vld [vmem:[%s7 + $0xc0] sm:$0xff]
        %v5590 = vld [vmem:[%s7 + $0xc8] sm:$0xff]
        %v5591 = vld [vmem:[%s7 + $0xd0] sm:$0xff]
        %v5592 = vld [vmem:[%s7 + $0xd8] sm:$0xff]
        %v5593 = vld [vmem:[%s7 + $0xe0] sm:$0xff]
        %v5594 = vld [vmem:[%s7 + $0xe8] sm:$0xff]
        %v5595 = vld [vmem:[%s7 + $0xf0] sm:$0xff]
        %v5596 = vld [vmem:[%s7 + $0xf8] sm:$0xff]
        %v5598 = vlaneseq
        %v5599 = vshrl.u32 %v5598, 7
        %v5600 = vsub.s32 0, %v5599
        %v5601 = vrot.slane %v727, %v5600
        %v5602 = vlaneseq
        %v5603 = vshrl.u32 %v5602, 7
        %v5604 = vsub.s32 1, %v5603
        %v5605 = vrot.slane %v727, %v5604
        %v5640 = vunpack.c.l.b16 %v5565
        %v5641 = vunpack.c.h.b16 %v5565
        %v5642 = vunpack.c.l.b16 %v5566
        %v5643 = vunpack.c.h.b16 %v5566
        %v5644 = vunpack.c.l.b16 %v5567
        %v5645 = vunpack.c.h.b16 %v5567
        %v5646 = vunpack.c.l.b16 %v5568
        %v5647 = vunpack.c.h.b16 %v5568
        %v5648 = vunpack.c.l.b16 %v5569
        %v5649 = vunpack.c.h.b16 %v5569
        %v5650 = vunpack.c.l.b16 %v5570
        %v5651 = vunpack.c.h.b16 %v5570
        %v5652 = vunpack.c.l.b16 %v5571
        %v5653 = vunpack.c.h.b16 %v5571
        %v5654 = vunpack.c.l.b16 %v5572
        %v5655 = vunpack.c.h.b16 %v5572
        %v5656 = vunpack.c.l.b16 %v5573
        %v5657 = vunpack.c.h.b16 %v5573
        %v5658 = vunpack.c.l.b16 %v5574
        %v5659 = vunpack.c.h.b16 %v5574
        %v5660 = vunpack.c.l.b16 %v5575
        %v5661 = vunpack.c.h.b16 %v5575
        %v5662 = vunpack.c.l.b16 %v5576
        %v5663 = vunpack.c.h.b16 %v5576
        %v5664 = vunpack.c.l.b16 %v5577
        %v5665 = vunpack.c.h.b16 %v5577
        %v5666 = vunpack.c.l.b16 %v5578
        %v5667 = vunpack.c.h.b16 %v5578
        %v5668 = vunpack.c.l.b16 %v5579
        %v5669 = vunpack.c.h.b16 %v5579
        %v5670 = vunpack.c.l.b16 %v5580
        %v5671 = vunpack.c.h.b16 %v5580
        %v5672 = vunpack.c.l.b16 %v5581
        %v5673 = vunpack.c.h.b16 %v5581
        %v5674 = vunpack.c.l.b16 %v5582
        %v5675 = vunpack.c.h.b16 %v5582
        %v5676 = vunpack.c.l.b16 %v5583
        %v5677 = vunpack.c.h.b16 %v5583
        %v5678 = vunpack.c.l.b16 %v5584
        %v5679 = vunpack.c.h.b16 %v5584
        %v5680 = vunpack.c.l.b16 %v5585
        %v5681 = vunpack.c.h.b16 %v5585
        %v5682 = vunpack.c.l.b16 %v5586
        %v5683 = vunpack.c.h.b16 %v5586
        %v5684 = vunpack.c.l.b16 %v5587
        %v5685 = vunpack.c.h.b16 %v5587
        %v5686 = vunpack.c.l.b16 %v5588
        %v5687 = vunpack.c.h.b16 %v5588
        %v5688 = vunpack.c.l.b16 %v5589
        %v5689 = vunpack.c.h.b16 %v5589
        %v5690 = vunpack.c.l.b16 %v5590
        %v5691 = vunpack.c.h.b16 %v5590
        %v5692 = vunpack.c.l.b16 %v5591
        %v5693 = vunpack.c.h.b16 %v5591
        %v5694 = vunpack.c.l.b16 %v5592
        %v5695 = vunpack.c.h.b16 %v5592
        %v5696 = vunpack.c.l.b16 %v5593
        %v5697 = vunpack.c.h.b16 %v5593
        %v5698 = vunpack.c.l.b16 %v5594
        %v5699 = vunpack.c.h.b16 %v5594
        %v5700 = vunpack.c.l.b16 %v5595
        %v5701 = vunpack.c.h.b16 %v5595
        %v5702 = vunpack.c.l.b16 %v5596
        %v5703 = vunpack.c.h.b16 %v5596
        %v5704 = vpack.c.b16 %v5642, %v5640
        %v5705 = vpack.c.b16 %v5643, %v5641
        %v5706 = vpack.c.b16 %v5646, %v5644
        %v5707 = vpack.c.b16 %v5647, %v5645
        %v5708 = vpack.c.b16 %v5650, %v5648
        %v5709 = vpack.c.b16 %v5651, %v5649
        %v5710 = vpack.c.b16 %v5654, %v5652
        %v5711 = vpack.c.b16 %v5655, %v5653
        %v5712 = vpack.c.b16 %v5658, %v5656
        %v5713 = vpack.c.b16 %v5659, %v5657
        %v5714 = vpack.c.b16 %v5662, %v5660
        %v5715 = vpack.c.b16 %v5663, %v5661
        %v5716 = vpack.c.b16 %v5666, %v5664
        %v5717 = vpack.c.b16 %v5667, %v5665
        %v5718 = vpack.c.b16 %v5670, %v5668
        %v5719 = vpack.c.b16 %v5671, %v5669
        %v5720 = vpack.c.b16 %v5674, %v5672
        %v5721 = vpack.c.b16 %v5675, %v5673
        %v5722 = vpack.c.b16 %v5678, %v5676
        %v5723 = vpack.c.b16 %v5679, %v5677
        %v5724 = vpack.c.b16 %v5682, %v5680
        %v5725 = vpack.c.b16 %v5683, %v5681
        %v5726 = vpack.c.b16 %v5686, %v5684
        %v5727 = vpack.c.b16 %v5687, %v5685
        %v5728 = vpack.c.b16 %v5690, %v5688
        %v5729 = vpack.c.b16 %v5691, %v5689
        %v5730 = vpack.c.b16 %v5694, %v5692
        %v5731 = vpack.c.b16 %v5695, %v5693
        %v5732 = vpack.c.b16 %v5698, %v5696
        %v5733 = vpack.c.b16 %v5699, %v5697
        %v5734 = vpack.c.b16 %v5702, %v5700
        %v5735 = vpack.c.b16 %v5703, %v5701
        %5768 = vmatprep.subr.bf16.mxu0 %v5719
        %5769 = vmatpush1.bf16.msra.mxu0 %v5718
        %5770 = vmatprep.subr.bf16.mxu0 %v5717
        %5771 = vmatpush1.bf16.msra.mxu0 %v5716
        %5772 = vmatprep.subr.bf16.mxu0 %v5715
        %5773 = vmatpush1.bf16.msra.mxu0 %v5714
        %5774 = vmatprep.subr.bf16.mxu0 %v5713
        %5775 = vmatpush1.bf16.msra.mxu0 %v5712
        %5776 = vmatprep.subr.bf16.mxu0 %v5711
        %5777 = vmatpush1.bf16.msra.mxu0 %v5710
        %5778 = vmatprep.subr.bf16.mxu0 %v5709
        %5779 = vmatpush1.bf16.msra.mxu0 %v5708
        %5780 = vmatprep.subr.bf16.mxu0 %v5707
        %5781 = vmatpush1.bf16.msra.mxu0 %v5706
        %5782 = vmatprep.subr.bf16.mxu0 %v5705
        %5783 = vmatpush1.bf16.msra.mxu0 %v5704
        %5784 = vmatprep.subr.bf16.mxu0 %v5735
        %5785 = vmatpush2.bf16.msra.mxu0 %v5734
        %5786 = vmatprep.subr.bf16.mxu0 %v5733
        %5787 = vmatpush2.bf16.msra.mxu0 %v5732
        %5788 = vmatprep.subr.bf16.mxu0 %v5731
        %5789 = vmatpush2.bf16.msra.mxu0 %v5730
        %5790 = vmatprep.subr.bf16.mxu0 %v5729
        %5791 = vmatpush2.bf16.msra.mxu0 %v5728
        %5792 = vmatprep.subr.bf16.mxu0 %v5727
        %5793 = vmatpush2.bf16.msra.mxu0 %v5726
        %5794 = vmatprep.subr.bf16.mxu0 %v5725
        %5795 = vmatpush2.bf16.msra.mxu0 %v5724
        %5796 = vmatprep.subr.bf16.mxu0 %v5723
        %5797 = vmatpush2.bf16.msra.mxu0 %v5722
        %5798 = vmatprep.subr.bf16.mxu0 %v5721
        %5799 = vmatpush2.bf16.msra.mxu0 %v5720
        %5800 = vmatprep.mubr.bf16.mxu0 %v5557
        %5801 = vmatmul.mubr.bf16.gmra.mxu0 %v5549
        %v5802 = vpop.f32.mrf.mxu0
        %v5803 = vadd.f32 %v5601, %v5802
        %v5804 = vpop.f32.mrf.mxu0
        %v5805 = vadd.f32 %v5605, %v5804
        %v5806 = vpop.f32.mrf.mxu0
        %v5807 = vadd.f32 %v5601, %v5806
        %v5808 = vpop.f32.mrf.mxu0
        %v5809 = vadd.f32 %v5605, %v5808
        %5810 = vmatprep.mubr.bf16.mxu0 %v5558
        %5811 = vmatmul.mubr.bf16.gmra.mxu0 %v5550
        %v5812 = vpop.f32.mrf.mxu0
        %v5813 = vadd.f32 %v5601, %v5812
        %v5814 = vpop.f32.mrf.mxu0
        %v5815 = vadd.f32 %v5605, %v5814
        %v5816 = vpop.f32.mrf.mxu0
        %v5817 = vadd.f32 %v5601, %v5816
        %v5818 = vpop.f32.mrf.mxu0
        %v5819 = vadd.f32 %v5605, %v5818
        %5820 = vmatprep.mubr.bf16.mxu0 %v5559
        %5821 = vmatmul.mubr.bf16.gmra.mxu0 %v5551
        %v5822 = vpop.f32.mrf.mxu0
        %v5823 = vadd.f32 %v5601, %v5822
        %v5824 = vpop.f32.mrf.mxu0
        %v5825 = vadd.f32 %v5605, %v5824
        %v5826 = vpop.f32.mrf.mxu0
        %v5827 = vadd.f32 %v5601, %v5826
        %v5828 = vpop.f32.mrf.mxu0
        %v5829 = vadd.f32 %v5605, %v5828
        %5830 = vmatprep.mubr.bf16.mxu0 %v5560
        %5831 = vmatmul.mubr.bf16.gmra.mxu0 %v5552
        %v5832 = vpop.f32.mrf.mxu0
        %v5833 = vadd.f32 %v5601, %v5832
        %v5834 = vpop.f32.mrf.mxu0
        %v5835 = vadd.f32 %v5605, %v5834
        %v5836 = vpop.f32.mrf.mxu0
        %v5837 = vadd.f32 %v5601, %v5836
        %v5838 = vpop.f32.mrf.mxu0
        %v5839 = vadd.f32 %v5605, %v5838
        %5840 = vmatprep.mubr.bf16.mxu0 %v5561
        %5841 = vmatmul.mubr.bf16.gmra.mxu0 %v5553
        %v5842 = vpop.f32.mrf.mxu0
        %v5843 = vadd.f32 %v5601, %v5842
        %v5844 = vpop.f32.mrf.mxu0
        %v5845 = vadd.f32 %v5605, %v5844
        %v5846 = vpop.f32.mrf.mxu0
        %v5847 = vadd.f32 %v5601, %v5846
        %v5848 = vpop.f32.mrf.mxu0
        %v5849 = vadd.f32 %v5605, %v5848
        %5850 = vmatprep.mubr.bf16.mxu0 %v5562
        %5851 = vmatmul.mubr.bf16.gmra.mxu0 %v5554
        %v5852 = vpop.f32.mrf.mxu0
        %v5853 = vadd.f32 %v5601, %v5852
        %v5854 = vpop.f32.mrf.mxu0
        %v5855 = vadd.f32 %v5605, %v5854
        %v5856 = vpop.f32.mrf.mxu0
        %v5857 = vadd.f32 %v5601, %v5856
        %v5858 = vpop.f32.mrf.mxu0
        %v5859 = vadd.f32 %v5605, %v5858
        %5860 = vmatprep.mubr.bf16.mxu0 %v5563
        %5861 = vmatmul.mubr.bf16.gmra.mxu0 %v5555
        %v5862 = vpop.f32.mrf.mxu0
        %v5863 = vadd.f32 %v5601, %v5862
        %v5864 = vpop.f32.mrf.mxu0
        %v5865 = vadd.f32 %v5605, %v5864
        %v5866 = vpop.f32.mrf.mxu0
        %v5867 = vadd.f32 %v5601, %v5866
        %v5868 = vpop.f32.mrf.mxu0
        %v5869 = vadd.f32 %v5605, %v5868
        %5870 = vmatprep.mubr.bf16.mxu0 %v5564
        %5871 = vmatmul.mubr.bf16.gmra.mxu0 %v5556
        %v5872 = vpop.f32.mrf.mxu0
        %v5873 = vadd.f32 %v5601, %v5872
        %v5874 = vpop.f32.mrf.mxu0
        %v5875 = vadd.f32 %v5605, %v5874
        %v5876 = vpop.f32.mrf.mxu0
        %v5877 = vadd.f32 %v5601, %v5876
        %v5878 = vpop.f32.mrf.mxu0
        %v5879 = vadd.f32 %v5605, %v5878
        %5880 = vdwg.mxu0
        %5881 = vst [vmem:[%s658] sm:$0xff] %v5803
        %5882 = vst [vmem:[%s658 + $0x8] sm:$0xff] %v5805
        %5883 = vst [vmem:[%s658 + $0x10] sm:$0xff] %v5807
        %5884 = vst [vmem:[%s658 + $0x18] sm:$0xff] %v5809
        %5885 = vst [vmem:[%s658 + $0x20] sm:$0xff] %v5813
        %5886 = vst [vmem:[%s658 + $0x28] sm:$0xff] %v5815
        %5887 = vst [vmem:[%s658 + $0x30] sm:$0xff] %v5817
        %5888 = vst [vmem:[%s658 + $0x38] sm:$0xff] %v5819
        %5889 = vst [vmem:[%s658 + $0x40] sm:$0xff] %v5823
        %5890 = vst [vmem:[%s658 + $0x48] sm:$0xff] %v5825
        %5891 = vst [vmem:[%s658 + $0x50] sm:$0xff] %v5827
        %5892 = vst [vmem:[%s658 + $0x58] sm:$0xff] %v5829
        %5893 = vst [vmem:[%s658 + $0x60] sm:$0xff] %v5833
        %5894 = vst [vmem:[%s658 + $0x68] sm:$0xff] %v5835
        %5895 = vst [vmem:[%s658 + $0x70] sm:$0xff] %v5837
        %5896 = vst [vmem:[%s658 + $0x78] sm:$0xff] %v5839
        %5897 = vst [vmem:[%s658 + $0x80] sm:$0xff] %v5843
        %5898 = vst [vmem:[%s658 + $0x88] sm:$0xff] %v5845
        %5899 = vst [vmem:[%s658 + $0x90] sm:$0xff] %v5847
        %5900 = vst [vmem:[%s658 + $0x98] sm:$0xff] %v5849
        %5901 = vst [vmem:[%s658 + $0xa0] sm:$0xff] %v5853
        %5902 = vst [vmem:[%s658 + $0xa8] sm:$0xff] %v5855
        %5903 = vst [vmem:[%s658 + $0xb0] sm:$0xff] %v5857
        %5904 = vst [vmem:[%s658 + $0xb8] sm:$0xff] %v5859
        %5905 = vst [vmem:[%s658 + $0xc0] sm:$0xff] %v5863
        %5906 = vst [vmem:[%s658 + $0xc8] sm:$0xff] %v5865
        %5907 = vst [vmem:[%s658 + $0xd0] sm:$0xff] %v5867
        %5908 = vst [vmem:[%s658 + $0xd8] sm:$0xff] %v5869
        %5909 = vst [vmem:[%s658 + $0xe0] sm:$0xff] %v5873
        %5910 = vst [vmem:[%s658 + $0xe8] sm:$0xff] %v5875
        %5911 = vst [vmem:[%s658 + $0xf0] sm:$0xff] %v5877
        %5912 = vst [vmem:[%s658 + $0xf8] sm:$0xff] %v5879
        %s5913 = smul.u32 16, %s21
        %p5914 = scmp.lt.s32.totalorder %s5913, 31
        %s5915 = scalar_select %p5914, %s5913, 31
        %s5916 = smul.addr %s5915, 2
        %s5917 = smul.addr %s5916, 8
        %s5918 = scalar_lea.vmem %s10, %s5917
        // Predicated region
        $region102: #{octsqueeze_forward.1} parent=96 // pred_check
          %p5919 = pneg %p254
        $region103: #{octsqueeze_forward.1} parent=96 // pred_check_branch
          %5921 = sbr.rel (%p5919) target = $region105
        $region104: #{octsqueeze_forward.1} parent=96 // pred_region
          %s5922 = smul.u32 16, %s21
        $region105: #{octsqueeze_forward.1} parent=96 // pred_fallthru
          _
      $region97: #{octsqueeze_forward.1} parent=5 // pred_fallthru
        _
      %p5923 = scmp.le.s32.totalorder 2, %s16
      // Predicated region
      $region106: #{octsqueeze_forward.1} parent=5 // pred_check
        %p5924 = pneg %p5923
      $region107: #{octsqueeze_forward.1} parent=5 // pred_check_branch
        %5926 = sbr.rel (%p5924) target = $region109
      $region108: #{octsqueeze_forward.1} parent=5 // pred_region
        %s5927 = ssub.s32 %s16, 2
        // Predicated region
        $region110: #{octsqueeze_forward.1} parent=108 // pred_check
          %p5928 = pneg %p260
        $region111: #{octsqueeze_forward.1} parent=108 // pred_check_branch
          %5930 = sbr.rel (%p5928) target = $region113
        $region112: #{octsqueeze_forward.1} parent=108 // pred_region
          %s5931 = smul.u32 16, %s22
          %p5932 = scmp.lt.s32.totalorder %s5931, 31
          %s5933 = scalar_select %p5932, %s5931, 31
          %s5934 = smul.addr %s5933, 2
          %s5935 = smul.addr %s5934, 8
          %s5936 = scalar_lea.vmem %s10, %s5935
        $region113: #{octsqueeze_forward.1} parent=108 // pred_fallthru
          _
      $region109: #{octsqueeze_forward.1} parent=5 // pred_fallthru
        _
    $region6: #{octsqueeze_forward.1} parent=1 // loop_footer
      %s20 = sadd.s32 1, %s16
    $region7: #{octsqueeze_forward.1} parent=1 // loop_footer_branch
      %15 = sbr.rel target = $region3
    $region8: #{octsqueeze_forward.1} parent=1 // loop_exit
      _

</llo_original>
